<compile_context>
chip_gen: v7x
topology: tpu7x:2x2x1
jax: 0.10.0
libtpu: 0.0.40
codegen_flags: <defaults>
</compile_context>

<pallas_src>
import functools

import jax
import jax.numpy as jnp
from jax import lax
from jax.experimental import pallas as pl
from jax.experimental.pallas import tpu as pltpu


def _conv3x3(inp_f32, w_ref, *, rows_out, width, ch):
    """3x3 conv, stride 1, 'same' in W, 'valid' in H (the halo rows supply the
    H context).  inp_f32: (rows_out + 2, width, ch) f32.  w_ref: Ref of shape
    (3, 3*ch, ch) bf16, second axis ordered (kw, cin) row-major.
    Returns (rows_out * width, ch) f32 (MXU bf16 operands, f32 accumulation).
    """
    rows_in = rows_out + 2
    xw = inp_f32.astype(jnp.bfloat16)                       # MXU operand dtype
    zcol = jnp.zeros((rows_in, 1, ch), jnp.bfloat16)
    xw = jnp.concatenate([zcol, xw, zcol], axis=1)          # (rows_in, W+2, C)
    # kw-im2col hoisted out of the kh loop: built ONCE per conv.
    taps = jnp.concatenate(
        [xw[:, 0:width], xw[:, 1:width + 1], xw[:, 2:width + 2]], axis=-1)
    acc = None
    for kh in range(3):                                     # 3 matmuls, K = 3*C
        t = taps[kh:kh + rows_out].reshape(rows_out * width, 3 * ch)
        d = jnp.dot(t, w_ref[kh], preferred_element_type=jnp.float32)
        acc = d if acc is None else acc + d
    return acc


def _rcu_kernel(xm_ref, xt_ref, w1_ref, b1_ref, w2_ref, o_ref, *,
                strip, width, ch, true_h):
    # xm_ref: (1, S, W, C)  body block  = padded rows [s*S, s*S+S)
    # xt_ref: (1, 4, W, C)  tail block  = padded rows [s*S+S, s*S+S+4)
    # together: original rows [s*S-2, s*S+S+2)  (2-row halo per side)
    S, W, C = strip, width, ch
    s = pl.program_id(1)

    # relu(x) over the halo window (zero rows outside the image come from the
    # wrapper's H pre-pad, and relu(0) == 0).
    a = jnp.maximum(jnp.concatenate([xm_ref[0], xt_ref[0]], axis=0), 0.0)

    # conv1 (+bias, relu) over window output rows 1..S+2  ->  original rows
    # [s*S-1, s*S+S+1): the strip plus one row of context per side for conv2.
    h1 = _conv3x3(a, w1_ref, rows_out=S + 2, width=W, ch=C)   # ((S+2)*W, C) f32
    h1 = jnp.maximum(h1 + b1_ref[...], 0.0)

    # conv2 zero-pads conv1's *output* at the true image boundary: any h1 row
    # whose original row index falls outside [0, true_h) must be zero.
    # flat row i  ->  original row  s*S - 1 + i // W, masked without a divide.
    i = lax.broadcasted_iota(jnp.int32, ((S + 2) * W, 1), 0)
    lo = W * (1 - s * S)
    hi = W * (true_h + 1 - s * S)
    h1 = jnp.where((i >= lo) & (i < hi), h1, 0.0)
    h1 = h1.reshape(S + 2, W, C)

    # conv2 (no bias) over h1 rows 1..S  ->  exactly the output strip.
    h2 = _conv3x3(h1, w2_ref, rows_out=S, width=W, ch=C)      # (S*W, C) f32

    # Residual: original rows [s*S, s*S+S), re-read from the (still resident)
    # input blocks instead of holding an f32 copy of x across both convs.
    xres = jnp.concatenate([xm_ref[0, 2:S], xt_ref[0, 0:2]], axis=0)
    o_ref[0] = (h2 + xres.reshape(S * W, C)).reshape(S, W, C).astype(o_ref.dtype)


def _round_up(v, m):
    return ((v + m - 1) // m) * m


def _auto_strip_rows(H, W, Cp, budget_bytes=16 * 1024 * 1024):
    """Pick a strip height so the in-kernel working set (~48 B per output
    element across window, taps, accumulators and double-buffered in/out
    blocks) stays within `budget_bytes`."""
    per_row = 48 * W * Cp
    return int(max(4, min(256, budget_bytes // max(per_row, 1))))


def residual_conv_unit_nhwc(x_nhwc, w1_oihw, b1, w2_oihw, *,
                            strip_rows=None, lane=128):
    """Core entry point.  x_nhwc: (N, H, W, C) f32.
    w1_oihw/w2_oihw: (Cout, Cin, 3, 3) PyTorch layout, b1: (C,)."""
    N, H, W, C = x_nhwc.shape
    Cp = C if C % lane == 0 else _round_up(C, lane)   # lane-dense channels

    if strip_rows is None:
        strip_rows = _auto_strip_rows(H, W, Cp)
    S = max(4, (min(strip_rows, _round_up(H, 4)) // 4) * 4)   # S % 4 == 0
    num_s = (H + S - 1) // S
    Hp = num_s * S                                    # strip-aligned height

    x = x_nhwc.astype(jnp.float32)
    if Cp != C:                                       # skip pad when C % 128 == 0
        x = jnp.pad(x, ((0, 0), (0, 0), (0, 0), (0, Cp - C)))
    # 2 halo rows on top; (Hp - H) alignment rows + 2 halo rows at the bottom.
    xpad = jnp.pad(x, ((0, 0), (2, Hp - H + 2), (0, 0), (0, 0)))

    def prep_w(w_oihw):                               # -> (3, 3*Cp, Cp) bf16
        w = jnp.transpose(w_oihw, (2, 3, 1, 0)).astype(jnp.float32)
        if Cp != C:
            w = jnp.pad(w, ((0, 0), (0, 0), (0, Cp - C), (0, Cp - C)))
        return w.reshape(3, 3 * Cp, Cp).astype(jnp.bfloat16)  # row = kw*Cp + cin

    w1 = prep_w(w1_oihw)
    w2 = prep_w(w2_oihw)
    b1p = b1.astype(jnp.float32)
    if Cp != C:
        b1p = jnp.pad(b1p, (0, Cp - C))
    b1p = b1p.reshape(1, Cp)

    kernel = functools.partial(_rcu_kernel, strip=S, width=W, ch=Cp, true_h=H)

    # VMEM budget: double-buffered in/out strips + grid-invariant bf16 weights
    # + in-kernel temporaries (window, taps, h1, accumulators).
    strip_bytes = S * W * Cp * 4
    est = (4 * strip_bytes + 2 * 4 * W * Cp * 4
           + 2 * 2 * (3 * 3 * Cp * Cp * 2) + 9 * strip_bytes)
    vmem_limit = int(min(max(32 * 1024 * 1024, 2 * est), 48 * 1024 * 1024))

    out = pl.pallas_call(
        kernel,
        out_shape=jax.ShapeDtypeStruct((N, Hp, W, Cp), jnp.float32),
        grid=(N, num_s),
        in_specs=[
            # strip body: padded rows [s*S, s*S + S)
            pl.BlockSpec((1, S, W, Cp), lambda n, s: (n, s, 0, 0)),
            # 4-row tail (halo): padded rows [s*S + S, s*S + S + 4)
            pl.BlockSpec((1, 4, W, Cp), lambda n, s: (n, (s + 1) * (S // 4), 0, 0)),
            # grid-invariant weights / bias: DMA'd once, bf16 resident
            pl.BlockSpec((3, 3 * Cp, Cp), lambda n, s: (0, 0, 0)),
            pl.BlockSpec((1, Cp), lambda n, s: (0, 0)),
            pl.BlockSpec((3, 3 * Cp, Cp), lambda n, s: (0, 0, 0)),
        ],
        out_specs=pl.BlockSpec((1, S, W, Cp), lambda n, s: (n, s, 0, 0)),
        compiler_params=pltpu.CompilerParams(
            dimension_semantics=("parallel", "parallel"),
            vmem_limit_bytes=vmem_limit),
    )(xpad, xpad, w1, b1p, w2)

    if Hp != H:
        out = out[:, :H]
    if Cp != C:
        out = out[..., :C]
    return out


def residual_conv_unit(x_nchw, w1_oihw, b1, w2_oihw, *, strip_rows=None):
    """PyTorch-layout convenience wrapper: NCHW in, NCHW out.
    (For best performance keep the surrounding model NHWC and call
    residual_conv_unit_nhwc directly; these transposes are extra HBM passes.)"""
    x = jnp.transpose(x_nchw, (0, 2, 3, 1))
    y = residual_conv_unit_nhwc(x, w1_oihw, b1, w2_oihw, strip_rows=strip_rows)
    return jnp.transpose(y, (0, 3, 1, 2))


def _reference(x_nchw, w1_oihw, b1, w2_oihw):
    """Pure-JAX NCHW reference matching the PyTorch module (f32 throughout)."""
    out = jnp.maximum(x_nchw, 0.0)
    out = lax.conv_general_dilated(
        out, w1_oihw, window_strides=(1, 1), padding=((1, 1), (1, 1)),
        dimension_numbers=("NCHW", "OIHW", "NCHW"))
    out = out + b1[None, :, None, None]
    out = jnp.maximum(out, 0.0)
    out = lax.conv_general_dilated(
        out, w2_oihw, window_strides=(1, 1), padding=((1, 1), (1, 1)),
        dimension_numbers=("NCHW", "OIHW", "NCHW"))
    return out + x_nchw


if __name__ == "__main__":
    N, C, H, W = 2, 4, 16, 16
    key = jax.random.PRNGKey(0)
    kx, k1, kb, k2 = jax.random.split(key, 4)
    x = jax.random.normal(kx, (N, C, H, W), dtype=jnp.float32)
    w1 = jax.random.normal(k1, (C, C, 3, 3), dtype=jnp.float32) / jnp.sqrt(9.0 * C)
    b1 = 0.1 * jax.random.normal(kb, (C,), dtype=jnp.float32)
    w2 = jax.random.normal(k2, (C, C, 3, 3), dtype=jnp.float32) / jnp.sqrt(9.0 * C)

    # strip_rows=8 -> 2 strips per image, exercising the halo + boundary-mask path.
    out = jax.block_until_ready(residual_conv_unit(x, w1, b1, w2, strip_rows=8))
    ref = jax.block_until_ready(_reference(x, w1, b1, w2))

    assert out.shape == (N, C, H, W)
    # bf16 MXU operands (f32 accumulation) -> slightly looser tolerance than pure f32.
    assert jnp.allclose(out, ref, rtol=5e-2, atol=5e-2), "mismatch vs JAX reference"
    print("KERNEL_OK")
</pallas_src>

<mosaic_0001>
module attributes {stable_mosaic.version = 11 : i64} {
  func.func @_rcu_kernel(%arg0: i32, %arg1: i32, %arg2: memref<1x8x16x128xf32, #tpu.memory_space<vmem>>, %arg3: memref<1x4x16x128xf32, #tpu.memory_space<vmem>>, %arg4: memref<3x384x128xbf16, #tpu.memory_space<vmem>>, %arg5: memref<1x128xf32, #tpu.memory_space<vmem>>, %arg6: memref<3x384x128xbf16, #tpu.memory_space<vmem>>, %arg7: memref<1x8x16x128xf32, #tpu.memory_space<vmem>>) attributes {dimension_semantics = [#tpu.dimension_semantics<parallel>, #tpu.dimension_semantics<parallel>], iteration_bounds = array<i64: 2, 2>, scalar_prefetch = 0 : i64, scratch_operands = 0 : i64, tpu.core_type = #tpu.core_type<tc>, window_params = [{transform_indices = @transform_0, window_bounds = array<i64: 1, 8, 16, 128>}, {transform_indices = @transform_1, window_bounds = array<i64: 1, 4, 16, 128>}, {pipeline_mode = #tpu.pipeline_mode<synchronous>, transform_indices = @transform_2, window_bounds = array<i64: 3, 384, 128>}, {pipeline_mode = #tpu.pipeline_mode<synchronous>, transform_indices = @transform_3, window_bounds = array<i64: 1, 128>}, {pipeline_mode = #tpu.pipeline_mode<synchronous>, transform_indices = @transform_4, window_bounds = array<i64: 3, 384, 128>}, {transform_indices = @transform_5, window_bounds = array<i64: 1, 8, 16, 128>}]} {
    %c0 = arith.constant 0 : index
    %c0_0 = arith.constant 0 : index
    %c0_1 = arith.constant 0 : index
    %c0_2 = arith.constant 0 : index
    %0 = vector.load %arg2[%c0, %c0_0, %c0_1, %c0_2] : memref<1x8x16x128xf32, #tpu.memory_space<vmem>>, vector<1x8x16x128xf32>
    %1 = vector.shape_cast %0 : vector<1x8x16x128xf32> to vector<8x16x128xf32>
    %c0_3 = arith.constant 0 : index
    %c0_4 = arith.constant 0 : index
    %c0_5 = arith.constant 0 : index
    %c0_6 = arith.constant 0 : index
    %2 = vector.load %arg3[%c0_3, %c0_4, %c0_5, %c0_6] : memref<1x4x16x128xf32, #tpu.memory_space<vmem>>, vector<1x4x16x128xf32>
    %3 = vector.shape_cast %2 : vector<1x4x16x128xf32> to vector<4x16x128xf32>
    %4 = tpu.concatenate %1, %3 in 0 : vector<8x16x128xf32>, vector<4x16x128xf32> -> vector<12x16x128xf32>
    %cst = arith.constant 0.000000e+00 : f32
    %5 = vector.broadcast %cst : f32 to vector<12x16x128xf32>
    %6 = arith.maximumf %4, %5 : vector<12x16x128xf32>
    %7 = arith.truncf %6 : vector<12x16x128xf32> to vector<12x16x128xbf16>
    %cst_7 = arith.constant 0.000000e+00 : bf16
    %8 = vector.broadcast %cst_7 : bf16 to vector<12x1x128xbf16>
    %9 = tpu.concatenate %8, %7, %8 in 1 : vector<12x1x128xbf16>, vector<12x16x128xbf16>, vector<12x1x128xbf16> -> vector<12x18x128xbf16>
    %10 = vector.extract_strided_slice %9 {offsets = [0, 0, 0], sizes = [12, 16, 128], strides = [1, 1, 1]} : vector<12x18x128xbf16> to vector<12x16x128xbf16>
    %11 = vector.extract_strided_slice %9 {offsets = [0, 1, 0], sizes = [12, 16, 128], strides = [1, 1, 1]} : vector<12x18x128xbf16> to vector<12x16x128xbf16>
    %12 = vector.extract_strided_slice %9 {offsets = [0, 2, 0], sizes = [12, 16, 128], strides = [1, 1, 1]} : vector<12x18x128xbf16> to vector<12x16x128xbf16>
    %13 = tpu.concatenate %10, %11, %12 in 2 : vector<12x16x128xbf16>, vector<12x16x128xbf16>, vector<12x16x128xbf16> -> vector<12x16x384xbf16>
    %14 = vector.extract_strided_slice %13 {offsets = [0, 0, 0], sizes = [10, 16, 384], strides = [1, 1, 1]} : vector<12x16x384xbf16> to vector<10x16x384xbf16>
    %15 = vector.shape_cast %14 : vector<10x16x384xbf16> to vector<160x384xbf16>
    %c0_8 = arith.constant 0 : index
    %c0_9 = arith.constant 0 : index
    %c0_10 = arith.constant 0 : index
    %16 = vector.load %arg4[%c0_8, %c0_9, %c0_10] : memref<3x384x128xbf16, #tpu.memory_space<vmem>>, vector<1x384x128xbf16>
    %17 = vector.shape_cast %16 : vector<1x384x128xbf16> to vector<384x128xbf16>
    %cst_11 = arith.constant dense<0.000000e+00> : vector<160x128xf32>
    %18 = tpu.matmul %15, %17, %cst_11 {dimension_numbers = #tpu.dot_dimension_numbers<[1], [0], [0], [1], [0, 0, 1, 1], [], []>} : vector<160x384xbf16>, vector<384x128xbf16>, vector<160x128xf32> -> vector<160x128xf32>
    %19 = vector.extract_strided_slice %13 {offsets = [1, 0, 0], sizes = [10, 16, 384], strides = [1, 1, 1]} : vector<12x16x384xbf16> to vector<10x16x384xbf16>
    %20 = vector.shape_cast %19 : vector<10x16x384xbf16> to vector<160x384xbf16>
    %c1 = arith.constant 1 : index
    %c0_12 = arith.constant 0 : index
    %c0_13 = arith.constant 0 : index
    %21 = vector.load %arg4[%c1, %c0_12, %c0_13] : memref<3x384x128xbf16, #tpu.memory_space<vmem>>, vector<1x384x128xbf16>
    %22 = vector.shape_cast %21 : vector<1x384x128xbf16> to vector<384x128xbf16>
    %cst_14 = arith.constant dense<0.000000e+00> : vector<160x128xf32>
    %23 = tpu.matmul %20, %22, %cst_14 {dimension_numbers = #tpu.dot_dimension_numbers<[1], [0], [0], [1], [0, 0, 1, 1], [], []>} : vector<160x384xbf16>, vector<384x128xbf16>, vector<160x128xf32> -> vector<160x128xf32>
    %24 = arith.addf %18, %23 : vector<160x128xf32>
    %25 = vector.extract_strided_slice %13 {offsets = [2, 0, 0], sizes = [10, 16, 384], strides = [1, 1, 1]} : vector<12x16x384xbf16> to vector<10x16x384xbf16>
    %26 = vector.shape_cast %25 : vector<10x16x384xbf16> to vector<160x384xbf16>
    %c2 = arith.constant 2 : index
    %c0_15 = arith.constant 0 : index
    %c0_16 = arith.constant 0 : index
    %27 = vector.load %arg4[%c2, %c0_15, %c0_16] : memref<3x384x128xbf16, #tpu.memory_space<vmem>>, vector<1x384x128xbf16>
    %28 = vector.shape_cast %27 : vector<1x384x128xbf16> to vector<384x128xbf16>
    %cst_17 = arith.constant dense<0.000000e+00> : vector<160x128xf32>
    %29 = tpu.matmul %26, %28, %cst_17 {dimension_numbers = #tpu.dot_dimension_numbers<[1], [0], [0], [1], [0, 0, 1, 1], [], []>} : vector<160x384xbf16>, vector<384x128xbf16>, vector<160x128xf32> -> vector<160x128xf32>
    %30 = arith.addf %24, %29 : vector<160x128xf32>
    %c0_18 = arith.constant 0 : index
    %c0_19 = arith.constant 0 : index
    %31 = vector.load %arg5[%c0_18, %c0_19] : memref<1x128xf32, #tpu.memory_space<vmem>>, vector<1x128xf32>
    %32 = vector.broadcast %31 : vector<1x128xf32> to vector<160x128xf32>
    %33 = arith.addf %30, %32 : vector<160x128xf32>
    %cst_20 = arith.constant 0.000000e+00 : f32
    %34 = vector.broadcast %cst_20 : f32 to vector<160x128xf32>
    %35 = arith.maximumf %33, %34 : vector<160x128xf32>
    %36 = tpu.iota {dimensions = array<i32: 0>} : vector<160x1xi32>
    %c8_i32 = arith.constant 8 : i32
    %37 = arith.muli %arg1, %c8_i32 : i32
    %c1_i32 = arith.constant 1 : i32
    %38 = arith.subi %c1_i32, %37 : i32
    %c16_i32 = arith.constant 16 : i32
    %39 = arith.muli %c16_i32, %38 : i32
    %c8_i32_21 = arith.constant 8 : i32
    %40 = arith.muli %arg1, %c8_i32_21 : i32
    %c17_i32 = arith.constant 17 : i32
    %41 = arith.subi %c17_i32, %40 : i32
    %c16_i32_22 = arith.constant 16 : i32
    %42 = arith.muli %c16_i32_22, %41 : i32
    %43 = vector.broadcast %39 : i32 to vector<160x1xi32>
    %44 = arith.cmpi sge, %36, %43 : vector<160x1xi32>
    %45 = vector.broadcast %42 : i32 to vector<160x1xi32>
    %46 = arith.cmpi slt, %36, %45 : vector<160x1xi32>
    %47 = arith.andi %44, %46 : vector<160x1xi1>
    %cst_23 = arith.constant 0.000000e+00 : f32
    %48 = vector.shape_cast %47 : vector<160x1xi1> to vector<160x1xi1>
    %49 = vector.broadcast %48 : vector<160x1xi1> to vector<160x128xi1>
    %50 = vector.broadcast %cst_23 : f32 to vector<160x128xf32>
    %51 = arith.select %49, %35, %50 : vector<160x128xi1>, vector<160x128xf32>
    %52 = vector.shape_cast %51 : vector<160x128xf32> to vector<10x16x128xf32>
    %53 = arith.truncf %52 : vector<10x16x128xf32> to vector<10x16x128xbf16>
    %cst_24 = arith.constant 0.000000e+00 : bf16
    %54 = vector.broadcast %cst_24 : bf16 to vector<10x1x128xbf16>
    %55 = tpu.concatenate %54, %53, %54 in 1 : vector<10x1x128xbf16>, vector<10x16x128xbf16>, vector<10x1x128xbf16> -> vector<10x18x128xbf16>
    %56 = vector.extract_strided_slice %55 {offsets = [0, 0, 0], sizes = [10, 16, 128], strides = [1, 1, 1]} : vector<10x18x128xbf16> to vector<10x16x128xbf16>
    %57 = vector.extract_strided_slice %55 {offsets = [0, 1, 0], sizes = [10, 16, 128], strides = [1, 1, 1]} : vector<10x18x128xbf16> to vector<10x16x128xbf16>
    %58 = vector.extract_strided_slice %55 {offsets = [0, 2, 0], sizes = [10, 16, 128], strides = [1, 1, 1]} : vector<10x18x128xbf16> to vector<10x16x128xbf16>
    %59 = tpu.concatenate %56, %57, %58 in 2 : vector<10x16x128xbf16>, vector<10x16x128xbf16>, vector<10x16x128xbf16> -> vector<10x16x384xbf16>
    %60 = vector.extract_strided_slice %59 {offsets = [0, 0, 0], sizes = [8, 16, 384], strides = [1, 1, 1]} : vector<10x16x384xbf16> to vector<8x16x384xbf16>
    %61 = vector.shape_cast %60 : vector<8x16x384xbf16> to vector<128x384xbf16>
    %c0_25 = arith.constant 0 : index
    %c0_26 = arith.constant 0 : index
    %c0_27 = arith.constant 0 : index
    %62 = vector.load %arg6[%c0_25, %c0_26, %c0_27] : memref<3x384x128xbf16, #tpu.memory_space<vmem>>, vector<1x384x128xbf16>
    %63 = vector.shape_cast %62 : vector<1x384x128xbf16> to vector<384x128xbf16>
    %cst_28 = arith.constant dense<0.000000e+00> : vector<128x128xf32>
    %64 = tpu.matmul %61, %63, %cst_28 {dimension_numbers = #tpu.dot_dimension_numbers<[1], [0], [0], [1], [0, 0, 1, 1], [], []>} : vector<128x384xbf16>, vector<384x128xbf16>, vector<128x128xf32> -> vector<128x128xf32>
    %65 = vector.extract_strided_slice %59 {offsets = [1, 0, 0], sizes = [8, 16, 384], strides = [1, 1, 1]} : vector<10x16x384xbf16> to vector<8x16x384xbf16>
    %66 = vector.shape_cast %65 : vector<8x16x384xbf16> to vector<128x384xbf16>
    %c1_29 = arith.constant 1 : index
    %c0_30 = arith.constant 0 : index
    %c0_31 = arith.constant 0 : index
    %67 = vector.load %arg6[%c1_29, %c0_30, %c0_31] : memref<3x384x128xbf16, #tpu.memory_space<vmem>>, vector<1x384x128xbf16>
    %68 = vector.shape_cast %67 : vector<1x384x128xbf16> to vector<384x128xbf16>
    %cst_32 = arith.constant dense<0.000000e+00> : vector<128x128xf32>
    %69 = tpu.matmul %66, %68, %cst_32 {dimension_numbers = #tpu.dot_dimension_numbers<[1], [0], [0], [1], [0, 0, 1, 1], [], []>} : vector<128x384xbf16>, vector<384x128xbf16>, vector<128x128xf32> -> vector<128x128xf32>
    %70 = arith.addf %64, %69 : vector<128x128xf32>
    %71 = vector.extract_strided_slice %59 {offsets = [2, 0, 0], sizes = [8, 16, 384], strides = [1, 1, 1]} : vector<10x16x384xbf16> to vector<8x16x384xbf16>
    %72 = vector.shape_cast %71 : vector<8x16x384xbf16> to vector<128x384xbf16>
    %c2_33 = arith.constant 2 : index
    %c0_34 = arith.constant 0 : index
    %c0_35 = arith.constant 0 : index
    %73 = vector.load %arg6[%c2_33, %c0_34, %c0_35] : memref<3x384x128xbf16, #tpu.memory_space<vmem>>, vector<1x384x128xbf16>
    %74 = vector.shape_cast %73 : vector<1x384x128xbf16> to vector<384x128xbf16>
    %cst_36 = arith.constant dense<0.000000e+00> : vector<128x128xf32>
    %75 = tpu.matmul %72, %74, %cst_36 {dimension_numbers = #tpu.dot_dimension_numbers<[1], [0], [0], [1], [0, 0, 1, 1], [], []>} : vector<128x384xbf16>, vector<384x128xbf16>, vector<128x128xf32> -> vector<128x128xf32>
    %76 = arith.addf %70, %75 : vector<128x128xf32>
    %c0_37 = arith.constant 0 : index
    %c2_38 = arith.constant 2 : index
    %c0_39 = arith.constant 0 : index
    %c0_40 = arith.constant 0 : index
    %77 = vector.load %arg2[%c0_37, %c2_38, %c0_39, %c0_40] : memref<1x8x16x128xf32, #tpu.memory_space<vmem>>, vector<1x6x16x128xf32>
    %78 = vector.shape_cast %77 : vector<1x6x16x128xf32> to vector<6x16x128xf32>
    %c0_41 = arith.constant 0 : index
    %c0_42 = arith.constant 0 : index
    %c0_43 = arith.constant 0 : index
    %c0_44 = arith.constant 0 : index
    %79 = vector.load %arg3[%c0_41, %c0_42, %c0_43, %c0_44] : memref<1x4x16x128xf32, #tpu.memory_space<vmem>>, vector<1x2x16x128xf32>
    %80 = vector.shape_cast %79 : vector<1x2x16x128xf32> to vector<2x16x128xf32>
    %81 = tpu.concatenate %78, %80 in 0 : vector<6x16x128xf32>, vector<2x16x128xf32> -> vector<8x16x128xf32>
    %82 = vector.shape_cast %81 : vector<8x16x128xf32> to vector<128x128xf32>
    %83 = arith.addf %76, %82 : vector<128x128xf32>
    %84 = vector.shape_cast %83 : vector<128x128xf32> to vector<8x16x128xf32>
    %c0_45 = arith.constant 0 : index
    %c0_46 = arith.constant 0 : index
    %c0_47 = arith.constant 0 : index
    %c0_48 = arith.constant 0 : index
    %85 = vector.load %arg7[%c0_45, %c0_46, %c0_47, %c0_48] : memref<1x8x16x128xf32, #tpu.memory_space<vmem>>, vector<1x8x16x128xf32>
    %86 = vector.shape_cast %85 : vector<1x8x16x128xf32> to vector<8x16x128xf32>
    %87 = vector.shape_cast %84 : vector<8x16x128xf32> to vector<1x8x16x128xf32>
    tpu.vector_store %arg7[%c0_45, %c0_46, %c0_47, %c0_48], %87 {strides = array<i32>} : memref<1x8x16x128xf32, #tpu.memory_space<vmem>>, vector<1x8x16x128xf32>,
    return
  }
  func.func @transform_0(%arg0: i32, %arg1: i32) -> (i32, i32, i32, i32) {
    %c0_i32 = arith.constant 0 : i32
    %c0_i32_0 = arith.constant 0 : i32
    %c0_i32_1 = arith.constant 0 : i32
    return %arg0, %arg1, %c0_i32, %c0_i32_0 : i32, i32, i32, i32
  }
  func.func @transform_1(%arg0: i32, %arg1: i32) -> (i32, i32, i32, i32) {
    %c1_i32 = arith.constant 1 : i32
    %0 = arith.addi %arg1, %c1_i32 : i32
    %c2_i32 = arith.constant 2 : i32
    %1 = arith.muli %0, %c2_i32 : i32
    %c0_i32 = arith.constant 0 : i32
    %c0_i32_0 = arith.constant 0 : i32
    %c0_i32_1 = arith.constant 0 : i32
    return %arg0, %1, %c0_i32, %c0_i32_0 : i32, i32, i32, i32
  }
  func.func @transform_2(%arg0: i32, %arg1: i32) -> (i32, i32, i32) {
    %c0_i32 = arith.constant 0 : i32
    %c0_i32_0 = arith.constant 0 : i32
    %c0_i32_1 = arith.constant 0 : i32
    %c0_i32_2 = arith.constant 0 : i32
    return %c0_i32, %c0_i32_0, %c0_i32_1 : i32, i32, i32
  }
  func.func @transform_3(%arg0: i32, %arg1: i32) -> (i32, i32) {
    %c0_i32 = arith.constant 0 : i32
    %c0_i32_0 = arith.constant 0 : i32
    %c0_i32_1 = arith.constant 0 : i32
    return %c0_i32, %c0_i32_0 : i32, i32
  }
  func.func @transform_4(%arg0: i32, %arg1: i32) -> (i32, i32, i32) {
    %c0_i32 = arith.constant 0 : i32
    %c0_i32_0 = arith.constant 0 : i32
    %c0_i32_1 = arith.constant 0 : i32
    %c0_i32_2 = arith.constant 0 : i32
    return %c0_i32, %c0_i32_0, %c0_i32_1 : i32, i32, i32
  }
  func.func @transform_5(%arg0: i32, %arg1: i32) -> (i32, i32, i32, i32) {
    %c0_i32 = arith.constant 0 : i32
    %c0_i32_0 = arith.constant 0 : i32
    %c0_i32_1 = arith.constant 0 : i32
    return %arg0, %arg1, %c0_i32, %c0_i32_0 : i32, i32, i32, i32
  }
}

</mosaic_0001>

<llo_original>
// kernel: tpu_custom_call.1
$region0: #{tpu_custom_call.1}
  #allocation0 [shape = 'u32[]', space=smem, size = 0x4, offset = 0x4, fixed_abs, tag = 'smem constant byte address 0x4 - core index']
  #allocation1 [shape = 'u32[144,128]{1,0:T(1,128)}', space=vmem, size = 0x12000, scoped, tag = 'internal scratch']
  %s0 = inlined_call_operand.hbm [shape: f32[2,20,16,128], index: 0, kind: input, shape index: {}]
  %s1 = inlined_call_operand.hbm [shape: f32[2,20,16,128], index: 1, kind: input, shape index: {}]
  %s2 = inlined_call_operand.hbm [shape: bf16[3,384,128], index: 2, kind: input, shape index: {}]
  %s3 = inlined_call_operand.vmem [shape: f32[1,128], index: 3, kind: input, shape index: {}]
  %s4 = inlined_call_operand.hbm [shape: bf16[3,384,128], index: 4, kind: input, shape index: {}]
  %s5 = inlined_call_operand.hbm [shape: f32[2,16,16,128], index: 5, kind: output, shape index: {}]
  %s6 = sld [smem:[#allocation0]]
  $region69: #{tpu_custom_call.1} parent=0
    _
  %s8 = ssub.s32 1, %s6
  %s9 = scalar_select 0, %s8, %s6
  $region1: #{tpu_custom_call.1} parent=0
    #allocation2 [shape = 'u8[131072]{0}', space=vmem, size = 0x20000, scoped, tag = 'input window, operand 0']
    #allocation3 [shape = 's32[2]{0}', space=sflag, size = 0x8, scoped, tag = 'scoped memory for tpu_custom_call.1']
    #allocation4 [shape = 's32[2]{0}', space=sflag, size = 0x8, scoped, tag = 'scoped memory for tpu_custom_call.1']
    #allocation5 [shape = 'u8[65536]{0}', space=vmem, size = 0x10000, scoped, tag = 'input window, operand 1']
    #allocation6 [shape = 's32[2]{0}', space=sflag, size = 0x8, scoped, tag = 'scoped memory for tpu_custom_call.1']
    #allocation7 [shape = 'u8[294912]{0}', space=vmem, size = 0x48000, scoped, tag = 'input window, operand 2, single buffered']
    #allocation8 [shape = 'u8[294912]{0}', space=vmem, size = 0x48000, scoped, tag = 'input window, operand 4, single buffered']
    #allocation9 [shape = 's32[1]{0}', space=sflag, size = 0x4, scoped, tag = 'scoped memory for tpu_custom_call.1']
    #allocation10 [shape = 'u8[131072]{0}', space=vmem, size = 0x20000, scoped, tag = 'output window, operand 0']
    %10 = vsyncpa [#allocation3], 0
    %s11 = scalar_lea.sflag [#allocation3], 1
    %12 = vsyncpa %s11, 0
    %13 = vsyncpa [#allocation6], 0
    %s14 = scalar_lea.sflag [#allocation6], 1
    %15 = vsyncpa %s14, 0
    %16 = vsyncpa [#allocation9], 0
    %17 = vsyncpa [#allocation4], 0
    %s18 = scalar_lea.sflag [#allocation4], 1
    %19 = vsyncpa %s18, 0
    loop: start=0, step=1, limit=6
    $region2: #{tpu_custom_call.1} parent=1 // loop_pre_header
      _
    $region3: #{tpu_custom_call.1} parent=1 // loop_header
      %s21 = sphi 0, %s25
      %p22 = scmp.ge.s32.totalorder %s21, 6
      %s28 = sphi 0, %s40
      %s29 = sphi 0, %s36
      %s30 = sphi 0, %s28
      %s31 = sphi 0, %s29
      %s32 = sphi 0, %s30
      %s33 = sphi 0, %s31
      %s45 = sphi 0, %s47
      %s48 = sphi 0, %s45
      %s49 = sphi 0, %s48
      %s65 = sphi 0, %s49
      %s77 = sphi 0, %s79
      %s80 = sphi 0, %s77
      %s81 = sphi 0, %s80
      %s97 = sphi 0, %s81
      %s101 = sphi 0, %s101
      %s103 = sphi 0, %s101
      %s104 = sphi 0, %s103
      %s118 = sphi 0, %s104
      %s122 = sphi 0, %s122
      %s124 = sphi 0, %s122
      %s125 = sphi 0, %s124
      %s139 = sphi 0, %s125
      %s143 = sphi 0, %s143
      %s145 = sphi 0, %s143
      %s146 = sphi 0, %s145
      %s160 = sphi 0, %s146
      %s168 = sphi 0, %s170
      %s171 = sphi 0, %s168
      %s172 = sphi 0, %s171
      %s188 = sphi 0, %s172
    $region4: #{tpu_custom_call.1} parent=1 // loop_header_branch
      %24 = sbr.rel (%p22) target = $region8
    $region5: #{tpu_custom_call.1} parent=1 // loop_body
      %s26 = ssub.s32 %s21, 1
      %s27 = ssub.s32 %s21, 2
      %s34 = sadd.s32 1, %s29
      %p35 = scmp.ge.s32.totalorder %s34, 2
      %s36 = scalar_select %p35, 0, %s34
      %s37 = sadd.s32 1, %s28
      %s38 = scalar_select %p35, %s37, %s28
      %p39 = scmp.ge.s32.totalorder %s38, 2
      %s40 = scalar_select %p39, 0, %s38
      %s41 = ssub.s32 %s28, %s40
      %s42 = ssub.s32 %s29, %s36
      %s43 = sor.u32 %s41, %s42
      %p44 = scmp.eq.s32.totalorder %s43, 0
      %s46 = sadd.s32 %s45, 1
      %s47 = scalar_select %p44, %s45, %s46
      %p50 = pneg %p44
      %p51 = scmp.eq.s32.totalorder %s21, 3
      %p52 = por %p50, %p51
      %p53 = scmp.ne.s32.totalorder %s45, %s48
      %p54 = scmp.eq.s32.totalorder %s21, 0
      %p55 = por %p53, %p54
      %p56 = scmp.ne.s32.totalorder %s45, %s48
      %p57 = scmp.eq.s32.totalorder %s26, 3
      %p58 = por %p56, %p57
      %p59 = scmp.ne.s32.totalorder %s48, %s49
      %p60 = scmp.eq.s32.totalorder %s26, 0
      %p61 = por %p59, %p60
      %p62 = scmp.ne.s32.totalorder %s48, %s49
      %p63 = scmp.eq.s32.totalorder %s27, 3
      %p64 = por %p62, %p63
      %p66 = scmp.ne.s32.totalorder %s49, %s65
      %p67 = scmp.eq.s32.totalorder %s27, 0
      %p68 = por %p66, %p67
      %s69 = sadd.s32 %s29, 1
      %s70 = smul.u32 %s69, 2
      %s71 = sadd.s32 %s36, 1
      %s72 = smul.u32 %s71, 2
      %s73 = ssub.s32 %s28, %s40
      %s74 = ssub.s32 %s70, %s72
      %s75 = sor.u32 %s73, %s74
      %p76 = scmp.eq.s32.totalorder %s75, 0
      %s78 = sadd.s32 %s77, 1
      %s79 = scalar_select %p76, %s77, %s78
      %p82 = pneg %p76
      %p83 = scmp.eq.s32.totalorder %s21, 3
      %p84 = por %p82, %p83
      %p85 = scmp.ne.s32.totalorder %s77, %s80
      %p86 = scmp.eq.s32.totalorder %s21, 0
      %p87 = por %p85, %p86
      %p88 = scmp.ne.s32.totalorder %s77, %s80
      %p89 = scmp.eq.s32.totalorder %s26, 3
      %p90 = por %p88, %p89
      %p91 = scmp.ne.s32.totalorder %s80, %s81
      %p92 = scmp.eq.s32.totalorder %s26, 0
      %p93 = por %p91, %p92
      %p94 = scmp.ne.s32.totalorder %s80, %s81
      %p95 = scmp.eq.s32.totalorder %s27, 3
      %p96 = por %p94, %p95
      %p98 = scmp.ne.s32.totalorder %s81, %s97
      %p99 = scmp.eq.s32.totalorder %s27, 0
      %p100 = por %p98, %p99
      %s102 = sadd.s32 %s101, 1
      %p105 = scmp.eq.s32.totalorder %s21, 3
      %p106 = scmp.ne.s32.totalorder %s101, %s103
      %p107 = scmp.eq.s32.totalorder %s21, 0
      %p108 = por %p106, %p107
      %p109 = scmp.ne.s32.totalorder %s101, %s103
      %p110 = scmp.eq.s32.totalorder %s26, 3
      %p111 = por %p109, %p110
      %p112 = scmp.ne.s32.totalorder %s103, %s104
      %p113 = scmp.eq.s32.totalorder %s26, 0
      %p114 = por %p112, %p113
      %p115 = scmp.ne.s32.totalorder %s103, %s104
      %p116 = scmp.eq.s32.totalorder %s27, 3
      %p117 = por %p115, %p116
      %p119 = scmp.ne.s32.totalorder %s104, %s118
      %p120 = scmp.eq.s32.totalorder %s27, 0
      %p121 = por %p119, %p120
      %s123 = sadd.s32 %s122, 1
      %p126 = scmp.eq.s32.totalorder %s21, 3
      %p127 = scmp.ne.s32.totalorder %s122, %s124
      %p128 = scmp.eq.s32.totalorder %s21, 0
      %p129 = por %p127, %p128
      %p130 = scmp.ne.s32.totalorder %s122, %s124
      %p131 = scmp.eq.s32.totalorder %s26, 3
      %p132 = por %p130, %p131
      %p133 = scmp.ne.s32.totalorder %s124, %s125
      %p134 = scmp.eq.s32.totalorder %s26, 0
      %p135 = por %p133, %p134
      %p136 = scmp.ne.s32.totalorder %s124, %s125
      %p137 = scmp.eq.s32.totalorder %s27, 3
      %p138 = por %p136, %p137
      %p140 = scmp.ne.s32.totalorder %s125, %s139
      %p141 = scmp.eq.s32.totalorder %s27, 0
      %p142 = por %p140, %p141
      %s144 = sadd.s32 %s143, 1
      %p147 = scmp.eq.s32.totalorder %s21, 3
      %p148 = scmp.ne.s32.totalorder %s143, %s145
      %p149 = scmp.eq.s32.totalorder %s21, 0
      %p150 = por %p148, %p149
      %p151 = scmp.ne.s32.totalorder %s143, %s145
      %p152 = scmp.eq.s32.totalorder %s26, 3
      %p153 = por %p151, %p152
      %p154 = scmp.ne.s32.totalorder %s145, %s146
      %p155 = scmp.eq.s32.totalorder %s26, 0
      %p156 = por %p154, %p155
      %p157 = scmp.ne.s32.totalorder %s145, %s146
      %p158 = scmp.eq.s32.totalorder %s27, 3
      %p159 = por %p157, %p158
      %p161 = scmp.ne.s32.totalorder %s146, %s160
      %p162 = scmp.eq.s32.totalorder %s27, 0
      %p163 = por %p161, %p162
      %s164 = ssub.s32 %s28, %s40
      %s165 = ssub.s32 %s29, %s36
      %s166 = sor.u32 %s164, %s165
      %p167 = scmp.eq.s32.totalorder %s166, 0
      %s169 = sadd.s32 %s168, 1
      %s170 = scalar_select %p167, %s168, %s169
      %p173 = pneg %p167
      %p174 = scmp.eq.s32.totalorder %s21, 3
      %p175 = por %p173, %p174
      %p176 = scmp.ne.s32.totalorder %s168, %s171
      %p177 = scmp.eq.s32.totalorder %s21, 0
      %p178 = por %p176, %p177
      %p179 = scmp.ne.s32.totalorder %s168, %s171
      %p180 = scmp.eq.s32.totalorder %s26, 3
      %p181 = por %p179, %p180
      %p182 = scmp.ne.s32.totalorder %s171, %s172
      %p183 = scmp.eq.s32.totalorder %s26, 0
      %p184 = por %p182, %p183
      %p185 = scmp.ne.s32.totalorder %s171, %s172
      %p186 = scmp.eq.s32.totalorder %s27, 3
      %p187 = por %p185, %p186
      %p189 = scmp.ne.s32.totalorder %s172, %s188
      %p190 = scmp.eq.s32.totalorder %s27, 0
      %p191 = por %p189, %p190
      %p192 = scmp.le.s32.totalorder 1, %s21
      %p193 = scmp.lt.s32.totalorder %s21, 5
      %p194 = pnand %p192, %p193
      %p195 = pneg %p194
      // Predicated region
      $region9: #{tpu_custom_call.1} parent=5 // pred_check
        _
      $region10: #{tpu_custom_call.1} parent=5 // pred_check_branch
        %197 = sbr.rel (%p194) target = $region12
      $region11: #{tpu_custom_call.1} parent=5 // pred_region
        %s198 = ssub.s32 %s21, 1
        // Predicated region
        $region13: #{tpu_custom_call.1} parent=11 // pred_check
          %p199 = pneg %p114
        $region14: #{tpu_custom_call.1} parent=11 // pred_check_branch
          %201 = sbr.rel (%p199) target = $region16
        $region15: #{tpu_custom_call.1} parent=11 // pred_region
          %s203 = ssub.s32 9216, 9216
          %204 = vsyncadd [#allocation6], %s203
          %s205 = sshll.u32 [#allocation7], 4
          %s206 = int_to_ptr.vmem [resolvable:$true] %s205
          %211 = dma.hbm_to_vmem [thread:$0]  %s2, 9216, %s206, [#allocation6], 64, 64, 4
        $region16: #{tpu_custom_call.1} parent=11 // pred_fallthru
          _
        // Predicated region
        $region17: #{tpu_custom_call.1} parent=11 // pred_check
          %p212 = pneg %p135
        $region18: #{tpu_custom_call.1} parent=11 // pred_check_branch
          %214 = sbr.rel (%p212) target = $region20
        $region19: #{tpu_custom_call.1} parent=11 // pred_region
          _
        $region20: #{tpu_custom_call.1} parent=11 // pred_fallthru
          _
        // Predicated region
        $region21: #{tpu_custom_call.1} parent=11 // pred_check
          %p215 = pneg %p156
        $region22: #{tpu_custom_call.1} parent=11 // pred_check_branch
          %217 = sbr.rel (%p215) target = $region24
        $region23: #{tpu_custom_call.1} parent=11 // pred_region
          %s219 = ssub.s32 9216, 9216
          %220 = vsyncadd [#allocation9], %s219
          %s221 = sshll.u32 [#allocation8], 4
          %s222 = int_to_ptr.vmem [resolvable:$true] %s221
          %227 = dma.hbm_to_vmem [thread:$0]  %s4, 9216, %s222, [#allocation9], 64, 64, 4
        $region24: #{tpu_custom_call.1} parent=11 // pred_fallthru
          _
      $region12: #{tpu_custom_call.1} parent=5 // pred_fallthru
        _
      %p228 = scmp.lt.s32.totalorder %s21, 4
      // Predicated region
      $region25: #{tpu_custom_call.1} parent=5 // pred_check
        %p229 = pneg %p228
      $region26: #{tpu_custom_call.1} parent=5 // pred_check_branch
        %231 = sbr.rel (%p229) target = $region28
      $region27: #{tpu_custom_call.1} parent=5 // pred_region
        // Predicated region
        $region29: #{tpu_custom_call.1} parent=27 // pred_check
          %p232 = pneg %p55
        $region30: #{tpu_custom_call.1} parent=27 // pred_check_branch
          %234 = sbr.rel (%p232) target = $region32
        $region31: #{tpu_custom_call.1} parent=27 // pred_region
          %s235 = sand.u32 %s45, 1
          %s236 = scalar_lea.sflag [#allocation3], %s235
          %s237 = sand.u32 %s45, 1
          %s238 = smul.addr %s237, 128
          %s239 = scalar_lea.vmem [#allocation2], %s238
          %s240 = smul.u32 8, %s29
          %s241 = ssub.s32 20, %s240
          %p242 = scmp.lt.s32.totalorder %s241, 8
          %s243 = scalar_select %p242, %s241, 8
          %s244 = smul.u32 128, %s243
          %s245 = smul.u32 %s244, 2
          %s247 = ssub.s32 2048, %s245
          %248 = vsyncadd %s236, %s247
          %p249 = scmp.ne.s32.totalorder 0, %s245
          %s250 = smul.addr %s240, 2
          %s251 = smul.addr %s28, 40
          %s252 = sadd.s32 %s250, %s251
          %s253 = smul.addr %s252, 128
          %s254 = scalar_lea.hbm %s0, %s253
          %s255 = smul.u32 %s243, 2
          %s256 = smul.u32 8, %s255
          %s257 = sshll.u32 %s239, 4
          %s258 = int_to_ptr.vmem [resolvable:$true] %s257
          %s259 = sshll.u32 %s256, 4
          %263 = dma.hbm_to_vmem [thread:$0]  (%p249), %s254, %s259, %s258, %s236, 128, 128, 8
        $region32: #{tpu_custom_call.1} parent=27 // pred_fallthru
          _
        // Predicated region
        $region33: #{tpu_custom_call.1} parent=27 // pred_check
          %p264 = pneg %p87
        $region34: #{tpu_custom_call.1} parent=27 // pred_check_branch
          %266 = sbr.rel (%p264) target = $region36
        $region35: #{tpu_custom_call.1} parent=27 // pred_region
          %s267 = sand.u32 %s21, 1
          %s268 = scalar_lea.sflag [#allocation6], %s267
          %s269 = sand.u32 %s77, 1
          %s270 = smul.addr %s269, 64
          %s271 = scalar_lea.vmem [#allocation5], %s270
          %s272 = sadd.s32 %s29, 1
          %s273 = smul.u32 %s272, 2
          %s274 = smul.u32 4, %s273
          %s276 = ssub.s32 1024, 1024
          %277 = vsyncadd %s268, %s276
          %s278 = smul.addr %s274, 2
          %s279 = smul.addr %s28, 40
          %s280 = sadd.s32 %s278, %s279
          %s281 = smul.addr %s280, 128
          %s282 = scalar_lea.hbm %s1, %s281
          %s283 = sshll.u32 %s271, 4
          %s284 = int_to_ptr.vmem [resolvable:$true] %s283
          %289 = dma.hbm_to_vmem [thread:$0]  %s282, 1024, %s284, %s268, 128, 128, 8
        $region36: #{tpu_custom_call.1} parent=27 // pred_fallthru
          _
      $region28: #{tpu_custom_call.1} parent=5 // pred_fallthru
        _
      %p290 = scmp.le.s32.totalorder 1, %s21
      %p291 = scmp.lt.s32.totalorder %s21, 5
      %p292 = pnand %p290, %p291
      %p293 = pneg %p292
      // Predicated region
      $region37: #{tpu_custom_call.1} parent=5 // pred_check
        _
      $region38: #{tpu_custom_call.1} parent=5 // pred_check_branch
        %295 = sbr.rel (%p292) target = $region40
      $region39: #{tpu_custom_call.1} parent=5 // pred_region
        %s296 = ssub.s32 %s21, 1
        %s297 = sand.u32 %s48, 1
        %s298 = scalar_lea.sflag [#allocation3], %s297
        %s299 = sand.u32 %s48, 1
        %s300 = smul.addr %s299, 128
        %s301 = scalar_lea.vmem [#allocation2], %s300
        // Predicated region
        $region41: #{tpu_custom_call.1} parent=39 // pred_check
          %p302 = pneg %p61
        $region42: #{tpu_custom_call.1} parent=39 // pred_check_branch
          %304 = sbr.rel (%p302) target = $region44
        $region43: #{tpu_custom_call.1} parent=39 // pred_region
          %305 = dma.done %s298, 2048
        $region44: #{tpu_custom_call.1} parent=39 // pred_fallthru
          _
        %s306 = sand.u32 %s26, 1
        %s307 = scalar_lea.sflag [#allocation6], %s306
        %s308 = sand.u32 %s80, 1
        %s309 = smul.addr %s308, 64
        %s310 = scalar_lea.vmem [#allocation5], %s309
        // Predicated region
        $region45: #{tpu_custom_call.1} parent=39 // pred_check
          %p311 = pneg %p93
        $region46: #{tpu_custom_call.1} parent=39 // pred_check_branch
          %313 = sbr.rel (%p311) target = $region48
        $region47: #{tpu_custom_call.1} parent=39 // pred_region
          %314 = dma.done %s307, 1024
        $region48: #{tpu_custom_call.1} parent=39 // pred_fallthru
          _
        // Predicated region
        $region49: #{tpu_custom_call.1} parent=39 // pred_check
          %p315 = pneg %p114
        $region50: #{tpu_custom_call.1} parent=39 // pred_check_branch
          %317 = sbr.rel (%p315) target = $region52
        $region51: #{tpu_custom_call.1} parent=39 // pred_region
          %318 = dma.done [#allocation6], 9216
        $region52: #{tpu_custom_call.1} parent=39 // pred_fallthru
          _
        // Predicated region
        $region53: #{tpu_custom_call.1} parent=39 // pred_check
          %p319 = pneg %p156
        $region54: #{tpu_custom_call.1} parent=39 // pred_check_branch
          %321 = sbr.rel (%p319) target = $region56
        $region55: #{tpu_custom_call.1} parent=39 // pred_region
          %322 = dma.done [#allocation9], 9216
        $region56: #{tpu_custom_call.1} parent=39 // pred_fallthru
          _
        %s323 = sand.u32 %s48, 1
        %s324 = scalar_lea.sflag [#allocation3], %s323
        %s325 = sand.u32 %s48, 1
        %s326 = smul.addr %s325, 128
        %s327 = scalar_lea.vmem [#allocation2], %s326
        %p328 = pneg %p61
        %p329 = pneg %p58
        %s330 = sand.u32 %s26, 1
        %s331 = scalar_lea.sflag [#allocation6], %s330
        %s332 = sand.u32 %s80, 1
        %s333 = smul.addr %s332, 64
        %s334 = scalar_lea.vmem [#allocation5], %s333
        %p335 = pneg %p93
        %p336 = pneg %p90
        %p337 = pneg %p114
        %p338 = pneg %p111
        %p339 = pneg %p135
        %p340 = pneg %p132
        %p341 = pneg %p156
        %p342 = pneg %p153
        %p343 = pneg %p184
        %p344 = pneg %p181
        %s345 = sand.u32 %s171, 1
        %s346 = scalar_lea.sflag [#allocation4], %s345
        %s347 = sand.u32 %s171, 1
        %s348 = smul.addr %s347, 128
        %s349 = scalar_lea.vmem [#allocation10], %s348
        %s350 = smul.u32 8, %s31
        %s351 = ssub.s32 20, %s350
        %p352 = scmp.lt.s32.totalorder %s351, 8
        %s353 = scalar_select %p352, %s351, 8
        %s354 = smul.u32 128, %s353
        %s355 = smul.u32 %s354, 2
        %s356 = sadd.s32 %s31, 1
        %s357 = smul.u32 %s356, 2
        %s358 = smul.u32 4, %s357
        %s359 = smul.u32 8, %s31
        %v361 = vld [vmem:[%s301] sm:$0xff]
        %v362 = vld [vmem:[%s301 + $0x8] sm:$0xff]
        %v363 = vld [vmem:[%s301 + $0x10] sm:$0xff]
        %v364 = vld [vmem:[%s301 + $0x18] sm:$0xff]
        %v365 = vld [vmem:[%s301 + $0x20] sm:$0xff]
        %v366 = vld [vmem:[%s301 + $0x28] sm:$0xff]
        %v367 = vld [vmem:[%s301 + $0x30] sm:$0xff]
        %v368 = vld [vmem:[%s301 + $0x38] sm:$0xff]
        %v369 = vld [vmem:[%s301 + $0x40] sm:$0xff]
        %v370 = vld [vmem:[%s301 + $0x48] sm:$0xff]
        %v371 = vld [vmem:[%s301 + $0x50] sm:$0xff]
        %v372 = vld [vmem:[%s301 + $0x58] sm:$0xff]
        %v373 = vld [vmem:[%s301 + $0x60] sm:$0xff]
        %v374 = vld [vmem:[%s301 + $0x68] sm:$0xff]
        %v375 = vld [vmem:[%s301 + $0x70] sm:$0xff]
        %v376 = vld [vmem:[%s301 + $0x78] sm:$0xff]
        %v377 = vld [vmem:[%s310] sm:$0xff]
        %v378 = vld [vmem:[%s310 + $0x8] sm:$0xff]
        %v379 = vld [vmem:[%s310 + $0x10] sm:$0xff]
        %v380 = vld [vmem:[%s310 + $0x18] sm:$0xff]
        %v381 = vld [vmem:[%s310 + $0x20] sm:$0xff]
        %v382 = vld [vmem:[%s310 + $0x28] sm:$0xff]
        %v383 = vld [vmem:[%s310 + $0x30] sm:$0xff]
        %v384 = vld [vmem:[%s310 + $0x38] sm:$0xff]
        %v385 = vmax.f32 %v361, 0.0
        %v386 = vmax.f32 %v362, 0.0
        %v387 = vmax.f32 %v363, 0.0
        %v388 = vmax.f32 %v364, 0.0
        %v389 = vmax.f32 %v365, 0.0
        %v390 = vmax.f32 %v366, 0.0
        %v391 = vmax.f32 %v367, 0.0
        %v392 = vmax.f32 %v368, 0.0
        %v393 = vmax.f32 %v369, 0.0
        %v394 = vmax.f32 %v370, 0.0
        %v395 = vmax.f32 %v371, 0.0
        %v396 = vmax.f32 %v372, 0.0
        %v397 = vmax.f32 %v373, 0.0
        %v398 = vmax.f32 %v374, 0.0
        %v399 = vmax.f32 %v375, 0.0
        %v400 = vmax.f32 %v376, 0.0
        %v401 = vmax.f32 %v377, 0.0
        %v402 = vmax.f32 %v378, 0.0
        %v403 = vmax.f32 %v379, 0.0
        %v404 = vmax.f32 %v380, 0.0
        %v405 = vmax.f32 %v381, 0.0
        %v406 = vmax.f32 %v382, 0.0
        %v407 = vmax.f32 %v383, 0.0
        %v408 = vmax.f32 %v384, 0.0
        %v409 = vpack.c.bf16 %v386, %v385
        %v410 = vpack.c.bf16 %v388, %v387
        %v411 = vpack.c.bf16 %v390, %v389
        %v412 = vpack.c.bf16 %v392, %v391
        %v413 = vpack.c.bf16 %v394, %v393
        %v414 = vpack.c.bf16 %v396, %v395
        %v415 = vpack.c.bf16 %v398, %v397
        %v416 = vpack.c.bf16 %v400, %v399
        %v417 = vpack.c.bf16 %v402, %v401
        %v418 = vpack.c.bf16 %v404, %v403
        %v419 = vpack.c.bf16 %v406, %v405
        %v420 = vpack.c.bf16 %v408, %v407
        %v422 = vshrl.u32 %v409, 16
        %v424 = vrot.slane %v422, 7
        %v425 = vshll.u32 %v409, 16
        %v427 = vor.u32 %v424, %v425
        %v429 = vshrl.u32 %v410, 16
        %v431 = vrot.slane %v429, 7
        %v432 = vshll.u32 %v410, 16
        %v434 = vor.u32 %v431, %v432
        %v436 = vshrl.u32 %v411, 16
        %v438 = vrot.slane %v436, 7
        %v439 = vshll.u32 %v411, 16
        %v441 = vor.u32 %v438, %v439
        %v443 = vshrl.u32 %v412, 16
        %v445 = vrot.slane %v443, 7
        %v446 = vshll.u32 %v412, 16
        %v448 = vor.u32 %v445, %v446
        %v450 = vshrl.u32 %v413, 16
        %v452 = vrot.slane %v450, 7
        %v453 = vshll.u32 %v413, 16
        %v455 = vor.u32 %v452, %v453
        %v457 = vshrl.u32 %v414, 16
        %v459 = vrot.slane %v457, 7
        %v460 = vshll.u32 %v414, 16
        %v462 = vor.u32 %v459, %v460
        %v464 = vshrl.u32 %v415, 16
        %v466 = vrot.slane %v464, 7
        %v467 = vshll.u32 %v415, 16
        %v469 = vor.u32 %v466, %v467
        %v471 = vshrl.u32 %v416, 16
        %v473 = vrot.slane %v471, 7
        %v474 = vshll.u32 %v416, 16
        %v476 = vor.u32 %v473, %v474
        %v478 = vshrl.u32 %v417, 16
        %v480 = vrot.slane %v478, 7
        %v481 = vshll.u32 %v417, 16
        %v483 = vor.u32 %v480, %v481
        %v485 = vshrl.u32 %v418, 16
        %v487 = vrot.slane %v485, 7
        %v488 = vshll.u32 %v418, 16
        %v490 = vor.u32 %v487, %v488
        %v492 = vshrl.u32 %v419, 16
        %v494 = vrot.slane %v492, 7
        %v495 = vshll.u32 %v419, 16
        %v497 = vor.u32 %v494, %v495
        %v499 = vshrl.u32 %v420, 16
        %v501 = vrot.slane %v499, 7
        %v502 = vshll.u32 %v420, 16
        %v504 = vor.u32 %v501, %v502
        %vm529 = vcmask 1040384
        %vm530 = vsmask.f32 256
        %vm531 = vmand %vm529, %vm530
        %v532 = vsel %vm531, 0, %v427
        %v533 = vsel %vm531, 0, %v434
        %v534 = vsel %vm531, 0, %v441
        %v535 = vsel %vm531, 0, %v448
        %v536 = vsel %vm531, 0, %v455
        %v537 = vsel %vm531, 0, %v462
        %v538 = vsel %vm531, 0, %v469
        %v539 = vsel %vm531, 0, %v476
        %v540 = vsel %vm531, 0, %v483
        %v541 = vsel %vm531, 0, %v490
        %v542 = vsel %vm531, 0, %v497
        %v543 = vsel %vm531, 0, %v504
        %v544 = vsel %vm531, %v424, 0
        %v545 = vsel %vm531, %v431, 0
        %v546 = vsel %vm531, %v438, 0
        %v547 = vsel %vm531, %v445, 0
        %v548 = vsel %vm531, %v452, 0
        %v549 = vsel %vm531, %v459, 0
        %v550 = vsel %vm531, %v466, 0
        %v551 = vsel %vm531, %v473, 0
        %v552 = vsel %vm531, %v480, 0
        %v553 = vsel %vm531, %v487, 0
        %v554 = vsel %vm531, %v494, 0
        %v555 = vsel %vm531, %v501, 0
        %vm556 = vsmask.f32 7424
        %v558 = vshrl.u32 %v532, 16
        %v560 = vshll.u32 %v532, 16
        %v562 = vrot.slane %v560, 1
        %v563 = vor.u32 %v558, %v562
        %v565 = vshll.u32 %v544, 16
        %v567 = vrot.slane %v565, 1
        %v568 = vsel %vm556, %v563, %v567
        %v570 = vshrl.u32 %v533, 16
        %v572 = vshll.u32 %v533, 16
        %v574 = vrot.slane %v572, 1
        %v575 = vor.u32 %v570, %v574
        %v577 = vshll.u32 %v545, 16
        %v579 = vrot.slane %v577, 1
        %v580 = vsel %vm556, %v575, %v579
        %v582 = vshrl.u32 %v534, 16
        %v584 = vshll.u32 %v534, 16
        %v586 = vrot.slane %v584, 1
        %v587 = vor.u32 %v582, %v586
        %v589 = vshll.u32 %v546, 16
        %v591 = vrot.slane %v589, 1
        %v592 = vsel %vm556, %v587, %v591
        %v594 = vshrl.u32 %v535, 16
        %v596 = vshll.u32 %v535, 16
        %v598 = vrot.slane %v596, 1
        %v599 = vor.u32 %v594, %v598
        %v601 = vshll.u32 %v547, 16
        %v603 = vrot.slane %v601, 1
        %v604 = vsel %vm556, %v599, %v603
        %v606 = vshrl.u32 %v536, 16
        %v608 = vshll.u32 %v536, 16
        %v610 = vrot.slane %v608, 1
        %v611 = vor.u32 %v606, %v610
        %v613 = vshll.u32 %v548, 16
        %v615 = vrot.slane %v613, 1
        %v616 = vsel %vm556, %v611, %v615
        %v618 = vshrl.u32 %v537, 16
        %v620 = vshll.u32 %v537, 16
        %v622 = vrot.slane %v620, 1
        %v623 = vor.u32 %v618, %v622
        %v625 = vshll.u32 %v549, 16
        %v627 = vrot.slane %v625, 1
        %v628 = vsel %vm556, %v623, %v627
        %v630 = vshrl.u32 %v538, 16
        %v632 = vshll.u32 %v538, 16
        %v634 = vrot.slane %v632, 1
        %v635 = vor.u32 %v630, %v634
        %v637 = vshll.u32 %v550, 16
        %v639 = vrot.slane %v637, 1
        %v640 = vsel %vm556, %v635, %v639
        %v642 = vshrl.u32 %v539, 16
        %v644 = vshll.u32 %v539, 16
        %v646 = vrot.slane %v644, 1
        %v647 = vor.u32 %v642, %v646
        %v649 = vshll.u32 %v551, 16
        %v651 = vrot.slane %v649, 1
        %v652 = vsel %vm556, %v647, %v651
        %v654 = vshrl.u32 %v540, 16
        %v656 = vshll.u32 %v540, 16
        %v658 = vrot.slane %v656, 1
        %v659 = vor.u32 %v654, %v658
        %v661 = vshll.u32 %v552, 16
        %v663 = vrot.slane %v661, 1
        %v664 = vsel %vm556, %v659, %v663
        %v666 = vshrl.u32 %v541, 16
        %v668 = vshll.u32 %v541, 16
        %v670 = vrot.slane %v668, 1
        %v671 = vor.u32 %v666, %v670
        %v673 = vshll.u32 %v553, 16
        %v675 = vrot.slane %v673, 1
        %v676 = vsel %vm556, %v671, %v675
        %v678 = vshrl.u32 %v542, 16
        %v680 = vshll.u32 %v542, 16
        %v682 = vrot.slane %v680, 1
        %v683 = vor.u32 %v678, %v682
        %v685 = vshll.u32 %v554, 16
        %v687 = vrot.slane %v685, 1
        %v688 = vsel %vm556, %v683, %v687
        %v690 = vshrl.u32 %v543, 16
        %v692 = vshll.u32 %v543, 16
        %v694 = vrot.slane %v692, 1
        %v695 = vor.u32 %v690, %v694
        %v697 = vshll.u32 %v555, 16
        %v699 = vrot.slane %v697, 1
        %v700 = vsel %vm556, %v695, %v699
        %vm737 = vcmask 1046528
        %v738 = vrot.slane %v532, 1
        %v739 = vrot.slane %v544, 1
        %v740 = vsel %vm737, %v738, %v739
        %v741 = vrot.slane %v533, 1
        %v742 = vrot.slane %v545, 1
        %v743 = vsel %vm737, %v741, %v742
        %v744 = vrot.slane %v534, 1
        %v745 = vrot.slane %v546, 1
        %v746 = vsel %vm737, %v744, %v745
        %v747 = vrot.slane %v535, 1
        %v748 = vrot.slane %v547, 1
        %v749 = vsel %vm737, %v747, %v748
        %v750 = vrot.slane %v536, 1
        %v751 = vrot.slane %v548, 1
        %v752 = vsel %vm737, %v750, %v751
        %v753 = vrot.slane %v537, 1
        %v754 = vrot.slane %v549, 1
        %v755 = vsel %vm737, %v753, %v754
        %v756 = vrot.slane %v538, 1
        %v757 = vrot.slane %v550, 1
        %v758 = vsel %vm737, %v756, %v757
        %v759 = vrot.slane %v539, 1
        %v760 = vrot.slane %v551, 1
        %v761 = vsel %vm737, %v759, %v760
        %v762 = vrot.slane %v540, 1
        %v763 = vrot.slane %v552, 1
        %v764 = vsel %vm737, %v762, %v763
        %v765 = vrot.slane %v541, 1
        %v766 = vrot.slane %v553, 1
        %v767 = vsel %vm737, %v765, %v766
        %v768 = vrot.slane %v542, 1
        %v769 = vrot.slane %v554, 1
        %v770 = vsel %vm737, %v768, %v769
        %v771 = vrot.slane %v543, 1
        %v772 = vrot.slane %v555, 1
        %v773 = vsel %vm737, %v771, %v772
        %v786 = vld [vmem:[#allocation7] sm:$0xf]
        %v787 = vld [vmem:[#allocation7 + $0x4] sm:$0xf]
        %v788 = vld [vmem:[#allocation7 + $0x8] sm:$0xf]
        %v789 = vld [vmem:[#allocation7 + $0xc] sm:$0xf]
        %v790 = vld [vmem:[#allocation7 + $0x10] sm:$0xf]
        %v791 = vld [vmem:[#allocation7 + $0x14] sm:$0xf]
        %v792 = vld [vmem:[#allocation7 + $0x18] sm:$0xf]
        %v793 = vld [vmem:[#allocation7 + $0x1c] sm:$0xf]
        %v794 = vld [vmem:[#allocation7 + $0x20] sm:$0xf]
        %v795 = vld [vmem:[#allocation7 + $0x24] sm:$0xf]
        %v796 = vld [vmem:[#allocation7 + $0x28] sm:$0xf]
        %v797 = vld [vmem:[#allocation7 + $0x2c] sm:$0xf]
        %v798 = vld [vmem:[#allocation7 + $0x30] sm:$0xf]
        %v799 = vld [vmem:[#allocation7 + $0x34] sm:$0xf]
        %v800 = vld [vmem:[#allocation7 + $0x38] sm:$0xf]
        %v801 = vld [vmem:[#allocation7 + $0x3c] sm:$0xf]
        %v802 = vld [vmem:[#allocation7 + $0x40] sm:$0xf]
        %v803 = vld [vmem:[#allocation7 + $0x44] sm:$0xf]
        %v804 = vld [vmem:[#allocation7 + $0x48] sm:$0xf]
        %v805 = vld [vmem:[#allocation7 + $0x4c] sm:$0xf]
        %v806 = vld [vmem:[#allocation7 + $0x50] sm:$0xf]
        %v807 = vld [vmem:[#allocation7 + $0x54] sm:$0xf]
        %v808 = vld [vmem:[#allocation7 + $0x58] sm:$0xf]
        %v809 = vld [vmem:[#allocation7 + $0x5c] sm:$0xf]
        %v810 = vld [vmem:[#allocation7 + $0x60] sm:$0xf]
        %v811 = vld [vmem:[#allocation7 + $0x64] sm:$0xf]
        %v812 = vld [vmem:[#allocation7 + $0x68] sm:$0xf]
        %v813 = vld [vmem:[#allocation7 + $0x6c] sm:$0xf]
        %v814 = vld [vmem:[#allocation7 + $0x70] sm:$0xf]
        %v815 = vld [vmem:[#allocation7 + $0x74] sm:$0xf]
        %v816 = vld [vmem:[#allocation7 + $0x78] sm:$0xf]
        %v817 = vld [vmem:[#allocation7 + $0x7c] sm:$0xf]
        %v818 = vld [vmem:[#allocation7 + $0x80] sm:$0xf]
        %v819 = vld [vmem:[#allocation7 + $0x84] sm:$0xf]
        %v820 = vld [vmem:[#allocation7 + $0x88] sm:$0xf]
        %v821 = vld [vmem:[#allocation7 + $0x8c] sm:$0xf]
        %v822 = vld [vmem:[#allocation7 + $0x90] sm:$0xf]
        %v823 = vld [vmem:[#allocation7 + $0x94] sm:$0xf]
        %v824 = vld [vmem:[#allocation7 + $0x98] sm:$0xf]
        %v825 = vld [vmem:[#allocation7 + $0x9c] sm:$0xf]
        %v826 = vld [vmem:[#allocation7 + $0xa0] sm:$0xf]
        %v827 = vld [vmem:[#allocation7 + $0xa4] sm:$0xf]
        %v828 = vld [vmem:[#allocation7 + $0xa8] sm:$0xf]
        %v829 = vld [vmem:[#allocation7 + $0xac] sm:$0xf]
        %v830 = vld [vmem:[#allocation7 + $0xb0] sm:$0xf]
        %v831 = vld [vmem:[#allocation7 + $0xb4] sm:$0xf]
        %v832 = vld [vmem:[#allocation7 + $0xb8] sm:$0xf]
        %v833 = vld [vmem:[#allocation7 + $0xbc] sm:$0xf]
        %s834 = scalar_lea.vmem [#allocation7], 192
        %v835 = vld [vmem:[%s834] sm:$0xf]
        %v836 = vld [vmem:[%s834 + $0x4] sm:$0xf]
        %v837 = vld [vmem:[%s834 + $0x8] sm:$0xf]
        %v838 = vld [vmem:[%s834 + $0xc] sm:$0xf]
        %v839 = vld [vmem:[%s834 + $0x10] sm:$0xf]
        %v840 = vld [vmem:[%s834 + $0x14] sm:$0xf]
        %v841 = vld [vmem:[%s834 + $0x18] sm:$0xf]
        %v842 = vld [vmem:[%s834 + $0x1c] sm:$0xf]
        %v843 = vld [vmem:[%s834 + $0x20] sm:$0xf]
        %v844 = vld [vmem:[%s834 + $0x24] sm:$0xf]
        %v845 = vld [vmem:[%s834 + $0x28] sm:$0xf]
        %v846 = vld [vmem:[%s834 + $0x2c] sm:$0xf]
        %v847 = vld [vmem:[%s834 + $0x30] sm:$0xf]
        %v848 = vld [vmem:[%s834 + $0x34] sm:$0xf]
        %v849 = vld [vmem:[%s834 + $0x38] sm:$0xf]
        %v850 = vld [vmem:[%s834 + $0x3c] sm:$0xf]
        %v851 = vld [vmem:[%s834 + $0x40] sm:$0xf]
        %v852 = vld [vmem:[%s834 + $0x44] sm:$0xf]
        %v853 = vld [vmem:[%s834 + $0x48] sm:$0xf]
        %v854 = vld [vmem:[%s834 + $0x4c] sm:$0xf]
        %v855 = vld [vmem:[%s834 + $0x50] sm:$0xf]
        %v856 = vld [vmem:[%s834 + $0x54] sm:$0xf]
        %v857 = vld [vmem:[%s834 + $0x58] sm:$0xf]
        %v858 = vld [vmem:[%s834 + $0x5c] sm:$0xf]
        %v859 = vld [vmem:[%s834 + $0x60] sm:$0xf]
        %v860 = vld [vmem:[%s834 + $0x64] sm:$0xf]
        %v861 = vld [vmem:[%s834 + $0x68] sm:$0xf]
        %v862 = vld [vmem:[%s834 + $0x6c] sm:$0xf]
        %v863 = vld [vmem:[%s834 + $0x70] sm:$0xf]
        %v864 = vld [vmem:[%s834 + $0x74] sm:$0xf]
        %v865 = vld [vmem:[%s834 + $0x78] sm:$0xf]
        %v866 = vld [vmem:[%s834 + $0x7c] sm:$0xf]
        %v867 = vld [vmem:[%s834 + $0x80] sm:$0xf]
        %v868 = vld [vmem:[%s834 + $0x84] sm:$0xf]
        %v869 = vld [vmem:[%s834 + $0x88] sm:$0xf]
        %v870 = vld [vmem:[%s834 + $0x8c] sm:$0xf]
        %v871 = vld [vmem:[%s834 + $0x90] sm:$0xf]
        %v872 = vld [vmem:[%s834 + $0x94] sm:$0xf]
        %v873 = vld [vmem:[%s834 + $0x98] sm:$0xf]
        %v874 = vld [vmem:[%s834 + $0x9c] sm:$0xf]
        %v875 = vld [vmem:[%s834 + $0xa0] sm:$0xf]
        %v876 = vld [vmem:[%s834 + $0xa4] sm:$0xf]
        %v877 = vld [vmem:[%s834 + $0xa8] sm:$0xf]
        %v878 = vld [vmem:[%s834 + $0xac] sm:$0xf]
        %v879 = vld [vmem:[%s834 + $0xb0] sm:$0xf]
        %v880 = vld [vmem:[%s834 + $0xb4] sm:$0xf]
        %v881 = vld [vmem:[%s834 + $0xb8] sm:$0xf]
        %v882 = vld [vmem:[%s834 + $0xbc] sm:$0xf]
        %v931 = vunpack.c.l.b16 %v835
        %v932 = vunpack.c.l.b16 %v836
        %v933 = vunpack.c.l.b16 %v837
        %v934 = vunpack.c.l.b16 %v838
        %v935 = vunpack.c.l.b16 %v839
        %v936 = vunpack.c.l.b16 %v840
        %v937 = vunpack.c.l.b16 %v841
        %v938 = vunpack.c.l.b16 %v842
        %v939 = vunpack.c.l.b16 %v843
        %v940 = vunpack.c.l.b16 %v844
        %v941 = vunpack.c.l.b16 %v845
        %v942 = vunpack.c.l.b16 %v846
        %v943 = vunpack.c.l.b16 %v847
        %v944 = vunpack.c.l.b16 %v848
        %v945 = vunpack.c.l.b16 %v849
        %v946 = vunpack.c.l.b16 %v850
        %v947 = vunpack.c.l.b16 %v851
        %v948 = vunpack.c.l.b16 %v852
        %v949 = vunpack.c.l.b16 %v853
        %v950 = vunpack.c.l.b16 %v854
        %v951 = vunpack.c.l.b16 %v855
        %v952 = vunpack.c.l.b16 %v856
        %v953 = vunpack.c.l.b16 %v857
        %v954 = vunpack.c.l.b16 %v858
        %v955 = vunpack.c.l.b16 %v859
        %v956 = vunpack.c.l.b16 %v860
        %v957 = vunpack.c.l.b16 %v861
        %v958 = vunpack.c.l.b16 %v862
        %v959 = vunpack.c.l.b16 %v863
        %v960 = vunpack.c.l.b16 %v864
        %v961 = vunpack.c.l.b16 %v865
        %v962 = vunpack.c.l.b16 %v866
        %v963 = vunpack.c.l.b16 %v867
        %v964 = vunpack.c.l.b16 %v868
        %v965 = vunpack.c.l.b16 %v869
        %v966 = vunpack.c.l.b16 %v870
        %v967 = vunpack.c.l.b16 %v871
        %v968 = vunpack.c.l.b16 %v872
        %v969 = vunpack.c.l.b16 %v873
        %v970 = vunpack.c.l.b16 %v874
        %v971 = vunpack.c.l.b16 %v875
        %v972 = vunpack.c.l.b16 %v876
        %v973 = vunpack.c.l.b16 %v877
        %v974 = vunpack.c.l.b16 %v878
        %v975 = vunpack.c.l.b16 %v879
        %v976 = vunpack.c.l.b16 %v880
        %v977 = vunpack.c.l.b16 %v881
        %v978 = vunpack.c.l.b16 %v882
        %v979 = vpack.c.b16 %v932, %v931
        %v980 = vpack.c.b16 %v934, %v933
        %v981 = vpack.c.b16 %v936, %v935
        %v982 = vpack.c.b16 %v938, %v937
        %v983 = vpack.c.b16 %v940, %v939
        %v984 = vpack.c.b16 %v942, %v941
        %v985 = vpack.c.b16 %v944, %v943
        %v986 = vpack.c.b16 %v946, %v945
        %v987 = vpack.c.b16 %v948, %v947
        %v988 = vpack.c.b16 %v950, %v949
        %v989 = vpack.c.b16 %v952, %v951
        %v990 = vpack.c.b16 %v954, %v953
        %v991 = vpack.c.b16 %v956, %v955
        %v992 = vpack.c.b16 %v958, %v957
        %v993 = vpack.c.b16 %v960, %v959
        %v994 = vpack.c.b16 %v962, %v961
        %v995 = vpack.c.b16 %v964, %v963
        %v996 = vpack.c.b16 %v966, %v965
        %v997 = vpack.c.b16 %v968, %v967
        %v998 = vpack.c.b16 %v970, %v969
        %v999 = vpack.c.b16 %v972, %v971
        %v1000 = vpack.c.b16 %v974, %v973
        %v1001 = vpack.c.b16 %v976, %v975
        %v1002 = vpack.c.b16 %v978, %v977
        %1027 = vmatprep.subr.bf16.mxu0 0
        %1028 = vmatpush1.bf16.msra.mxu0 %v979
        %1029 = vmatprep.subr.bf16.mxu0 0
        %1030 = vmatpush1.bf16.msra.mxu0 %v980
        %1031 = vmatprep.subr.bf16.mxu0 0
        %1032 = vmatpush1.bf16.msra.mxu0 %v981
        %1033 = vmatprep.subr.bf16.mxu0 0
        %1034 = vmatpush1.bf16.msra.mxu0 %v982
        %1035 = vmatprep.subr.bf16.mxu0 0
        %1036 = vmatpush1.bf16.msra.mxu0 %v983
        %1037 = vmatprep.subr.bf16.mxu0 0
        %1038 = vmatpush1.bf16.msra.mxu0 %v984
        %1039 = vmatprep.subr.bf16.mxu0 0
        %1040 = vmatpush1.bf16.msra.mxu0 %v985
        %1041 = vmatprep.subr.bf16.mxu0 0
        %1042 = vmatpush1.bf16.msra.mxu0 %v986
        %1043 = vmatprep.subr.bf16.mxu0 0
        %1044 = vmatpush1.bf16.msra.mxu0 %v987
        %1045 = vmatprep.subr.bf16.mxu0 0
        %1046 = vmatpush1.bf16.msra.mxu0 %v988
        %1047 = vmatprep.subr.bf16.mxu0 0
        %1048 = vmatpush1.bf16.msra.mxu0 %v989
        %1049 = vmatprep.subr.bf16.mxu0 0
        %1050 = vmatpush1.bf16.msra.mxu0 %v990
        %1051 = vmatprep.subr.bf16.mxu0 0
        %1052 = vmatpush1.bf16.msra.mxu0 %v991
        %1053 = vmatprep.subr.bf16.mxu0 0
        %1054 = vmatpush1.bf16.msra.mxu0 %v992
        %1055 = vmatprep.subr.bf16.mxu0 0
        %1056 = vmatpush1.bf16.msra.mxu0 %v993
        %1057 = vmatprep.subr.bf16.mxu0 0
        %1058 = vmatpush1.bf16.msra.mxu0 %v994
        %1059 = vmatprep.mubr.bf16.mxu0 %v580
        %1060 = vmatmul.mubr.bf16.gmra.mrb[0].mxu0 %v533
        %v1061 = vpop.f32.mrb[0].mxu0
        %v1062 = vadd.f32 0.0, %v1061
        %v1063 = vpop.f32.mrb[0].mxu0
        %v1064 = vpop.f32.mrb[0].mxu0
        %v1065 = vadd.f32 0.0, %v1064
        %v1066 = vpop.f32.mrb[0].mxu0
        %1067 = vmatprep.mubr.bf16.mxu0 %v592
        %1068 = vmatmul.mubr.bf16.gmra.mrb[0].mxu0 %v534
        %v1069 = vpop.f32.mrb[0].mxu0
        %v1070 = vadd.f32 0.0, %v1069
        %v1071 = vpop.f32.mrb[0].mxu0
        %v1072 = vpop.f32.mrb[0].mxu0
        %v1073 = vadd.f32 0.0, %v1072
        %v1074 = vpop.f32.mrb[0].mxu0
        %1075 = vmatprep.mubr.bf16.mxu0 %v604
        %1076 = vmatmul.mubr.bf16.gmra.mrb[0].mxu0 %v535
        %v1077 = vpop.f32.mrb[0].mxu0
        %v1078 = vadd.f32 0.0, %v1077
        %v1079 = vpop.f32.mrb[0].mxu0
        %v1080 = vpop.f32.mrb[0].mxu0
        %v1081 = vadd.f32 0.0, %v1080
        %v1082 = vpop.f32.mrb[0].mxu0
        %1083 = vmatprep.mubr.bf16.mxu0 %v616
        %1084 = vmatmul.mubr.bf16.gmra.mrb[0].mxu0 %v536
        %v1085 = vpop.f32.mrb[0].mxu0
        %v1086 = vadd.f32 0.0, %v1085
        %v1087 = vpop.f32.mrb[0].mxu0
        %v1088 = vpop.f32.mrb[0].mxu0
        %v1089 = vadd.f32 0.0, %v1088
        %v1090 = vpop.f32.mrb[0].mxu0
        %1091 = vmatprep.mubr.bf16.mxu0 %v628
        %1092 = vmatmul.mubr.bf16.gmra.mrb[0].mxu0 %v537
        %v1093 = vpop.f32.mrb[0].mxu0
        %v1094 = vadd.f32 0.0, %v1093
        %v1095 = vpop.f32.mrb[0].mxu0
        %v1096 = vpop.f32.mrb[0].mxu0
        %v1097 = vadd.f32 0.0, %v1096
        %v1098 = vpop.f32.mrb[0].mxu0
        %1099 = vmatprep.mubr.bf16.mxu0 %v640
        %1100 = vmatmul.mubr.bf16.gmra.mrb[0].mxu0 %v538
        %v1101 = vpop.f32.mrb[0].mxu0
        %v1102 = vadd.f32 0.0, %v1101
        %v1103 = vpop.f32.mrb[0].mxu0
        %v1104 = vpop.f32.mrb[0].mxu0
        %v1105 = vadd.f32 0.0, %v1104
        %v1106 = vpop.f32.mrb[0].mxu0
        %1107 = vmatprep.mubr.bf16.mxu0 %v652
        %1108 = vmatmul.mubr.bf16.gmra.mrb[0].mxu0 %v539
        %v1109 = vpop.f32.mrb[0].mxu0
        %v1110 = vadd.f32 0.0, %v1109
        %v1111 = vpop.f32.mrb[0].mxu0
        %v1112 = vpop.f32.mrb[0].mxu0
        %v1113 = vadd.f32 0.0, %v1112
        %v1114 = vpop.f32.mrb[0].mxu0
        %1115 = vmatprep.mubr.bf16.mxu0 %v664
        %1116 = vmatmul.mubr.bf16.gmra.mrb[0].mxu0 %v540
        %v1117 = vpop.f32.mrb[0].mxu0
        %v1118 = vadd.f32 0.0, %v1117
        %v1119 = vpop.f32.mrb[0].mxu0
        %v1120 = vpop.f32.mrb[0].mxu0
        %v1121 = vadd.f32 0.0, %v1120
        %v1122 = vpop.f32.mrb[0].mxu0
        %1123 = vmatprep.mubr.bf16.mxu0 %v676
        %1124 = vmatmul.mubr.bf16.gmra.mrb[0].mxu0 %v541
        %v1125 = vpop.f32.mrb[0].mxu0
        %v1126 = vadd.f32 0.0, %v1125
        %v1127 = vpop.f32.mrb[0].mxu0
        %v1128 = vpop.f32.mrb[0].mxu0
        %v1129 = vadd.f32 0.0, %v1128
        %v1130 = vpop.f32.mrb[0].mxu0
        %1131 = vmatprep.mubr.bf16.mxu0 %v688
        %1132 = vmatmul.mubr.bf16.gmra.mrb[0].mxu0 %v542
        %v1133 = vpop.f32.mrb[0].mxu0
        %v1134 = vadd.f32 0.0, %v1133
        %v1135 = vpop.f32.mrb[0].mxu0
        %v1136 = vpop.f32.mrb[0].mxu0
        %v1137 = vadd.f32 0.0, %v1136
        %v1138 = vpop.f32.mrb[0].mxu0
        %1139 = vdwg.mxu0
        %1140 = vmatprep.subr.bf16.mxu0 0
        %1141 = vmatpush1.bf16.msra.mxu0 %v995
        %1142 = vmatprep.subr.bf16.mxu0 0
        %1143 = vmatpush1.bf16.msra.mxu0 %v996
        %1144 = vmatprep.subr.bf16.mxu0 0
        %1145 = vmatpush1.bf16.msra.mxu0 %v997
        %1146 = vmatprep.subr.bf16.mxu0 0
        %1147 = vmatpush1.bf16.msra.mxu0 %v998
        %1148 = vmatprep.subr.bf16.mxu0 0
        %1149 = vmatpush1.bf16.msra.mxu0 %v999
        %1150 = vmatprep.subr.bf16.mxu0 0
        %1151 = vmatpush1.bf16.msra.mxu0 %v1000
        %1152 = vmatprep.subr.bf16.mxu0 0
        %1153 = vmatpush1.bf16.msra.mxu0 %v1001
        %1154 = vmatprep.subr.bf16.mxu0 0
        %1155 = vmatpush1.bf16.msra.mxu0 %v1002
        %1156 = vmatprep.subr.bf16.mxu0 0
        %1157 = vmatpush1.bf16.msra.mxu0 0
        %1158 = vmatprep.subr.bf16.mxu0 0
        %1159 = vmatpush1.bf16.msra.mxu0 0
        %1160 = vmatprep.subr.bf16.mxu0 0
        %1161 = vmatpush1.bf16.msra.mxu0 0
        %1162 = vmatprep.subr.bf16.mxu0 0
        %1163 = vmatpush1.bf16.msra.mxu0 0
        %1164 = vmatprep.subr.bf16.mxu0 0
        %1165 = vmatpush1.bf16.msra.mxu0 0
        %1166 = vmatprep.subr.bf16.mxu0 0
        %1167 = vmatpush1.bf16.msra.mxu0 0
        %1168 = vmatprep.subr.bf16.mxu0 0
        %1169 = vmatpush1.bf16.msra.mxu0 0
        %1170 = vmatprep.subr.bf16.mxu0 0
        %1171 = vmatpush1.bf16.msra.mxu0 0
        %1172 = vmatprep.mubr.bf16.mxu0 0
        %1173 = vmatmul.mubr.bf16.gmra.mrb[0].mxu0 %v743
        %v1174 = vpop.f32.mrb[0].mxu0
        %v1175 = vadd.f32 %v1062, %v1174
        %v1176 = vpop.f32.mrb[0].mxu0
        %v1177 = vpop.f32.mrb[0].mxu0
        %v1178 = vadd.f32 %v1065, %v1177
        %v1179 = vpop.f32.mrb[0].mxu0
        %1180 = vmatprep.mubr.bf16.mxu0 0
        %1181 = vmatmul.mubr.bf16.gmra.mrb[0].mxu0 %v746
        %v1182 = vpop.f32.mrb[0].mxu0
        %v1183 = vadd.f32 %v1070, %v1182
        %v1184 = vpop.f32.mrb[0].mxu0
        %v1185 = vpop.f32.mrb[0].mxu0
        %v1186 = vadd.f32 %v1073, %v1185
        %v1187 = vpop.f32.mrb[0].mxu0
        %1188 = vmatprep.mubr.bf16.mxu0 0
        %1189 = vmatmul.mubr.bf16.gmra.mrb[0].mxu0 %v749
        %v1190 = vpop.f32.mrb[0].mxu0
        %v1191 = vadd.f32 %v1078, %v1190
        %v1192 = vpop.f32.mrb[0].mxu0
        %v1193 = vpop.f32.mrb[0].mxu0
        %v1194 = vadd.f32 %v1081, %v1193
        %v1195 = vpop.f32.mrb[0].mxu0
        %1196 = vmatprep.mubr.bf16.mxu0 0
        %1197 = vmatmul.mubr.bf16.gmra.mrb[0].mxu0 %v752
        %v1198 = vpop.f32.mrb[0].mxu0
        %v1199 = vadd.f32 %v1086, %v1198
        %v1200 = vpop.f32.mrb[0].mxu0
        %v1201 = vpop.f32.mrb[0].mxu0
        %v1202 = vadd.f32 %v1089, %v1201
        %v1203 = vpop.f32.mrb[0].mxu0
        %1204 = vmatprep.mubr.bf16.mxu0 0
        %1205 = vmatmul.mubr.bf16.gmra.mrb[0].mxu0 %v755
        %v1206 = vpop.f32.mrb[0].mxu0
        %v1207 = vadd.f32 %v1094, %v1206
        %v1208 = vpop.f32.mrb[0].mxu0
        %v1209 = vpop.f32.mrb[0].mxu0
        %v1210 = vadd.f32 %v1097, %v1209
        %v1211 = vpop.f32.mrb[0].mxu0
        %1212 = vmatprep.mubr.bf16.mxu0 0
        %1213 = vmatmul.mubr.bf16.gmra.mrb[0].mxu0 %v758
        %v1214 = vpop.f32.mrb[0].mxu0
        %v1215 = vadd.f32 %v1102, %v1214
        %v1216 = vpop.f32.mrb[0].mxu0
        %v1217 = vpop.f32.mrb[0].mxu0
        %v1218 = vadd.f32 %v1105, %v1217
        %v1219 = vpop.f32.mrb[0].mxu0
        %1220 = vmatprep.mubr.bf16.mxu0 0
        %1221 = vmatmul.mubr.bf16.gmra.mrb[0].mxu0 %v761
        %v1222 = vpop.f32.mrb[0].mxu0
        %v1223 = vadd.f32 %v1110, %v1222
        %v1224 = vpop.f32.mrb[0].mxu0
        %v1225 = vpop.f32.mrb[0].mxu0
        %v1226 = vadd.f32 %v1113, %v1225
        %v1227 = vpop.f32.mrb[0].mxu0
        %1228 = vmatprep.mubr.bf16.mxu0 0
        %1229 = vmatmul.mubr.bf16.gmra.mrb[0].mxu0 %v764
        %v1230 = vpop.f32.mrb[0].mxu0
        %v1231 = vadd.f32 %v1118, %v1230
        %v1232 = vpop.f32.mrb[0].mxu0
        %v1233 = vpop.f32.mrb[0].mxu0
        %v1234 = vadd.f32 %v1121, %v1233
        %v1235 = vpop.f32.mrb[0].mxu0
        %1236 = vmatprep.mubr.bf16.mxu0 0
        %1237 = vmatmul.mubr.bf16.gmra.mrb[0].mxu0 %v767
        %v1238 = vpop.f32.mrb[0].mxu0
        %v1239 = vadd.f32 %v1126, %v1238
        %v1240 = vpop.f32.mrb[0].mxu0
        %v1241 = vpop.f32.mrb[0].mxu0
        %v1242 = vadd.f32 %v1129, %v1241
        %v1243 = vpop.f32.mrb[0].mxu0
        %1244 = vmatprep.mubr.bf16.mxu0 0
        %1245 = vmatmul.mubr.bf16.gmra.mrb[0].mxu0 %v770
        %v1246 = vpop.f32.mrb[0].mxu0
        %v1247 = vadd.f32 %v1134, %v1246
        %v1248 = vpop.f32.mrb[0].mxu0
        %v1249 = vpop.f32.mrb[0].mxu0
        %v1250 = vadd.f32 %v1137, %v1249
        %v1251 = vpop.f32.mrb[0].mxu0
        %1252 = vdwg.mxu0
        %v1301 = vunpack.c.l.b16 %v786
        %v1302 = vunpack.c.l.b16 %v787
        %v1303 = vunpack.c.l.b16 %v788
        %v1304 = vunpack.c.l.b16 %v789
        %v1305 = vunpack.c.l.b16 %v790
        %v1306 = vunpack.c.l.b16 %v791
        %v1307 = vunpack.c.l.b16 %v792
        %v1308 = vunpack.c.l.b16 %v793
        %v1309 = vunpack.c.l.b16 %v794
        %v1310 = vunpack.c.l.b16 %v795
        %v1311 = vunpack.c.l.b16 %v796
        %v1312 = vunpack.c.l.b16 %v797
        %v1313 = vunpack.c.l.b16 %v798
        %v1314 = vunpack.c.l.b16 %v799
        %v1315 = vunpack.c.l.b16 %v800
        %v1316 = vunpack.c.l.b16 %v801
        %v1317 = vunpack.c.l.b16 %v802
        %v1318 = vunpack.c.l.b16 %v803
        %v1319 = vunpack.c.l.b16 %v804
        %v1320 = vunpack.c.l.b16 %v805
        %v1321 = vunpack.c.l.b16 %v806
        %v1322 = vunpack.c.l.b16 %v807
        %v1323 = vunpack.c.l.b16 %v808
        %v1324 = vunpack.c.l.b16 %v809
        %v1325 = vunpack.c.l.b16 %v810
        %v1326 = vunpack.c.l.b16 %v811
        %v1327 = vunpack.c.l.b16 %v812
        %v1328 = vunpack.c.l.b16 %v813
        %v1329 = vunpack.c.l.b16 %v814
        %v1330 = vunpack.c.l.b16 %v815
        %v1331 = vunpack.c.l.b16 %v816
        %v1332 = vunpack.c.l.b16 %v817
        %v1333 = vunpack.c.l.b16 %v818
        %v1334 = vunpack.c.l.b16 %v819
        %v1335 = vunpack.c.l.b16 %v820
        %v1336 = vunpack.c.l.b16 %v821
        %v1337 = vunpack.c.l.b16 %v822
        %v1338 = vunpack.c.l.b16 %v823
        %v1339 = vunpack.c.l.b16 %v824
        %v1340 = vunpack.c.l.b16 %v825
        %v1341 = vunpack.c.l.b16 %v826
        %v1342 = vunpack.c.l.b16 %v827
        %v1343 = vunpack.c.l.b16 %v828
        %v1344 = vunpack.c.l.b16 %v829
        %v1345 = vunpack.c.l.b16 %v830
        %v1346 = vunpack.c.l.b16 %v831
        %v1347 = vunpack.c.l.b16 %v832
        %v1348 = vunpack.c.l.b16 %v833
        %v1349 = vpack.c.b16 %v1302, %v1301
        %v1350 = vpack.c.b16 %v1304, %v1303
        %v1351 = vpack.c.b16 %v1306, %v1305
        %v1352 = vpack.c.b16 %v1308, %v1307
        %v1353 = vpack.c.b16 %v1310, %v1309
        %v1354 = vpack.c.b16 %v1312, %v1311
        %v1355 = vpack.c.b16 %v1314, %v1313
        %v1356 = vpack.c.b16 %v1316, %v1315
        %v1357 = vpack.c.b16 %v1318, %v1317
        %v1358 = vpack.c.b16 %v1320, %v1319
        %v1359 = vpack.c.b16 %v1322, %v1321
        %v1360 = vpack.c.b16 %v1324, %v1323
        %v1361 = vpack.c.b16 %v1326, %v1325
        %v1362 = vpack.c.b16 %v1328, %v1327
        %v1363 = vpack.c.b16 %v1330, %v1329
        %v1364 = vpack.c.b16 %v1332, %v1331
        %v1365 = vpack.c.b16 %v1334, %v1333
        %v1366 = vpack.c.b16 %v1336, %v1335
        %v1367 = vpack.c.b16 %v1338, %v1337
        %v1368 = vpack.c.b16 %v1340, %v1339
        %v1369 = vpack.c.b16 %v1342, %v1341
        %v1370 = vpack.c.b16 %v1344, %v1343
        %v1371 = vpack.c.b16 %v1346, %v1345
        %v1372 = vpack.c.b16 %v1348, %v1347
        %1397 = vmatprep.subr.bf16.mxu0 0
        %1398 = vmatpush1.bf16.msra.mxu0 %v1349
        %1399 = vmatprep.subr.bf16.mxu0 0
        %1400 = vmatpush1.bf16.msra.mxu0 %v1350
        %1401 = vmatprep.subr.bf16.mxu0 0
        %1402 = vmatpush1.bf16.msra.mxu0 %v1351
        %1403 = vmatprep.subr.bf16.mxu0 0
        %1404 = vmatpush1.bf16.msra.mxu0 %v1352
        %1405 = vmatprep.subr.bf16.mxu0 0
        %1406 = vmatpush1.bf16.msra.mxu0 %v1353
        %1407 = vmatprep.subr.bf16.mxu0 0
        %1408 = vmatpush1.bf16.msra.mxu0 %v1354
        %1409 = vmatprep.subr.bf16.mxu0 0
        %1410 = vmatpush1.bf16.msra.mxu0 %v1355
        %1411 = vmatprep.subr.bf16.mxu0 0
        %1412 = vmatpush1.bf16.msra.mxu0 %v1356
        %1413 = vmatprep.subr.bf16.mxu0 0
        %1414 = vmatpush1.bf16.msra.mxu0 %v1357
        %1415 = vmatprep.subr.bf16.mxu0 0
        %1416 = vmatpush1.bf16.msra.mxu0 %v1358
        %1417 = vmatprep.subr.bf16.mxu0 0
        %1418 = vmatpush1.bf16.msra.mxu0 %v1359
        %1419 = vmatprep.subr.bf16.mxu0 0
        %1420 = vmatpush1.bf16.msra.mxu0 %v1360
        %1421 = vmatprep.subr.bf16.mxu0 0
        %1422 = vmatpush1.bf16.msra.mxu0 %v1361
        %1423 = vmatprep.subr.bf16.mxu0 0
        %1424 = vmatpush1.bf16.msra.mxu0 %v1362
        %1425 = vmatprep.subr.bf16.mxu0 0
        %1426 = vmatpush1.bf16.msra.mxu0 %v1363
        %1427 = vmatprep.subr.bf16.mxu0 0
        %1428 = vmatpush1.bf16.msra.mxu0 %v1364
        %1429 = vmatprep.mubr.bf16.mxu0 %v568
        %1430 = vmatmul.mubr.bf16.gmra.mrb[0].mxu0 %v532
        %v1431 = vpop.f32.mrb[0].mxu0
        %v1432 = vadd.f32 %v1175, %v1431
        %v1433 = vpop.f32.mrb[0].mxu0
        %v1434 = vpop.f32.mrb[0].mxu0
        %v1435 = vadd.f32 %v1178, %v1434
        %v1436 = vpop.f32.mrb[0].mxu0
        %1437 = vmatprep.mubr.bf16.mxu0 %v580
        %1438 = vmatmul.mubr.bf16.gmra.mrb[0].mxu0 %v533
        %v1439 = vpop.f32.mrb[0].mxu0
        %v1440 = vadd.f32 %v1183, %v1439
        %v1441 = vpop.f32.mrb[0].mxu0
        %v1442 = vpop.f32.mrb[0].mxu0
        %v1443 = vadd.f32 %v1186, %v1442
        %v1444 = vpop.f32.mrb[0].mxu0
        %1445 = vmatprep.mubr.bf16.mxu0 %v592
        %1446 = vmatmul.mubr.bf16.gmra.mrb[0].mxu0 %v534
        %v1447 = vpop.f32.mrb[0].mxu0
        %v1448 = vadd.f32 %v1191, %v1447
        %v1449 = vpop.f32.mrb[0].mxu0
        %v1450 = vpop.f32.mrb[0].mxu0
        %v1451 = vadd.f32 %v1194, %v1450
        %v1452 = vpop.f32.mrb[0].mxu0
        %1453 = vmatprep.mubr.bf16.mxu0 %v604
        %1454 = vmatmul.mubr.bf16.gmra.mrb[0].mxu0 %v535
        %v1455 = vpop.f32.mrb[0].mxu0
        %v1456 = vadd.f32 %v1199, %v1455
        %v1457 = vpop.f32.mrb[0].mxu0
        %v1458 = vpop.f32.mrb[0].mxu0
        %v1459 = vadd.f32 %v1202, %v1458
        %v1460 = vpop.f32.mrb[0].mxu0
        %1461 = vmatprep.mubr.bf16.mxu0 %v616
        %1462 = vmatmul.mubr.bf16.gmra.mrb[0].mxu0 %v536
        %v1463 = vpop.f32.mrb[0].mxu0
        %v1464 = vadd.f32 %v1207, %v1463
        %v1465 = vpop.f32.mrb[0].mxu0
        %v1466 = vpop.f32.mrb[0].mxu0
        %v1467 = vadd.f32 %v1210, %v1466
        %v1468 = vpop.f32.mrb[0].mxu0
        %1469 = vmatprep.mubr.bf16.mxu0 %v628
        %1470 = vmatmul.mubr.bf16.gmra.mrb[0].mxu0 %v537
        %v1471 = vpop.f32.mrb[0].mxu0
        %v1472 = vadd.f32 %v1215, %v1471
        %v1473 = vpop.f32.mrb[0].mxu0
        %v1474 = vpop.f32.mrb[0].mxu0
        %v1475 = vadd.f32 %v1218, %v1474
        %v1476 = vpop.f32.mrb[0].mxu0
        %1477 = vmatprep.mubr.bf16.mxu0 %v640
        %1478 = vmatmul.mubr.bf16.gmra.mrb[0].mxu0 %v538
        %v1479 = vpop.f32.mrb[0].mxu0
        %v1480 = vadd.f32 %v1223, %v1479
        %v1481 = vpop.f32.mrb[0].mxu0
        %v1482 = vpop.f32.mrb[0].mxu0
        %v1483 = vadd.f32 %v1226, %v1482
        %v1484 = vpop.f32.mrb[0].mxu0
        %1485 = vmatprep.mubr.bf16.mxu0 %v652
        %1486 = vmatmul.mubr.bf16.gmra.mrb[0].mxu0 %v539
        %v1487 = vpop.f32.mrb[0].mxu0
        %v1488 = vadd.f32 %v1231, %v1487
        %v1489 = vpop.f32.mrb[0].mxu0
        %v1490 = vpop.f32.mrb[0].mxu0
        %v1491 = vadd.f32 %v1234, %v1490
        %v1492 = vpop.f32.mrb[0].mxu0
        %1493 = vmatprep.mubr.bf16.mxu0 %v664
        %1494 = vmatmul.mubr.bf16.gmra.mrb[0].mxu0 %v540
        %v1495 = vpop.f32.mrb[0].mxu0
        %v1496 = vadd.f32 %v1239, %v1495
        %v1497 = vpop.f32.mrb[0].mxu0
        %v1498 = vpop.f32.mrb[0].mxu0
        %v1499 = vadd.f32 %v1242, %v1498
        %v1500 = vpop.f32.mrb[0].mxu0
        %1501 = vmatprep.mubr.bf16.mxu0 %v676
        %1502 = vmatmul.mubr.bf16.gmra.mrb[0].mxu0 %v541
        %v1503 = vpop.f32.mrb[0].mxu0
        %v1504 = vadd.f32 %v1247, %v1503
        %v1505 = vpop.f32.mrb[0].mxu0
        %v1506 = vpop.f32.mrb[0].mxu0
        %v1507 = vadd.f32 %v1250, %v1506
        %v1508 = vpop.f32.mrb[0].mxu0
        %1509 = vdwg.mxu0
        %1510 = vmatprep.subr.bf16.mxu0 0
        %1511 = vmatpush1.bf16.msra.mxu0 %v1365
        %1512 = vmatprep.subr.bf16.mxu0 0
        %1513 = vmatpush1.bf16.msra.mxu0 %v1366
        %1514 = vmatprep.subr.bf16.mxu0 0
        %1515 = vmatpush1.bf16.msra.mxu0 %v1367
        %1516 = vmatprep.subr.bf16.mxu0 0
        %1517 = vmatpush1.bf16.msra.mxu0 %v1368
        %1518 = vmatprep.subr.bf16.mxu0 0
        %1519 = vmatpush1.bf16.msra.mxu0 %v1369
        %1520 = vmatprep.subr.bf16.mxu0 0
        %1521 = vmatpush1.bf16.msra.mxu0 %v1370
        %1522 = vmatprep.subr.bf16.mxu0 0
        %1523 = vmatpush1.bf16.msra.mxu0 %v1371
        %1524 = vmatprep.subr.bf16.mxu0 0
        %1525 = vmatpush1.bf16.msra.mxu0 %v1372
        %1526 = vmatprep.subr.bf16.mxu0 0
        %1527 = vmatpush1.bf16.msra.mxu0 0
        %1528 = vmatprep.subr.bf16.mxu0 0
        %1529 = vmatpush1.bf16.msra.mxu0 0
        %1530 = vmatprep.subr.bf16.mxu0 0
        %1531 = vmatpush1.bf16.msra.mxu0 0
        %1532 = vmatprep.subr.bf16.mxu0 0
        %1533 = vmatpush1.bf16.msra.mxu0 0
        %1534 = vmatprep.subr.bf16.mxu0 0
        %1535 = vmatpush1.bf16.msra.mxu0 0
        %1536 = vmatprep.subr.bf16.mxu0 0
        %1537 = vmatpush1.bf16.msra.mxu0 0
        %1538 = vmatprep.subr.bf16.mxu0 0
        %1539 = vmatpush1.bf16.msra.mxu0 0
        %1540 = vmatprep.subr.bf16.mxu0 0
        %1541 = vmatpush1.bf16.msra.mxu0 0
        %1542 = vmatprep.mubr.bf16.mxu0 0
        %1543 = vmatmul.mubr.bf16.gmra.mrb[0].mxu0 %v740
        %v1544 = vpop.f32.mrb[0].mxu0
        %v1545 = vadd.f32 %v1432, %v1544
        %v1546 = vpop.f32.mrb[0].mxu0
        %v1547 = vpop.f32.mrb[0].mxu0
        %v1548 = vadd.f32 %v1435, %v1547
        %v1549 = vpop.f32.mrb[0].mxu0
        %1550 = vmatprep.mubr.bf16.mxu0 0
        %1551 = vmatmul.mubr.bf16.gmra.mrb[0].mxu0 %v743
        %v1552 = vpop.f32.mrb[0].mxu0
        %v1553 = vadd.f32 %v1440, %v1552
        %v1554 = vpop.f32.mrb[0].mxu0
        %v1555 = vpop.f32.mrb[0].mxu0
        %v1556 = vadd.f32 %v1443, %v1555
        %v1557 = vpop.f32.mrb[0].mxu0
        %1558 = vmatprep.mubr.bf16.mxu0 0
        %1559 = vmatmul.mubr.bf16.gmra.mrb[0].mxu0 %v746
        %v1560 = vpop.f32.mrb[0].mxu0
        %v1561 = vadd.f32 %v1448, %v1560
        %v1562 = vpop.f32.mrb[0].mxu0
        %v1563 = vpop.f32.mrb[0].mxu0
        %v1564 = vadd.f32 %v1451, %v1563
        %v1565 = vpop.f32.mrb[0].mxu0
        %1566 = vmatprep.mubr.bf16.mxu0 0
        %1567 = vmatmul.mubr.bf16.gmra.mrb[0].mxu0 %v749
        %v1568 = vpop.f32.mrb[0].mxu0
        %v1569 = vadd.f32 %v1456, %v1568
        %v1570 = vpop.f32.mrb[0].mxu0
        %v1571 = vpop.f32.mrb[0].mxu0
        %v1572 = vadd.f32 %v1459, %v1571
        %v1573 = vpop.f32.mrb[0].mxu0
        %1574 = vmatprep.mubr.bf16.mxu0 0
        %1575 = vmatmul.mubr.bf16.gmra.mrb[0].mxu0 %v752
        %v1576 = vpop.f32.mrb[0].mxu0
        %v1577 = vadd.f32 %v1464, %v1576
        %v1578 = vpop.f32.mrb[0].mxu0
        %v1579 = vpop.f32.mrb[0].mxu0
        %v1580 = vadd.f32 %v1467, %v1579
        %v1581 = vpop.f32.mrb[0].mxu0
        %1582 = vmatprep.mubr.bf16.mxu0 0
        %1583 = vmatmul.mubr.bf16.gmra.mrb[0].mxu0 %v755
        %v1584 = vpop.f32.mrb[0].mxu0
        %v1585 = vadd.f32 %v1472, %v1584
        %v1586 = vpop.f32.mrb[0].mxu0
        %v1587 = vpop.f32.mrb[0].mxu0
        %v1588 = vadd.f32 %v1475, %v1587
        %v1589 = vpop.f32.mrb[0].mxu0
        %1590 = vmatprep.mubr.bf16.mxu0 0
        %1591 = vmatmul.mubr.bf16.gmra.mrb[0].mxu0 %v758
        %v1592 = vpop.f32.mrb[0].mxu0
        %v1593 = vadd.f32 %v1480, %v1592
        %v1594 = vpop.f32.mrb[0].mxu0
        %v1595 = vpop.f32.mrb[0].mxu0
        %v1596 = vadd.f32 %v1483, %v1595
        %v1597 = vpop.f32.mrb[0].mxu0
        %1598 = vmatprep.mubr.bf16.mxu0 0
        %1599 = vmatmul.mubr.bf16.gmra.mrb[0].mxu0 %v761
        %v1600 = vpop.f32.mrb[0].mxu0
        %v1601 = vadd.f32 %v1488, %v1600
        %v1602 = vpop.f32.mrb[0].mxu0
        %v1603 = vpop.f32.mrb[0].mxu0
        %v1604 = vadd.f32 %v1491, %v1603
        %v1605 = vpop.f32.mrb[0].mxu0
        %1606 = vmatprep.mubr.bf16.mxu0 0
        %1607 = vmatmul.mubr.bf16.gmra.mrb[0].mxu0 %v764
        %v1608 = vpop.f32.mrb[0].mxu0
        %v1609 = vadd.f32 %v1496, %v1608
        %v1610 = vpop.f32.mrb[0].mxu0
        %v1611 = vpop.f32.mrb[0].mxu0
        %v1612 = vadd.f32 %v1499, %v1611
        %v1613 = vpop.f32.mrb[0].mxu0
        %1614 = vmatprep.mubr.bf16.mxu0 0
        %1615 = vmatmul.mubr.bf16.gmra.mrb[0].mxu0 %v767
        %v1616 = vpop.f32.mrb[0].mxu0
        %v1617 = vadd.f32 %v1504, %v1616
        %v1618 = vpop.f32.mrb[0].mxu0
        %v1619 = vpop.f32.mrb[0].mxu0
        %v1620 = vadd.f32 %v1507, %v1619
        %v1621 = vpop.f32.mrb[0].mxu0
        %1622 = vdwg.mxu0
        %s1623 = scalar_lea.vmem [#allocation7], 384
        %v1624 = vld [vmem:[%s1623] sm:$0xf]
        %v1625 = vld [vmem:[%s1623 + $0x4] sm:$0xf]
        %v1626 = vld [vmem:[%s1623 + $0x8] sm:$0xf]
        %v1627 = vld [vmem:[%s1623 + $0xc] sm:$0xf]
        %v1628 = vld [vmem:[%s1623 + $0x10] sm:$0xf]
        %v1629 = vld [vmem:[%s1623 + $0x14] sm:$0xf]
        %v1630 = vld [vmem:[%s1623 + $0x18] sm:$0xf]
        %v1631 = vld [vmem:[%s1623 + $0x1c] sm:$0xf]
        %v1632 = vld [vmem:[%s1623 + $0x20] sm:$0xf]
        %v1633 = vld [vmem:[%s1623 + $0x24] sm:$0xf]
        %v1634 = vld [vmem:[%s1623 + $0x28] sm:$0xf]
        %v1635 = vld [vmem:[%s1623 + $0x2c] sm:$0xf]
        %v1636 = vld [vmem:[%s1623 + $0x30] sm:$0xf]
        %v1637 = vld [vmem:[%s1623 + $0x34] sm:$0xf]
        %v1638 = vld [vmem:[%s1623 + $0x38] sm:$0xf]
        %v1639 = vld [vmem:[%s1623 + $0x3c] sm:$0xf]
        %v1640 = vld [vmem:[%s1623 + $0x40] sm:$0xf]
        %v1641 = vld [vmem:[%s1623 + $0x44] sm:$0xf]
        %v1642 = vld [vmem:[%s1623 + $0x48] sm:$0xf]
        %v1643 = vld [vmem:[%s1623 + $0x4c] sm:$0xf]
        %v1644 = vld [vmem:[%s1623 + $0x50] sm:$0xf]
        %v1645 = vld [vmem:[%s1623 + $0x54] sm:$0xf]
        %v1646 = vld [vmem:[%s1623 + $0x58] sm:$0xf]
        %v1647 = vld [vmem:[%s1623 + $0x5c] sm:$0xf]
        %v1648 = vld [vmem:[%s1623 + $0x60] sm:$0xf]
        %v1649 = vld [vmem:[%s1623 + $0x64] sm:$0xf]
        %v1650 = vld [vmem:[%s1623 + $0x68] sm:$0xf]
        %v1651 = vld [vmem:[%s1623 + $0x6c] sm:$0xf]
        %v1652 = vld [vmem:[%s1623 + $0x70] sm:$0xf]
        %v1653 = vld [vmem:[%s1623 + $0x74] sm:$0xf]
        %v1654 = vld [vmem:[%s1623 + $0x78] sm:$0xf]
        %v1655 = vld [vmem:[%s1623 + $0x7c] sm:$0xf]
        %v1656 = vld [vmem:[%s1623 + $0x80] sm:$0xf]
        %v1657 = vld [vmem:[%s1623 + $0x84] sm:$0xf]
        %v1658 = vld [vmem:[%s1623 + $0x88] sm:$0xf]
        %v1659 = vld [vmem:[%s1623 + $0x8c] sm:$0xf]
        %v1660 = vld [vmem:[%s1623 + $0x90] sm:$0xf]
        %v1661 = vld [vmem:[%s1623 + $0x94] sm:$0xf]
        %v1662 = vld [vmem:[%s1623 + $0x98] sm:$0xf]
        %v1663 = vld [vmem:[%s1623 + $0x9c] sm:$0xf]
        %v1664 = vld [vmem:[%s1623 + $0xa0] sm:$0xf]
        %v1665 = vld [vmem:[%s1623 + $0xa4] sm:$0xf]
        %v1666 = vld [vmem:[%s1623 + $0xa8] sm:$0xf]
        %v1667 = vld [vmem:[%s1623 + $0xac] sm:$0xf]
        %v1668 = vld [vmem:[%s1623 + $0xb0] sm:$0xf]
        %v1669 = vld [vmem:[%s1623 + $0xb4] sm:$0xf]
        %v1670 = vld [vmem:[%s1623 + $0xb8] sm:$0xf]
        %v1671 = vld [vmem:[%s1623 + $0xbc] sm:$0xf]
        %v1720 = vunpack.c.l.b16 %v1624
        %v1721 = vunpack.c.l.b16 %v1625
        %v1722 = vunpack.c.l.b16 %v1626
        %v1723 = vunpack.c.l.b16 %v1627
        %v1724 = vunpack.c.l.b16 %v1628
        %v1725 = vunpack.c.l.b16 %v1629
        %v1726 = vunpack.c.l.b16 %v1630
        %v1727 = vunpack.c.l.b16 %v1631
        %v1728 = vunpack.c.l.b16 %v1632
        %v1729 = vunpack.c.l.b16 %v1633
        %v1730 = vunpack.c.l.b16 %v1634
        %v1731 = vunpack.c.l.b16 %v1635
        %v1732 = vunpack.c.l.b16 %v1636
        %v1733 = vunpack.c.l.b16 %v1637
        %v1734 = vunpack.c.l.b16 %v1638
        %v1735 = vunpack.c.l.b16 %v1639
        %v1736 = vunpack.c.l.b16 %v1640
        %v1737 = vunpack.c.l.b16 %v1641
        %v1738 = vunpack.c.l.b16 %v1642
        %v1739 = vunpack.c.l.b16 %v1643
        %v1740 = vunpack.c.l.b16 %v1644
        %v1741 = vunpack.c.l.b16 %v1645
        %v1742 = vunpack.c.l.b16 %v1646
        %v1743 = vunpack.c.l.b16 %v1647
        %v1744 = vunpack.c.l.b16 %v1648
        %v1745 = vunpack.c.l.b16 %v1649
        %v1746 = vunpack.c.l.b16 %v1650
        %v1747 = vunpack.c.l.b16 %v1651
        %v1748 = vunpack.c.l.b16 %v1652
        %v1749 = vunpack.c.l.b16 %v1653
        %v1750 = vunpack.c.l.b16 %v1654
        %v1751 = vunpack.c.l.b16 %v1655
        %v1752 = vunpack.c.l.b16 %v1656
        %v1753 = vunpack.c.l.b16 %v1657
        %v1754 = vunpack.c.l.b16 %v1658
        %v1755 = vunpack.c.l.b16 %v1659
        %v1756 = vunpack.c.l.b16 %v1660
        %v1757 = vunpack.c.l.b16 %v1661
        %v1758 = vunpack.c.l.b16 %v1662
        %v1759 = vunpack.c.l.b16 %v1663
        %v1760 = vunpack.c.l.b16 %v1664
        %v1761 = vunpack.c.l.b16 %v1665
        %v1762 = vunpack.c.l.b16 %v1666
        %v1763 = vunpack.c.l.b16 %v1667
        %v1764 = vunpack.c.l.b16 %v1668
        %v1765 = vunpack.c.l.b16 %v1669
        %v1766 = vunpack.c.l.b16 %v1670
        %v1767 = vunpack.c.l.b16 %v1671
        %v1768 = vpack.c.b16 %v1721, %v1720
        %v1769 = vpack.c.b16 %v1723, %v1722
        %v1770 = vpack.c.b16 %v1725, %v1724
        %v1771 = vpack.c.b16 %v1727, %v1726
        %v1772 = vpack.c.b16 %v1729, %v1728
        %v1773 = vpack.c.b16 %v1731, %v1730
        %v1774 = vpack.c.b16 %v1733, %v1732
        %v1775 = vpack.c.b16 %v1735, %v1734
        %v1776 = vpack.c.b16 %v1737, %v1736
        %v1777 = vpack.c.b16 %v1739, %v1738
        %v1778 = vpack.c.b16 %v1741, %v1740
        %v1779 = vpack.c.b16 %v1743, %v1742
        %v1780 = vpack.c.b16 %v1745, %v1744
        %v1781 = vpack.c.b16 %v1747, %v1746
        %v1782 = vpack.c.b16 %v1749, %v1748
        %v1783 = vpack.c.b16 %v1751, %v1750
        %v1784 = vpack.c.b16 %v1753, %v1752
        %v1785 = vpack.c.b16 %v1755, %v1754
        %v1786 = vpack.c.b16 %v1757, %v1756
        %v1787 = vpack.c.b16 %v1759, %v1758
        %v1788 = vpack.c.b16 %v1761, %v1760
        %v1789 = vpack.c.b16 %v1763, %v1762
        %v1790 = vpack.c.b16 %v1765, %v1764
        %v1791 = vpack.c.b16 %v1767, %v1766
        %1816 = vmatprep.subr.bf16.mxu0 0
        %1817 = vmatpush1.bf16.msra.mxu0 %v1768
        %1818 = vmatprep.subr.bf16.mxu0 0
        %1819 = vmatpush1.bf16.msra.mxu0 %v1769
        %1820 = vmatprep.subr.bf16.mxu0 0
        %1821 = vmatpush1.bf16.msra.mxu0 %v1770
        %1822 = vmatprep.subr.bf16.mxu0 0
        %1823 = vmatpush1.bf16.msra.mxu0 %v1771
        %1824 = vmatprep.subr.bf16.mxu0 0
        %1825 = vmatpush1.bf16.msra.mxu0 %v1772
        %1826 = vmatprep.subr.bf16.mxu0 0
        %1827 = vmatpush1.bf16.msra.mxu0 %v1773
        %1828 = vmatprep.subr.bf16.mxu0 0
        %1829 = vmatpush1.bf16.msra.mxu0 %v1774
        %1830 = vmatprep.subr.bf16.mxu0 0
        %1831 = vmatpush1.bf16.msra.mxu0 %v1775
        %1832 = vmatprep.subr.bf16.mxu0 0
        %1833 = vmatpush1.bf16.msra.mxu0 %v1776
        %1834 = vmatprep.subr.bf16.mxu0 0
        %1835 = vmatpush1.bf16.msra.mxu0 %v1777
        %1836 = vmatprep.subr.bf16.mxu0 0
        %1837 = vmatpush1.bf16.msra.mxu0 %v1778
        %1838 = vmatprep.subr.bf16.mxu0 0
        %1839 = vmatpush1.bf16.msra.mxu0 %v1779
        %1840 = vmatprep.subr.bf16.mxu0 0
        %1841 = vmatpush1.bf16.msra.mxu0 %v1780
        %1842 = vmatprep.subr.bf16.mxu0 0
        %1843 = vmatpush1.bf16.msra.mxu0 %v1781
        %1844 = vmatprep.subr.bf16.mxu0 0
        %1845 = vmatpush1.bf16.msra.mxu0 %v1782
        %1846 = vmatprep.subr.bf16.mxu0 0
        %1847 = vmatpush1.bf16.msra.mxu0 %v1783
        %1848 = vmatprep.mubr.bf16.mxu0 %v592
        %1849 = vmatmul.mubr.bf16.gmra.mrb[0].mxu0 %v534
        %v1850 = vpop.f32.mrb[0].mxu0
        %v1851 = vadd.f32 0.0, %v1850
        %v1852 = vpop.f32.mrb[0].mxu0
        %v1853 = vpop.f32.mrb[0].mxu0
        %v1854 = vadd.f32 0.0, %v1853
        %v1855 = vpop.f32.mrb[0].mxu0
        %1856 = vmatprep.mubr.bf16.mxu0 %v604
        %1857 = vmatmul.mubr.bf16.gmra.mrb[0].mxu0 %v535
        %v1858 = vpop.f32.mrb[0].mxu0
        %v1859 = vadd.f32 0.0, %v1858
        %v1860 = vpop.f32.mrb[0].mxu0
        %v1861 = vpop.f32.mrb[0].mxu0
        %v1862 = vadd.f32 0.0, %v1861
        %v1863 = vpop.f32.mrb[0].mxu0
        %1864 = vmatprep.mubr.bf16.mxu0 %v616
        %1865 = vmatmul.mubr.bf16.gmra.mrb[0].mxu0 %v536
        %v1866 = vpop.f32.mrb[0].mxu0
        %v1867 = vadd.f32 0.0, %v1866
        %v1868 = vpop.f32.mrb[0].mxu0
        %v1869 = vpop.f32.mrb[0].mxu0
        %v1870 = vadd.f32 0.0, %v1869
        %v1871 = vpop.f32.mrb[0].mxu0
        %1872 = vmatprep.mubr.bf16.mxu0 %v628
        %1873 = vmatmul.mubr.bf16.gmra.mrb[0].mxu0 %v537
        %v1874 = vpop.f32.mrb[0].mxu0
        %v1875 = vadd.f32 0.0, %v1874
        %v1876 = vpop.f32.mrb[0].mxu0
        %v1877 = vpop.f32.mrb[0].mxu0
        %v1878 = vadd.f32 0.0, %v1877
        %v1879 = vpop.f32.mrb[0].mxu0
        %1880 = vmatprep.mubr.bf16.mxu0 %v640
        %1881 = vmatmul.mubr.bf16.gmra.mrb[0].mxu0 %v538
        %v1882 = vpop.f32.mrb[0].mxu0
        %v1883 = vadd.f32 0.0, %v1882
        %v1884 = vpop.f32.mrb[0].mxu0
        %v1885 = vpop.f32.mrb[0].mxu0
        %v1886 = vadd.f32 0.0, %v1885
        %v1887 = vpop.f32.mrb[0].mxu0
        %1888 = vmatprep.mubr.bf16.mxu0 %v652
        %1889 = vmatmul.mubr.bf16.gmra.mrb[0].mxu0 %v539
        %v1890 = vpop.f32.mrb[0].mxu0
        %v1891 = vadd.f32 0.0, %v1890
        %v1892 = vpop.f32.mrb[0].mxu0
        %v1893 = vpop.f32.mrb[0].mxu0
        %v1894 = vadd.f32 0.0, %v1893
        %v1895 = vpop.f32.mrb[0].mxu0
        %1896 = vmatprep.mubr.bf16.mxu0 %v664
        %1897 = vmatmul.mubr.bf16.gmra.mrb[0].mxu0 %v540
        %v1898 = vpop.f32.mrb[0].mxu0
        %v1899 = vadd.f32 0.0, %v1898
        %v1900 = vpop.f32.mrb[0].mxu0
        %v1901 = vpop.f32.mrb[0].mxu0
        %v1902 = vadd.f32 0.0, %v1901
        %v1903 = vpop.f32.mrb[0].mxu0
        %1904 = vmatprep.mubr.bf16.mxu0 %v676
        %1905 = vmatmul.mubr.bf16.gmra.mrb[0].mxu0 %v541
        %v1906 = vpop.f32.mrb[0].mxu0
        %v1907 = vadd.f32 0.0, %v1906
        %v1908 = vpop.f32.mrb[0].mxu0
        %v1909 = vpop.f32.mrb[0].mxu0
        %v1910 = vadd.f32 0.0, %v1909
        %v1911 = vpop.f32.mrb[0].mxu0
        %1912 = vmatprep.mubr.bf16.mxu0 %v688
        %1913 = vmatmul.mubr.bf16.gmra.mrb[0].mxu0 %v542
        %v1914 = vpop.f32.mrb[0].mxu0
        %v1915 = vadd.f32 0.0, %v1914
        %v1916 = vpop.f32.mrb[0].mxu0
        %v1917 = vpop.f32.mrb[0].mxu0
        %v1918 = vadd.f32 0.0, %v1917
        %v1919 = vpop.f32.mrb[0].mxu0
        %1920 = vmatprep.mubr.bf16.mxu0 %v700
        %1921 = vmatmul.mubr.bf16.gmra.mrb[0].mxu0 %v543
        %v1922 = vpop.f32.mrb[0].mxu0
        %v1923 = vadd.f32 0.0, %v1922
        %v1924 = vpop.f32.mrb[0].mxu0
        %v1925 = vpop.f32.mrb[0].mxu0
        %v1926 = vadd.f32 0.0, %v1925
        %v1927 = vpop.f32.mrb[0].mxu0
        %1928 = vdwg.mxu0
        %1929 = vmatprep.subr.bf16.mxu0 0
        %1930 = vmatpush1.bf16.msra.mxu0 %v1784
        %1931 = vmatprep.subr.bf16.mxu0 0
        %1932 = vmatpush1.bf16.msra.mxu0 %v1785
        %1933 = vmatprep.subr.bf16.mxu0 0
        %1934 = vmatpush1.bf16.msra.mxu0 %v1786
        %1935 = vmatprep.subr.bf16.mxu0 0
        %1936 = vmatpush1.bf16.msra.mxu0 %v1787
        %1937 = vmatprep.subr.bf16.mxu0 0
        %1938 = vmatpush1.bf16.msra.mxu0 %v1788
        %1939 = vmatprep.subr.bf16.mxu0 0
        %1940 = vmatpush1.bf16.msra.mxu0 %v1789
        %1941 = vmatprep.subr.bf16.mxu0 0
        %1942 = vmatpush1.bf16.msra.mxu0 %v1790
        %1943 = vmatprep.subr.bf16.mxu0 0
        %1944 = vmatpush1.bf16.msra.mxu0 %v1791
        %1945 = vmatprep.subr.bf16.mxu0 0
        %1946 = vmatpush1.bf16.msra.mxu0 0
        %1947 = vmatprep.subr.bf16.mxu0 0
        %1948 = vmatpush1.bf16.msra.mxu0 0
        %1949 = vmatprep.subr.bf16.mxu0 0
        %1950 = vmatpush1.bf16.msra.mxu0 0
        %1951 = vmatprep.subr.bf16.mxu0 0
        %1952 = vmatpush1.bf16.msra.mxu0 0
        %1953 = vmatprep.subr.bf16.mxu0 0
        %1954 = vmatpush1.bf16.msra.mxu0 0
        %1955 = vmatprep.subr.bf16.mxu0 0
        %1956 = vmatpush1.bf16.msra.mxu0 0
        %1957 = vmatprep.subr.bf16.mxu0 0
        %1958 = vmatpush1.bf16.msra.mxu0 0
        %1959 = vmatprep.subr.bf16.mxu0 0
        %1960 = vmatpush1.bf16.msra.mxu0 0
        %1961 = vmatprep.mubr.bf16.mxu0 0
        %1962 = vmatmul.mubr.bf16.gmra.mrb[0].mxu0 %v746
        %v1963 = vpop.f32.mrb[0].mxu0
        %v1964 = vadd.f32 %v1851, %v1963
        %v1965 = vpop.f32.mrb[0].mxu0
        %v1966 = vpop.f32.mrb[0].mxu0
        %v1967 = vadd.f32 %v1854, %v1966
        %v1968 = vpop.f32.mrb[0].mxu0
        %1969 = vmatprep.mubr.bf16.mxu0 0
        %1970 = vmatmul.mubr.bf16.gmra.mrb[0].mxu0 %v749
        %v1971 = vpop.f32.mrb[0].mxu0
        %v1972 = vadd.f32 %v1859, %v1971
        %v1973 = vpop.f32.mrb[0].mxu0
        %v1974 = vpop.f32.mrb[0].mxu0
        %v1975 = vadd.f32 %v1862, %v1974
        %v1976 = vpop.f32.mrb[0].mxu0
        %1977 = vmatprep.mubr.bf16.mxu0 0
        %1978 = vmatmul.mubr.bf16.gmra.mrb[0].mxu0 %v752
        %v1979 = vpop.f32.mrb[0].mxu0
        %v1980 = vadd.f32 %v1867, %v1979
        %v1981 = vpop.f32.mrb[0].mxu0
        %v1982 = vpop.f32.mrb[0].mxu0
        %v1983 = vadd.f32 %v1870, %v1982
        %v1984 = vpop.f32.mrb[0].mxu0
        %1985 = vmatprep.mubr.bf16.mxu0 0
        %1986 = vmatmul.mubr.bf16.gmra.mrb[0].mxu0 %v755
        %v1987 = vpop.f32.mrb[0].mxu0
        %v1988 = vadd.f32 %v1875, %v1987
        %v1989 = vpop.f32.mrb[0].mxu0
        %v1990 = vpop.f32.mrb[0].mxu0
        %v1991 = vadd.f32 %v1878, %v1990
        %v1992 = vpop.f32.mrb[0].mxu0
        %1993 = vmatprep.mubr.bf16.mxu0 0
        %1994 = vmatmul.mubr.bf16.gmra.mrb[0].mxu0 %v758
        %v1995 = vpop.f32.mrb[0].mxu0
        %v1996 = vadd.f32 %v1883, %v1995
        %v1997 = vpop.f32.mrb[0].mxu0
        %v1998 = vpop.f32.mrb[0].mxu0
        %v1999 = vadd.f32 %v1886, %v1998
        %v2000 = vpop.f32.mrb[0].mxu0
        %2001 = vmatprep.mubr.bf16.mxu0 0
        %2002 = vmatmul.mubr.bf16.gmra.mrb[0].mxu0 %v761
        %v2003 = vpop.f32.mrb[0].mxu0
        %v2004 = vadd.f32 %v1891, %v2003
        %v2005 = vpop.f32.mrb[0].mxu0
        %v2006 = vpop.f32.mrb[0].mxu0
        %v2007 = vadd.f32 %v1894, %v2006
        %v2008 = vpop.f32.mrb[0].mxu0
        %2009 = vmatprep.mubr.bf16.mxu0 0
        %2010 = vmatmul.mubr.bf16.gmra.mrb[0].mxu0 %v764
        %v2011 = vpop.f32.mrb[0].mxu0
        %v2012 = vadd.f32 %v1899, %v2011
        %v2013 = vpop.f32.mrb[0].mxu0
        %v2014 = vpop.f32.mrb[0].mxu0
        %v2015 = vadd.f32 %v1902, %v2014
        %v2016 = vpop.f32.mrb[0].mxu0
        %2017 = vmatprep.mubr.bf16.mxu0 0
        %2018 = vmatmul.mubr.bf16.gmra.mrb[0].mxu0 %v767
        %v2019 = vpop.f32.mrb[0].mxu0
        %v2020 = vadd.f32 %v1907, %v2019
        %v2021 = vpop.f32.mrb[0].mxu0
        %v2022 = vpop.f32.mrb[0].mxu0
        %v2023 = vadd.f32 %v1910, %v2022
        %v2024 = vpop.f32.mrb[0].mxu0
        %2025 = vmatprep.mubr.bf16.mxu0 0
        %2026 = vmatmul.mubr.bf16.gmra.mrb[0].mxu0 %v770
        %v2027 = vpop.f32.mrb[0].mxu0
        %v2028 = vadd.f32 %v1915, %v2027
        %v2029 = vpop.f32.mrb[0].mxu0
        %v2030 = vpop.f32.mrb[0].mxu0
        %v2031 = vadd.f32 %v1918, %v2030
        %v2032 = vpop.f32.mrb[0].mxu0
        %2033 = vmatprep.mubr.bf16.mxu0 0
        %2034 = vmatmul.mubr.bf16.gmra.mrb[0].mxu0 %v773
        %v2035 = vpop.f32.mrb[0].mxu0
        %v2036 = vadd.f32 %v1923, %v2035
        %v2037 = vpop.f32.mrb[0].mxu0
        %v2038 = vpop.f32.mrb[0].mxu0
        %v2039 = vadd.f32 %v1926, %v2038
        %v2040 = vpop.f32.mrb[0].mxu0
        %2041 = vdwg.mxu0
        %v2042 = vadd.f32 %v1545, %v1964
        %v2043 = vadd.f32 %v1548, %v1967
        %v2044 = vadd.f32 %v1553, %v1972
        %v2045 = vadd.f32 %v1556, %v1975
        %v2046 = vadd.f32 %v1561, %v1980
        %v2047 = vadd.f32 %v1564, %v1983
        %v2048 = vadd.f32 %v1569, %v1988
        %v2049 = vadd.f32 %v1572, %v1991
        %v2050 = vadd.f32 %v1577, %v1996
        %v2051 = vadd.f32 %v1580, %v1999
        %v2052 = vadd.f32 %v1585, %v2004
        %v2053 = vadd.f32 %v1588, %v2007
        %v2054 = vadd.f32 %v1593, %v2012
        %v2055 = vadd.f32 %v1596, %v2015
        %v2056 = vadd.f32 %v1601, %v2020
        %v2057 = vadd.f32 %v1604, %v2023
        %v2058 = vadd.f32 %v1609, %v2028
        %v2059 = vadd.f32 %v1612, %v2031
        %v2060 = vadd.f32 %v1617, %v2036
        %v2061 = vadd.f32 %v1620, %v2039
        %v2062 = vld [vmem:[%s3] sm:$0x1]
        %v2064 = vlaneseq
        %v2065 = vshrl.u32 %v2064, 7
        %v2066 = vsub.s32 0, %v2065
        %v2067 = vrot.slane %v2062, %v2066
        %v2069 = vadd.f32 %v2042, %v2067
        %v2070 = vadd.f32 %v2043, %v2067
        %v2071 = vadd.f32 %v2044, %v2067
        %v2072 = vadd.f32 %v2045, %v2067
        %v2073 = vadd.f32 %v2046, %v2067
        %v2074 = vadd.f32 %v2047, %v2067
        %v2075 = vadd.f32 %v2048, %v2067
        %v2076 = vadd.f32 %v2049, %v2067
        %v2077 = vadd.f32 %v2050, %v2067
        %v2078 = vadd.f32 %v2051, %v2067
        %v2079 = vadd.f32 %v2052, %v2067
        %v2080 = vadd.f32 %v2053, %v2067
        %v2081 = vadd.f32 %v2054, %v2067
        %v2082 = vadd.f32 %v2055, %v2067
        %v2083 = vadd.f32 %v2056, %v2067
        %v2084 = vadd.f32 %v2057, %v2067
        %v2085 = vadd.f32 %v2058, %v2067
        %v2086 = vadd.f32 %v2059, %v2067
        %v2087 = vadd.f32 %v2060, %v2067
        %v2088 = vadd.f32 %v2061, %v2067
        %v2089 = vmax.f32 %v2069, 0.0
        %v2090 = vmax.f32 %v2070, 0.0
        %v2091 = vmax.f32 %v2071, 0.0
        %v2092 = vmax.f32 %v2072, 0.0
        %v2093 = vmax.f32 %v2073, 0.0
        %v2094 = vmax.f32 %v2074, 0.0
        %v2095 = vmax.f32 %v2075, 0.0
        %v2096 = vmax.f32 %v2076, 0.0
        %v2097 = vmax.f32 %v2077, 0.0
        %v2098 = vmax.f32 %v2078, 0.0
        %v2099 = vmax.f32 %v2079, 0.0
        %v2100 = vmax.f32 %v2080, 0.0
        %v2101 = vmax.f32 %v2081, 0.0
        %v2102 = vmax.f32 %v2082, 0.0
        %v2103 = vmax.f32 %v2083, 0.0
        %v2104 = vmax.f32 %v2084, 0.0
        %v2105 = vmax.f32 %v2085, 0.0
        %v2106 = vmax.f32 %v2086, 0.0
        %v2107 = vmax.f32 %v2087, 0.0
        %v2108 = vmax.f32 %v2088, 0.0
        %v2109 = vlaneseq
        %v2110 = vshrl.u32 %v2109, 7
        %v2111 = vadd.s32 %v2110, 8
        %v2112 = vadd.s32 %v2110, 16
        %v2113 = vadd.s32 %v2110, 24
        %v2114 = vadd.s32 %v2110, 32
        %v2115 = vadd.s32 %v2110, 40
        %v2116 = vadd.s32 %v2110, 48
        %v2117 = vadd.s32 %v2110, 56
        %v2118 = vadd.s32 %v2110, 64
        %v2119 = vadd.s32 %v2110, 72
        %v2120 = vadd.s32 %v2110, 80
        %v2121 = vadd.s32 %v2110, 88
        %v2122 = vadd.s32 %v2110, 96
        %v2123 = vadd.s32 %v2110, 104
        %v2124 = vadd.s32 %v2110, 112
        %v2125 = vadd.s32 %v2110, 120
        %v2126 = vadd.s32 %v2110, 128
        %v2127 = vadd.s32 %v2110, 136
        %v2128 = vadd.s32 %v2110, 144
        %v2129 = vadd.s32 %v2110, 152
        %s2130 = smul.u32 %s31, 8
        %s2131 = ssub.s32 1, %s2130
        %s2132 = smul.u32 %s2131, 16
        %s2133 = ssub.s32 17, %s2130
        %s2134 = smul.u32 %s2133, 16
        %v2135 = vstv %s2132
        %vm2136 = vcmp.ge.s32.totalorder %v2110, %v2135
        %vm2137 = vcmp.ge.s32.totalorder %v2111, %v2135
        %vm2138 = vcmp.ge.s32.totalorder %v2112, %v2135
        %vm2139 = vcmp.ge.s32.totalorder %v2113, %v2135
        %vm2140 = vcmp.ge.s32.totalorder %v2114, %v2135
        %vm2141 = vcmp.ge.s32.totalorder %v2115, %v2135
        %vm2142 = vcmp.ge.s32.totalorder %v2116, %v2135
        %vm2143 = vcmp.ge.s32.totalorder %v2117, %v2135
        %vm2144 = vcmp.ge.s32.totalorder %v2118, %v2135
        %vm2145 = vcmp.ge.s32.totalorder %v2119, %v2135
        %vm2146 = vcmp.ge.s32.totalorder %v2120, %v2135
        %vm2147 = vcmp.ge.s32.totalorder %v2121, %v2135
        %vm2148 = vcmp.ge.s32.totalorder %v2122, %v2135
        %vm2149 = vcmp.ge.s32.totalorder %v2123, %v2135
        %vm2150 = vcmp.ge.s32.totalorder %v2124, %v2135
        %vm2151 = vcmp.ge.s32.totalorder %v2125, %v2135
        %vm2152 = vcmp.ge.s32.totalorder %v2126, %v2135
        %vm2153 = vcmp.ge.s32.totalorder %v2127, %v2135
        %vm2154 = vcmp.ge.s32.totalorder %v2128, %v2135
        %vm2155 = vcmp.ge.s32.totalorder %v2129, %v2135
        %v2156 = vstv %s2134
        %vm2157 = vcmp.lt.s32.totalorder %v2110, %v2156
        %vm2158 = vcmp.lt.s32.totalorder %v2111, %v2156
        %vm2159 = vcmp.lt.s32.totalorder %v2112, %v2156
        %vm2160 = vcmp.lt.s32.totalorder %v2113, %v2156
        %vm2161 = vcmp.lt.s32.totalorder %v2114, %v2156
        %vm2162 = vcmp.lt.s32.totalorder %v2115, %v2156
        %vm2163 = vcmp.lt.s32.totalorder %v2116, %v2156
        %vm2164 = vcmp.lt.s32.totalorder %v2117, %v2156
        %vm2165 = vcmp.lt.s32.totalorder %v2118, %v2156
        %vm2166 = vcmp.lt.s32.totalorder %v2119, %v2156
        %vm2167 = vcmp.lt.s32.totalorder %v2120, %v2156
        %vm2168 = vcmp.lt.s32.totalorder %v2121, %v2156
        %vm2169 = vcmp.lt.s32.totalorder %v2122, %v2156
        %vm2170 = vcmp.lt.s32.totalorder %v2123, %v2156
        %vm2171 = vcmp.lt.s32.totalorder %v2124, %v2156
        %vm2172 = vcmp.lt.s32.totalorder %v2125, %v2156
        %vm2173 = vcmp.lt.s32.totalorder %v2126, %v2156
        %vm2174 = vcmp.lt.s32.totalorder %v2127, %v2156
        %vm2175 = vcmp.lt.s32.totalorder %v2128, %v2156
        %vm2176 = vcmp.lt.s32.totalorder %v2129, %v2156
        %vm2177 = vmand %vm2136, %vm2157
        %vm2178 = vmand %vm2137, %vm2158
        %vm2179 = vmand %vm2138, %vm2159
        %vm2180 = vmand %vm2139, %vm2160
        %vm2181 = vmand %vm2140, %vm2161
        %vm2182 = vmand %vm2141, %vm2162
        %vm2183 = vmand %vm2142, %vm2163
        %vm2184 = vmand %vm2143, %vm2164
        %vm2185 = vmand %vm2144, %vm2165
        %vm2186 = vmand %vm2145, %vm2166
        %vm2187 = vmand %vm2146, %vm2167
        %vm2188 = vmand %vm2147, %vm2168
        %vm2189 = vmand %vm2148, %vm2169
        %vm2190 = vmand %vm2149, %vm2170
        %vm2191 = vmand %vm2150, %vm2171
        %vm2192 = vmand %vm2151, %vm2172
        %vm2193 = vmand %vm2152, %vm2173
        %vm2194 = vmand %vm2153, %vm2174
        %vm2195 = vmand %vm2154, %vm2175
        %vm2196 = vmand %vm2155, %vm2176
        %v2197 = vsel %vm2177, 1, 0
        %v2198 = vsel %vm2178, 1, 0
        %v2199 = vsel %vm2179, 1, 0
        %v2200 = vsel %vm2180, 1, 0
        %v2201 = vsel %vm2181, 1, 0
        %v2202 = vsel %vm2182, 1, 0
        %v2203 = vsel %vm2183, 1, 0
        %v2204 = vsel %vm2184, 1, 0
        %v2205 = vsel %vm2185, 1, 0
        %v2206 = vsel %vm2186, 1, 0
        %v2207 = vsel %vm2187, 1, 0
        %v2208 = vsel %vm2188, 1, 0
        %v2209 = vsel %vm2189, 1, 0
        %v2210 = vsel %vm2190, 1, 0
        %v2211 = vsel %vm2191, 1, 0
        %v2212 = vsel %vm2192, 1, 0
        %v2213 = vsel %vm2193, 1, 0
        %v2214 = vsel %vm2194, 1, 0
        %v2215 = vsel %vm2195, 1, 0
        %v2216 = vsel %vm2196, 1, 0
        %vm2217 = vcmp.eq.s32.totalorder %v2197, 1
        %vm2218 = vcmp.eq.s32.totalorder %v2198, 1
        %vm2219 = vcmp.eq.s32.totalorder %v2199, 1
        %vm2220 = vcmp.eq.s32.totalorder %v2200, 1
        %vm2221 = vcmp.eq.s32.totalorder %v2201, 1
        %vm2222 = vcmp.eq.s32.totalorder %v2202, 1
        %vm2223 = vcmp.eq.s32.totalorder %v2203, 1
        %vm2224 = vcmp.eq.s32.totalorder %v2204, 1
        %vm2225 = vcmp.eq.s32.totalorder %v2205, 1
        %vm2226 = vcmp.eq.s32.totalorder %v2206, 1
        %vm2227 = vcmp.eq.s32.totalorder %v2207, 1
        %vm2228 = vcmp.eq.s32.totalorder %v2208, 1
        %vm2229 = vcmp.eq.s32.totalorder %v2209, 1
        %vm2230 = vcmp.eq.s32.totalorder %v2210, 1
        %vm2231 = vcmp.eq.s32.totalorder %v2211, 1
        %vm2232 = vcmp.eq.s32.totalorder %v2212, 1
        %vm2233 = vcmp.eq.s32.totalorder %v2213, 1
        %vm2234 = vcmp.eq.s32.totalorder %v2214, 1
        %vm2235 = vcmp.eq.s32.totalorder %v2215, 1
        %vm2236 = vcmp.eq.s32.totalorder %v2216, 1
        %v2237 = vsel %vm2217, %v2089, 0.0
        %v2238 = vsel %vm2218, %v2090, 0.0
        %v2239 = vsel %vm2219, %v2091, 0.0
        %v2240 = vsel %vm2220, %v2092, 0.0
        %v2241 = vsel %vm2221, %v2093, 0.0
        %v2242 = vsel %vm2222, %v2094, 0.0
        %v2243 = vsel %vm2223, %v2095, 0.0
        %v2244 = vsel %vm2224, %v2096, 0.0
        %v2245 = vsel %vm2225, %v2097, 0.0
        %v2246 = vsel %vm2226, %v2098, 0.0
        %v2247 = vsel %vm2227, %v2099, 0.0
        %v2248 = vsel %vm2228, %v2100, 0.0
        %v2249 = vsel %vm2229, %v2101, 0.0
        %v2250 = vsel %vm2230, %v2102, 0.0
        %v2251 = vsel %vm2231, %v2103, 0.0
        %v2252 = vsel %vm2232, %v2104, 0.0
        %v2253 = vsel %vm2233, %v2105, 0.0
        %v2254 = vsel %vm2234, %v2106, 0.0
        %v2255 = vsel %vm2235, %v2107, 0.0
        %v2256 = vsel %vm2236, %v2108, 0.0
        %v2257 = vpack.c.bf16 %v2238, %v2237
        %v2258 = vpack.c.bf16 %v2240, %v2239
        %v2259 = vpack.c.bf16 %v2242, %v2241
        %v2260 = vpack.c.bf16 %v2244, %v2243
        %v2261 = vpack.c.bf16 %v2246, %v2245
        %v2262 = vpack.c.bf16 %v2248, %v2247
        %v2263 = vpack.c.bf16 %v2250, %v2249
        %v2264 = vpack.c.bf16 %v2252, %v2251
        %v2265 = vpack.c.bf16 %v2254, %v2253
        %v2266 = vpack.c.bf16 %v2256, %v2255
        %v2268 = vshrl.u32 %v2257, 16
        %v2270 = vrot.slane %v2268, 7
        %v2271 = vshll.u32 %v2257, 16
        %v2273 = vor.u32 %v2270, %v2271
        %v2275 = vshrl.u32 %v2258, 16
        %v2277 = vrot.slane %v2275, 7
        %v2278 = vshll.u32 %v2258, 16
        %v2280 = vor.u32 %v2277, %v2278
        %v2282 = vshrl.u32 %v2259, 16
        %v2284 = vrot.slane %v2282, 7
        %v2285 = vshll.u32 %v2259, 16
        %v2287 = vor.u32 %v2284, %v2285
        %v2289 = vshrl.u32 %v2260, 16
        %v2291 = vrot.slane %v2289, 7
        %v2292 = vshll.u32 %v2260, 16
        %v2294 = vor.u32 %v2291, %v2292
        %v2296 = vshrl.u32 %v2261, 16
        %v2298 = vrot.slane %v2296, 7
        %v2299 = vshll.u32 %v2261, 16
        %v2301 = vor.u32 %v2298, %v2299
        %v2303 = vshrl.u32 %v2262, 16
        %v2305 = vrot.slane %v2303, 7
        %v2306 = vshll.u32 %v2262, 16
        %v2308 = vor.u32 %v2305, %v2306
        %v2310 = vshrl.u32 %v2263, 16
        %v2312 = vrot.slane %v2310, 7
        %v2313 = vshll.u32 %v2263, 16
        %v2315 = vor.u32 %v2312, %v2313
        %v2317 = vshrl.u32 %v2264, 16
        %v2319 = vrot.slane %v2317, 7
        %v2320 = vshll.u32 %v2264, 16
        %v2322 = vor.u32 %v2319, %v2320
        %v2324 = vshrl.u32 %v2265, 16
        %v2326 = vrot.slane %v2324, 7
        %v2327 = vshll.u32 %v2265, 16
        %v2329 = vor.u32 %v2326, %v2327
        %v2331 = vshrl.u32 %v2266, 16
        %v2333 = vrot.slane %v2331, 7
        %v2334 = vshll.u32 %v2266, 16
        %v2336 = vor.u32 %v2333, %v2334
        %v2357 = vsel %vm531, 0, %v2273
        %v2358 = vsel %vm531, 0, %v2280
        %v2359 = vsel %vm531, 0, %v2287
        %v2360 = vsel %vm531, 0, %v2294
        %v2361 = vsel %vm531, 0, %v2301
        %v2362 = vsel %vm531, 0, %v2308
        %v2363 = vsel %vm531, 0, %v2315
        %v2364 = vsel %vm531, 0, %v2322
        %v2365 = vsel %vm531, 0, %v2329
        %v2366 = vsel %vm531, 0, %v2336
        %v2367 = vsel %vm531, %v2270, 0
        %v2368 = vsel %vm531, %v2277, 0
        %v2369 = vsel %vm531, %v2284, 0
        %v2370 = vsel %vm531, %v2291, 0
        %v2371 = vsel %vm531, %v2298, 0
        %v2372 = vsel %vm531, %v2305, 0
        %v2373 = vsel %vm531, %v2312, 0
        %v2374 = vsel %vm531, %v2319, 0
        %v2375 = vsel %vm531, %v2326, 0
        %v2376 = vsel %vm531, %v2333, 0
        %v2378 = vshrl.u32 %v2357, 16
        %v2380 = vshll.u32 %v2357, 16
        %v2382 = vrot.slane %v2380, 1
        %v2383 = vor.u32 %v2378, %v2382
        %v2385 = vshll.u32 %v2367, 16
        %v2387 = vrot.slane %v2385, 1
        %v2388 = vsel %vm556, %v2383, %v2387
        %v2390 = vshrl.u32 %v2358, 16
        %v2392 = vshll.u32 %v2358, 16
        %v2394 = vrot.slane %v2392, 1
        %v2395 = vor.u32 %v2390, %v2394
        %v2397 = vshll.u32 %v2368, 16
        %v2399 = vrot.slane %v2397, 1
        %v2400 = vsel %vm556, %v2395, %v2399
        %v2402 = vshrl.u32 %v2359, 16
        %v2404 = vshll.u32 %v2359, 16
        %v2406 = vrot.slane %v2404, 1
        %v2407 = vor.u32 %v2402, %v2406
        %v2409 = vshll.u32 %v2369, 16
        %v2411 = vrot.slane %v2409, 1
        %v2412 = vsel %vm556, %v2407, %v2411
        %v2414 = vshrl.u32 %v2360, 16
        %v2416 = vshll.u32 %v2360, 16
        %v2418 = vrot.slane %v2416, 1
        %v2419 = vor.u32 %v2414, %v2418
        %v2421 = vshll.u32 %v2370, 16
        %v2423 = vrot.slane %v2421, 1
        %v2424 = vsel %vm556, %v2419, %v2423
        %v2426 = vshrl.u32 %v2361, 16
        %v2428 = vshll.u32 %v2361, 16
        %v2430 = vrot.slane %v2428, 1
        %v2431 = vor.u32 %v2426, %v2430
        %v2433 = vshll.u32 %v2371, 16
        %v2435 = vrot.slane %v2433, 1
        %v2436 = vsel %vm556, %v2431, %v2435
        %v2438 = vshrl.u32 %v2362, 16
        %v2440 = vshll.u32 %v2362, 16
        %v2442 = vrot.slane %v2440, 1
        %v2443 = vor.u32 %v2438, %v2442
        %v2445 = vshll.u32 %v2372, 16
        %v2447 = vrot.slane %v2445, 1
        %v2448 = vsel %vm556, %v2443, %v2447
        %v2450 = vshrl.u32 %v2363, 16
        %v2452 = vshll.u32 %v2363, 16
        %v2454 = vrot.slane %v2452, 1
        %v2455 = vor.u32 %v2450, %v2454
        %v2457 = vshll.u32 %v2373, 16
        %v2459 = vrot.slane %v2457, 1
        %v2460 = vsel %vm556, %v2455, %v2459
        %v2462 = vshrl.u32 %v2364, 16
        %v2464 = vshll.u32 %v2364, 16
        %v2466 = vrot.slane %v2464, 1
        %v2467 = vor.u32 %v2462, %v2466
        %v2469 = vshll.u32 %v2374, 16
        %v2471 = vrot.slane %v2469, 1
        %v2472 = vsel %vm556, %v2467, %v2471
        %v2474 = vshrl.u32 %v2365, 16
        %v2476 = vshll.u32 %v2365, 16
        %v2478 = vrot.slane %v2476, 1
        %v2479 = vor.u32 %v2474, %v2478
        %v2481 = vshll.u32 %v2375, 16
        %v2483 = vrot.slane %v2481, 1
        %v2484 = vsel %vm556, %v2479, %v2483
        %v2486 = vshrl.u32 %v2366, 16
        %v2488 = vshll.u32 %v2366, 16
        %v2490 = vrot.slane %v2488, 1
        %v2491 = vor.u32 %v2486, %v2490
        %v2493 = vshll.u32 %v2376, 16
        %v2495 = vrot.slane %v2493, 1
        %v2496 = vsel %vm556, %v2491, %v2495
        %v2527 = vrot.slane %v2357, 1
        %v2528 = vrot.slane %v2367, 1
        %v2529 = vsel %vm737, %v2527, %v2528
        %v2530 = vrot.slane %v2358, 1
        %v2531 = vrot.slane %v2368, 1
        %v2532 = vsel %vm737, %v2530, %v2531
        %v2533 = vrot.slane %v2359, 1
        %v2534 = vrot.slane %v2369, 1
        %v2535 = vsel %vm737, %v2533, %v2534
        %v2536 = vrot.slane %v2360, 1
        %v2537 = vrot.slane %v2370, 1
        %v2538 = vsel %vm737, %v2536, %v2537
        %v2539 = vrot.slane %v2361, 1
        %v2540 = vrot.slane %v2371, 1
        %v2541 = vsel %vm737, %v2539, %v2540
        %v2542 = vrot.slane %v2362, 1
        %v2543 = vrot.slane %v2372, 1
        %v2544 = vsel %vm737, %v2542, %v2543
        %v2545 = vrot.slane %v2363, 1
        %v2546 = vrot.slane %v2373, 1
        %v2547 = vsel %vm737, %v2545, %v2546
        %v2548 = vrot.slane %v2364, 1
        %v2549 = vrot.slane %v2374, 1
        %v2550 = vsel %vm737, %v2548, %v2549
        %v2551 = vrot.slane %v2365, 1
        %v2552 = vrot.slane %v2375, 1
        %v2553 = vsel %vm737, %v2551, %v2552
        %v2554 = vrot.slane %v2366, 1
        %v2555 = vrot.slane %v2376, 1
        %v2556 = vsel %vm737, %v2554, %v2555
        %v2567 = vld [vmem:[#allocation8] sm:$0xf]
        %v2568 = vld [vmem:[#allocation8 + $0x4] sm:$0xf]
        %v2569 = vld [vmem:[#allocation8 + $0x8] sm:$0xf]
        %v2570 = vld [vmem:[#allocation8 + $0xc] sm:$0xf]
        %v2571 = vld [vmem:[#allocation8 + $0x10] sm:$0xf]
        %v2572 = vld [vmem:[#allocation8 + $0x14] sm:$0xf]
        %v2573 = vld [vmem:[#allocation8 + $0x18] sm:$0xf]
        %v2574 = vld [vmem:[#allocation8 + $0x1c] sm:$0xf]
        %v2575 = vld [vmem:[#allocation8 + $0x20] sm:$0xf]
        %v2576 = vld [vmem:[#allocation8 + $0x24] sm:$0xf]
        %v2577 = vld [vmem:[#allocation8 + $0x28] sm:$0xf]
        %v2578 = vld [vmem:[#allocation8 + $0x2c] sm:$0xf]
        %v2579 = vld [vmem:[#allocation8 + $0x30] sm:$0xf]
        %v2580 = vld [vmem:[#allocation8 + $0x34] sm:$0xf]
        %v2581 = vld [vmem:[#allocation8 + $0x38] sm:$0xf]
        %v2582 = vld [vmem:[#allocation8 + $0x3c] sm:$0xf]
        %v2583 = vld [vmem:[#allocation8 + $0x40] sm:$0xf]
        %v2584 = vld [vmem:[#allocation8 + $0x44] sm:$0xf]
        %v2585 = vld [vmem:[#allocation8 + $0x48] sm:$0xf]
        %v2586 = vld [vmem:[#allocation8 + $0x4c] sm:$0xf]
        %v2587 = vld [vmem:[#allocation8 + $0x50] sm:$0xf]
        %v2588 = vld [vmem:[#allocation8 + $0x54] sm:$0xf]
        %v2589 = vld [vmem:[#allocation8 + $0x58] sm:$0xf]
        %v2590 = vld [vmem:[#allocation8 + $0x5c] sm:$0xf]
        %v2591 = vld [vmem:[#allocation8 + $0x60] sm:$0xf]
        %v2592 = vld [vmem:[#allocation8 + $0x64] sm:$0xf]
        %v2593 = vld [vmem:[#allocation8 + $0x68] sm:$0xf]
        %v2594 = vld [vmem:[#allocation8 + $0x6c] sm:$0xf]
        %v2595 = vld [vmem:[#allocation8 + $0x70] sm:$0xf]
        %v2596 = vld [vmem:[#allocation8 + $0x74] sm:$0xf]
        %v2597 = vld [vmem:[#allocation8 + $0x78] sm:$0xf]
        %v2598 = vld [vmem:[#allocation8 + $0x7c] sm:$0xf]
        %v2599 = vld [vmem:[#allocation8 + $0x80] sm:$0xf]
        %v2600 = vld [vmem:[#allocation8 + $0x84] sm:$0xf]
        %v2601 = vld [vmem:[#allocation8 + $0x88] sm:$0xf]
        %v2602 = vld [vmem:[#allocation8 + $0x8c] sm:$0xf]
        %v2603 = vld [vmem:[#allocation8 + $0x90] sm:$0xf]
        %v2604 = vld [vmem:[#allocation8 + $0x94] sm:$0xf]
        %v2605 = vld [vmem:[#allocation8 + $0x98] sm:$0xf]
        %v2606 = vld [vmem:[#allocation8 + $0x9c] sm:$0xf]
        %v2607 = vld [vmem:[#allocation8 + $0xa0] sm:$0xf]
        %v2608 = vld [vmem:[#allocation8 + $0xa4] sm:$0xf]
        %v2609 = vld [vmem:[#allocation8 + $0xa8] sm:$0xf]
        %v2610 = vld [vmem:[#allocation8 + $0xac] sm:$0xf]
        %v2611 = vld [vmem:[#allocation8 + $0xb0] sm:$0xf]
        %v2612 = vld [vmem:[#allocation8 + $0xb4] sm:$0xf]
        %v2613 = vld [vmem:[#allocation8 + $0xb8] sm:$0xf]
        %v2614 = vld [vmem:[#allocation8 + $0xbc] sm:$0xf]
        %s2615 = scalar_lea.vmem [#allocation8], 192
        %v2616 = vld [vmem:[%s2615] sm:$0xf]
        %v2617 = vld [vmem:[%s2615 + $0x4] sm:$0xf]
        %v2618 = vld [vmem:[%s2615 + $0x8] sm:$0xf]
        %v2619 = vld [vmem:[%s2615 + $0xc] sm:$0xf]
        %v2620 = vld [vmem:[%s2615 + $0x10] sm:$0xf]
        %v2621 = vld [vmem:[%s2615 + $0x14] sm:$0xf]
        %v2622 = vld [vmem:[%s2615 + $0x18] sm:$0xf]
        %v2623 = vld [vmem:[%s2615 + $0x1c] sm:$0xf]
        %v2624 = vld [vmem:[%s2615 + $0x20] sm:$0xf]
        %v2625 = vld [vmem:[%s2615 + $0x24] sm:$0xf]
        %v2626 = vld [vmem:[%s2615 + $0x28] sm:$0xf]
        %v2627 = vld [vmem:[%s2615 + $0x2c] sm:$0xf]
        %v2628 = vld [vmem:[%s2615 + $0x30] sm:$0xf]
        %v2629 = vld [vmem:[%s2615 + $0x34] sm:$0xf]
        %v2630 = vld [vmem:[%s2615 + $0x38] sm:$0xf]
        %v2631 = vld [vmem:[%s2615 + $0x3c] sm:$0xf]
        %v2632 = vld [vmem:[%s2615 + $0x40] sm:$0xf]
        %v2633 = vld [vmem:[%s2615 + $0x44] sm:$0xf]
        %v2634 = vld [vmem:[%s2615 + $0x48] sm:$0xf]
        %v2635 = vld [vmem:[%s2615 + $0x4c] sm:$0xf]
        %v2636 = vld [vmem:[%s2615 + $0x50] sm:$0xf]
        %v2637 = vld [vmem:[%s2615 + $0x54] sm:$0xf]
        %v2638 = vld [vmem:[%s2615 + $0x58] sm:$0xf]
        %v2639 = vld [vmem:[%s2615 + $0x5c] sm:$0xf]
        %v2640 = vld [vmem:[%s2615 + $0x60] sm:$0xf]
        %v2641 = vld [vmem:[%s2615 + $0x64] sm:$0xf]
        %v2642 = vld [vmem:[%s2615 + $0x68] sm:$0xf]
        %v2643 = vld [vmem:[%s2615 + $0x6c] sm:$0xf]
        %v2644 = vld [vmem:[%s2615 + $0x70] sm:$0xf]
        %v2645 = vld [vmem:[%s2615 + $0x74] sm:$0xf]
        %v2646 = vld [vmem:[%s2615 + $0x78] sm:$0xf]
        %v2647 = vld [vmem:[%s2615 + $0x7c] sm:$0xf]
        %v2648 = vld [vmem:[%s2615 + $0x80] sm:$0xf]
        %v2649 = vld [vmem:[%s2615 + $0x84] sm:$0xf]
        %v2650 = vld [vmem:[%s2615 + $0x88] sm:$0xf]
        %v2651 = vld [vmem:[%s2615 + $0x8c] sm:$0xf]
        %v2652 = vld [vmem:[%s2615 + $0x90] sm:$0xf]
        %v2653 = vld [vmem:[%s2615 + $0x94] sm:$0xf]
        %v2654 = vld [vmem:[%s2615 + $0x98] sm:$0xf]
        %v2655 = vld [vmem:[%s2615 + $0x9c] sm:$0xf]
        %v2656 = vld [vmem:[%s2615 + $0xa0] sm:$0xf]
        %v2657 = vld [vmem:[%s2615 + $0xa4] sm:$0xf]
        %v2658 = vld [vmem:[%s2615 + $0xa8] sm:$0xf]
        %v2659 = vld [vmem:[%s2615 + $0xac] sm:$0xf]
        %v2660 = vld [vmem:[%s2615 + $0xb0] sm:$0xf]
        %v2661 = vld [vmem:[%s2615 + $0xb4] sm:$0xf]
        %v2662 = vld [vmem:[%s2615 + $0xb8] sm:$0xf]
        %v2663 = vld [vmem:[%s2615 + $0xbc] sm:$0xf]
        %v2712 = vunpack.c.l.b16 %v2616
        %v2713 = vunpack.c.l.b16 %v2617
        %v2714 = vunpack.c.l.b16 %v2618
        %v2715 = vunpack.c.l.b16 %v2619
        %v2716 = vunpack.c.l.b16 %v2620
        %v2717 = vunpack.c.l.b16 %v2621
        %v2718 = vunpack.c.l.b16 %v2622
        %v2719 = vunpack.c.l.b16 %v2623
        %v2720 = vunpack.c.l.b16 %v2624
        %v2721 = vunpack.c.l.b16 %v2625
        %v2722 = vunpack.c.l.b16 %v2626
        %v2723 = vunpack.c.l.b16 %v2627
        %v2724 = vunpack.c.l.b16 %v2628
        %v2725 = vunpack.c.l.b16 %v2629
        %v2726 = vunpack.c.l.b16 %v2630
        %v2727 = vunpack.c.l.b16 %v2631
        %v2728 = vunpack.c.l.b16 %v2632
        %v2729 = vunpack.c.l.b16 %v2633
        %v2730 = vunpack.c.l.b16 %v2634
        %v2731 = vunpack.c.l.b16 %v2635
        %v2732 = vunpack.c.l.b16 %v2636
        %v2733 = vunpack.c.l.b16 %v2637
        %v2734 = vunpack.c.l.b16 %v2638
        %v2735 = vunpack.c.l.b16 %v2639
        %v2736 = vunpack.c.l.b16 %v2640
        %v2737 = vunpack.c.l.b16 %v2641
        %v2738 = vunpack.c.l.b16 %v2642
        %v2739 = vunpack.c.l.b16 %v2643
        %v2740 = vunpack.c.l.b16 %v2644
        %v2741 = vunpack.c.l.b16 %v2645
        %v2742 = vunpack.c.l.b16 %v2646
        %v2743 = vunpack.c.l.b16 %v2647
        %v2744 = vunpack.c.l.b16 %v2648
        %v2745 = vunpack.c.l.b16 %v2649
        %v2746 = vunpack.c.l.b16 %v2650
        %v2747 = vunpack.c.l.b16 %v2651
        %v2748 = vunpack.c.l.b16 %v2652
        %v2749 = vunpack.c.l.b16 %v2653
        %v2750 = vunpack.c.l.b16 %v2654
        %v2751 = vunpack.c.l.b16 %v2655
        %v2752 = vunpack.c.l.b16 %v2656
        %v2753 = vunpack.c.l.b16 %v2657
        %v2754 = vunpack.c.l.b16 %v2658
        %v2755 = vunpack.c.l.b16 %v2659
        %v2756 = vunpack.c.l.b16 %v2660
        %v2757 = vunpack.c.l.b16 %v2661
        %v2758 = vunpack.c.l.b16 %v2662
        %v2759 = vunpack.c.l.b16 %v2663
        %v2760 = vpack.c.b16 %v2713, %v2712
        %v2761 = vpack.c.b16 %v2715, %v2714
        %v2762 = vpack.c.b16 %v2717, %v2716
        %v2763 = vpack.c.b16 %v2719, %v2718
        %v2764 = vpack.c.b16 %v2721, %v2720
        %v2765 = vpack.c.b16 %v2723, %v2722
        %v2766 = vpack.c.b16 %v2725, %v2724
        %v2767 = vpack.c.b16 %v2727, %v2726
        %v2768 = vpack.c.b16 %v2729, %v2728
        %v2769 = vpack.c.b16 %v2731, %v2730
        %v2770 = vpack.c.b16 %v2733, %v2732
        %v2771 = vpack.c.b16 %v2735, %v2734
        %v2772 = vpack.c.b16 %v2737, %v2736
        %v2773 = vpack.c.b16 %v2739, %v2738
        %v2774 = vpack.c.b16 %v2741, %v2740
        %v2775 = vpack.c.b16 %v2743, %v2742
        %v2776 = vpack.c.b16 %v2745, %v2744
        %v2777 = vpack.c.b16 %v2747, %v2746
        %v2778 = vpack.c.b16 %v2749, %v2748
        %v2779 = vpack.c.b16 %v2751, %v2750
        %v2780 = vpack.c.b16 %v2753, %v2752
        %v2781 = vpack.c.b16 %v2755, %v2754
        %v2782 = vpack.c.b16 %v2757, %v2756
        %v2783 = vpack.c.b16 %v2759, %v2758
        %2808 = vmatprep.subr.bf16.mxu0 0
        %2809 = vmatpush1.bf16.msra.mxu0 %v2760
        %2810 = vmatprep.subr.bf16.mxu0 0
        %2811 = vmatpush1.bf16.msra.mxu0 %v2761
        %2812 = vmatprep.subr.bf16.mxu0 0
        %2813 = vmatpush1.bf16.msra.mxu0 %v2762
        %2814 = vmatprep.subr.bf16.mxu0 0
        %2815 = vmatpush1.bf16.msra.mxu0 %v2763
        %2816 = vmatprep.subr.bf16.mxu0 0
        %2817 = vmatpush1.bf16.msra.mxu0 %v2764
        %2818 = vmatprep.subr.bf16.mxu0 0
        %2819 = vmatpush1.bf16.msra.mxu0 %v2765
        %2820 = vmatprep.subr.bf16.mxu0 0
        %2821 = vmatpush1.bf16.msra.mxu0 %v2766
        %2822 = vmatprep.subr.bf16.mxu0 0
        %2823 = vmatpush1.bf16.msra.mxu0 %v2767
        %2824 = vmatprep.subr.bf16.mxu0 0
        %2825 = vmatpush1.bf16.msra.mxu0 %v2768
        %2826 = vmatprep.subr.bf16.mxu0 0
        %2827 = vmatpush1.bf16.msra.mxu0 %v2769
        %2828 = vmatprep.subr.bf16.mxu0 0
        %2829 = vmatpush1.bf16.msra.mxu0 %v2770
        %2830 = vmatprep.subr.bf16.mxu0 0
        %2831 = vmatpush1.bf16.msra.mxu0 %v2771
        %2832 = vmatprep.subr.bf16.mxu0 0
        %2833 = vmatpush1.bf16.msra.mxu0 %v2772
        %2834 = vmatprep.subr.bf16.mxu0 0
        %2835 = vmatpush1.bf16.msra.mxu0 %v2773
        %2836 = vmatprep.subr.bf16.mxu0 0
        %2837 = vmatpush1.bf16.msra.mxu0 %v2774
        %2838 = vmatprep.subr.bf16.mxu0 0
        %2839 = vmatpush1.bf16.msra.mxu0 %v2775
        %2840 = vmatprep.mubr.bf16.mxu0 %v2400
        %2841 = vmatmul.mubr.bf16.gmra.mrb[0].mxu0 %v2358
        %v2842 = vpop.f32.mrb[0].mxu0
        %v2843 = vadd.f32 0.0, %v2842
        %v2844 = vpop.f32.mrb[0].mxu0
        %v2845 = vpop.f32.mrb[0].mxu0
        %v2846 = vadd.f32 0.0, %v2845
        %v2847 = vpop.f32.mrb[0].mxu0
        %2848 = vmatprep.mubr.bf16.mxu0 %v2412
        %2849 = vmatmul.mubr.bf16.gmra.mrb[0].mxu0 %v2359
        %v2850 = vpop.f32.mrb[0].mxu0
        %v2851 = vadd.f32 0.0, %v2850
        %v2852 = vpop.f32.mrb[0].mxu0
        %v2853 = vpop.f32.mrb[0].mxu0
        %v2854 = vadd.f32 0.0, %v2853
        %v2855 = vpop.f32.mrb[0].mxu0
        %2856 = vmatprep.mubr.bf16.mxu0 %v2424
        %2857 = vmatmul.mubr.bf16.gmra.mrb[0].mxu0 %v2360
        %v2858 = vpop.f32.mrb[0].mxu0
        %v2859 = vadd.f32 0.0, %v2858
        %v2860 = vpop.f32.mrb[0].mxu0
        %v2861 = vpop.f32.mrb[0].mxu0
        %v2862 = vadd.f32 0.0, %v2861
        %v2863 = vpop.f32.mrb[0].mxu0
        %2864 = vmatprep.mubr.bf16.mxu0 %v2436
        %2865 = vmatmul.mubr.bf16.gmra.mrb[0].mxu0 %v2361
        %v2866 = vpop.f32.mrb[0].mxu0
        %v2867 = vadd.f32 0.0, %v2866
        %v2868 = vpop.f32.mrb[0].mxu0
        %v2869 = vpop.f32.mrb[0].mxu0
        %v2870 = vadd.f32 0.0, %v2869
        %v2871 = vpop.f32.mrb[0].mxu0
        %2872 = vmatprep.mubr.bf16.mxu0 %v2448
        %2873 = vmatmul.mubr.bf16.gmra.mrb[0].mxu0 %v2362
        %v2874 = vpop.f32.mrb[0].mxu0
        %v2875 = vadd.f32 0.0, %v2874
        %v2876 = vpop.f32.mrb[0].mxu0
        %v2877 = vpop.f32.mrb[0].mxu0
        %v2878 = vadd.f32 0.0, %v2877
        %v2879 = vpop.f32.mrb[0].mxu0
        %2880 = vmatprep.mubr.bf16.mxu0 %v2460
        %2881 = vmatmul.mubr.bf16.gmra.mrb[0].mxu0 %v2363
        %v2882 = vpop.f32.mrb[0].mxu0
        %v2883 = vadd.f32 0.0, %v2882
        %v2884 = vpop.f32.mrb[0].mxu0
        %v2885 = vpop.f32.mrb[0].mxu0
        %v2886 = vadd.f32 0.0, %v2885
        %v2887 = vpop.f32.mrb[0].mxu0
        %2888 = vmatprep.mubr.bf16.mxu0 %v2472
        %2889 = vmatmul.mubr.bf16.gmra.mrb[0].mxu0 %v2364
        %v2890 = vpop.f32.mrb[0].mxu0
        %v2891 = vadd.f32 0.0, %v2890
        %v2892 = vpop.f32.mrb[0].mxu0
        %v2893 = vpop.f32.mrb[0].mxu0
        %v2894 = vadd.f32 0.0, %v2893
        %v2895 = vpop.f32.mrb[0].mxu0
        %2896 = vmatprep.mubr.bf16.mxu0 %v2484
        %2897 = vmatmul.mubr.bf16.gmra.mrb[0].mxu0 %v2365
        %v2898 = vpop.f32.mrb[0].mxu0
        %v2899 = vadd.f32 0.0, %v2898
        %v2900 = vpop.f32.mrb[0].mxu0
        %v2901 = vpop.f32.mrb[0].mxu0
        %v2902 = vadd.f32 0.0, %v2901
        %v2903 = vpop.f32.mrb[0].mxu0
        %2904 = vdwg.mxu0
        %2905 = vmatprep.subr.bf16.mxu0 0
        %2906 = vmatpush1.bf16.msra.mxu0 %v2776
        %2907 = vmatprep.subr.bf16.mxu0 0
        %2908 = vmatpush1.bf16.msra.mxu0 %v2777
        %2909 = vmatprep.subr.bf16.mxu0 0
        %2910 = vmatpush1.bf16.msra.mxu0 %v2778
        %2911 = vmatprep.subr.bf16.mxu0 0
        %2912 = vmatpush1.bf16.msra.mxu0 %v2779
        %2913 = vmatprep.subr.bf16.mxu0 0
        %2914 = vmatpush1.bf16.msra.mxu0 %v2780
        %2915 = vmatprep.subr.bf16.mxu0 0
        %2916 = vmatpush1.bf16.msra.mxu0 %v2781
        %2917 = vmatprep.subr.bf16.mxu0 0
        %2918 = vmatpush1.bf16.msra.mxu0 %v2782
        %2919 = vmatprep.subr.bf16.mxu0 0
        %2920 = vmatpush1.bf16.msra.mxu0 %v2783
        %2921 = vmatprep.subr.bf16.mxu0 0
        %2922 = vmatpush1.bf16.msra.mxu0 0
        %2923 = vmatprep.subr.bf16.mxu0 0
        %2924 = vmatpush1.bf16.msra.mxu0 0
        %2925 = vmatprep.subr.bf16.mxu0 0
        %2926 = vmatpush1.bf16.msra.mxu0 0
        %2927 = vmatprep.subr.bf16.mxu0 0
        %2928 = vmatpush1.bf16.msra.mxu0 0
        %2929 = vmatprep.subr.bf16.mxu0 0
        %2930 = vmatpush1.bf16.msra.mxu0 0
        %2931 = vmatprep.subr.bf16.mxu0 0
        %2932 = vmatpush1.bf16.msra.mxu0 0
        %2933 = vmatprep.subr.bf16.mxu0 0
        %2934 = vmatpush1.bf16.msra.mxu0 0
        %2935 = vmatprep.subr.bf16.mxu0 0
        %2936 = vmatpush1.bf16.msra.mxu0 0
        %2937 = vmatprep.mubr.bf16.mxu0 0
        %2938 = vmatmul.mubr.bf16.gmra.mrb[0].mxu0 %v2532
        %v2939 = vpop.f32.mrb[0].mxu0
        %v2940 = vadd.f32 %v2843, %v2939
        %v2941 = vpop.f32.mrb[0].mxu0
        %v2942 = vpop.f32.mrb[0].mxu0
        %v2943 = vadd.f32 %v2846, %v2942
        %v2944 = vpop.f32.mrb[0].mxu0
        %2945 = vmatprep.mubr.bf16.mxu0 0
        %2946 = vmatmul.mubr.bf16.gmra.mrb[0].mxu0 %v2535
        %v2947 = vpop.f32.mrb[0].mxu0
        %v2948 = vadd.f32 %v2851, %v2947
        %v2949 = vpop.f32.mrb[0].mxu0
        %v2950 = vpop.f32.mrb[0].mxu0
        %v2951 = vadd.f32 %v2854, %v2950
        %v2952 = vpop.f32.mrb[0].mxu0
        %2953 = vmatprep.mubr.bf16.mxu0 0
        %2954 = vmatmul.mubr.bf16.gmra.mrb[0].mxu0 %v2538
        %v2955 = vpop.f32.mrb[0].mxu0
        %v2956 = vadd.f32 %v2859, %v2955
        %v2957 = vpop.f32.mrb[0].mxu0
        %v2958 = vpop.f32.mrb[0].mxu0
        %v2959 = vadd.f32 %v2862, %v2958
        %v2960 = vpop.f32.mrb[0].mxu0
        %2961 = vmatprep.mubr.bf16.mxu0 0
        %2962 = vmatmul.mubr.bf16.gmra.mrb[0].mxu0 %v2541
        %v2963 = vpop.f32.mrb[0].mxu0
        %v2964 = vadd.f32 %v2867, %v2963
        %v2965 = vpop.f32.mrb[0].mxu0
        %v2966 = vpop.f32.mrb[0].mxu0
        %v2967 = vadd.f32 %v2870, %v2966
        %v2968 = vpop.f32.mrb[0].mxu0
        %2969 = vmatprep.mubr.bf16.mxu0 0
        %2970 = vmatmul.mubr.bf16.gmra.mrb[0].mxu0 %v2544
        %v2971 = vpop.f32.mrb[0].mxu0
        %v2972 = vadd.f32 %v2875, %v2971
        %v2973 = vpop.f32.mrb[0].mxu0
        %v2974 = vpop.f32.mrb[0].mxu0
        %v2975 = vadd.f32 %v2878, %v2974
        %v2976 = vpop.f32.mrb[0].mxu0
        %2977 = vmatprep.mubr.bf16.mxu0 0
        %2978 = vmatmul.mubr.bf16.gmra.mrb[0].mxu0 %v2547
        %v2979 = vpop.f32.mrb[0].mxu0
        %v2980 = vadd.f32 %v2883, %v2979
        %v2981 = vpop.f32.mrb[0].mxu0
        %v2982 = vpop.f32.mrb[0].mxu0
        %v2983 = vadd.f32 %v2886, %v2982
        %v2984 = vpop.f32.mrb[0].mxu0
        %2985 = vmatprep.mubr.bf16.mxu0 0
        %2986 = vmatmul.mubr.bf16.gmra.mrb[0].mxu0 %v2550
        %v2987 = vpop.f32.mrb[0].mxu0
        %v2988 = vadd.f32 %v2891, %v2987
        %v2989 = vpop.f32.mrb[0].mxu0
        %v2990 = vpop.f32.mrb[0].mxu0
        %v2991 = vadd.f32 %v2894, %v2990
        %v2992 = vpop.f32.mrb[0].mxu0
        %2993 = vmatprep.mubr.bf16.mxu0 0
        %2994 = vmatmul.mubr.bf16.gmra.mrb[0].mxu0 %v2553
        %v2995 = vpop.f32.mrb[0].mxu0
        %v2996 = vadd.f32 %v2899, %v2995
        %v2997 = vpop.f32.mrb[0].mxu0
        %v2998 = vpop.f32.mrb[0].mxu0
        %v2999 = vadd.f32 %v2902, %v2998
        %v3000 = vpop.f32.mrb[0].mxu0
        %3001 = vdwg.mxu0
        %v3050 = vunpack.c.l.b16 %v2567
        %v3051 = vunpack.c.l.b16 %v2568
        %v3052 = vunpack.c.l.b16 %v2569
        %v3053 = vunpack.c.l.b16 %v2570
        %v3054 = vunpack.c.l.b16 %v2571
        %v3055 = vunpack.c.l.b16 %v2572
        %v3056 = vunpack.c.l.b16 %v2573
        %v3057 = vunpack.c.l.b16 %v2574
        %v3058 = vunpack.c.l.b16 %v2575
        %v3059 = vunpack.c.l.b16 %v2576
        %v3060 = vunpack.c.l.b16 %v2577
        %v3061 = vunpack.c.l.b16 %v2578
        %v3062 = vunpack.c.l.b16 %v2579
        %v3063 = vunpack.c.l.b16 %v2580
        %v3064 = vunpack.c.l.b16 %v2581
        %v3065 = vunpack.c.l.b16 %v2582
        %v3066 = vunpack.c.l.b16 %v2583
        %v3067 = vunpack.c.l.b16 %v2584
        %v3068 = vunpack.c.l.b16 %v2585
        %v3069 = vunpack.c.l.b16 %v2586
        %v3070 = vunpack.c.l.b16 %v2587
        %v3071 = vunpack.c.l.b16 %v2588
        %v3072 = vunpack.c.l.b16 %v2589
        %v3073 = vunpack.c.l.b16 %v2590
        %v3074 = vunpack.c.l.b16 %v2591
        %v3075 = vunpack.c.l.b16 %v2592
        %v3076 = vunpack.c.l.b16 %v2593
        %v3077 = vunpack.c.l.b16 %v2594
        %v3078 = vunpack.c.l.b16 %v2595
        %v3079 = vunpack.c.l.b16 %v2596
        %v3080 = vunpack.c.l.b16 %v2597
        %v3081 = vunpack.c.l.b16 %v2598
        %v3082 = vunpack.c.l.b16 %v2599
        %v3083 = vunpack.c.l.b16 %v2600
        %v3084 = vunpack.c.l.b16 %v2601
        %v3085 = vunpack.c.l.b16 %v2602
        %v3086 = vunpack.c.l.b16 %v2603
        %v3087 = vunpack.c.l.b16 %v2604
        %v3088 = vunpack.c.l.b16 %v2605
        %v3089 = vunpack.c.l.b16 %v2606
        %v3090 = vunpack.c.l.b16 %v2607
        %v3091 = vunpack.c.l.b16 %v2608
        %v3092 = vunpack.c.l.b16 %v2609
        %v3093 = vunpack.c.l.b16 %v2610
        %v3094 = vunpack.c.l.b16 %v2611
        %v3095 = vunpack.c.l.b16 %v2612
        %v3096 = vunpack.c.l.b16 %v2613
        %v3097 = vunpack.c.l.b16 %v2614
        %v3098 = vpack.c.b16 %v3051, %v3050
        %v3099 = vpack.c.b16 %v3053, %v3052
        %v3100 = vpack.c.b16 %v3055, %v3054
        %v3101 = vpack.c.b16 %v3057, %v3056
        %v3102 = vpack.c.b16 %v3059, %v3058
        %v3103 = vpack.c.b16 %v3061, %v3060
        %v3104 = vpack.c.b16 %v3063, %v3062
        %v3105 = vpack.c.b16 %v3065, %v3064
        %v3106 = vpack.c.b16 %v3067, %v3066
        %v3107 = vpack.c.b16 %v3069, %v3068
        %v3108 = vpack.c.b16 %v3071, %v3070
        %v3109 = vpack.c.b16 %v3073, %v3072
        %v3110 = vpack.c.b16 %v3075, %v3074
        %v3111 = vpack.c.b16 %v3077, %v3076
        %v3112 = vpack.c.b16 %v3079, %v3078
        %v3113 = vpack.c.b16 %v3081, %v3080
        %v3114 = vpack.c.b16 %v3083, %v3082
        %v3115 = vpack.c.b16 %v3085, %v3084
        %v3116 = vpack.c.b16 %v3087, %v3086
        %v3117 = vpack.c.b16 %v3089, %v3088
        %v3118 = vpack.c.b16 %v3091, %v3090
        %v3119 = vpack.c.b16 %v3093, %v3092
        %v3120 = vpack.c.b16 %v3095, %v3094
        %v3121 = vpack.c.b16 %v3097, %v3096
        %3146 = vmatprep.subr.bf16.mxu0 0
        %3147 = vmatpush1.bf16.msra.mxu0 %v3098
        %3148 = vmatprep.subr.bf16.mxu0 0
        %3149 = vmatpush1.bf16.msra.mxu0 %v3099
        %3150 = vmatprep.subr.bf16.mxu0 0
        %3151 = vmatpush1.bf16.msra.mxu0 %v3100
        %3152 = vmatprep.subr.bf16.mxu0 0
        %3153 = vmatpush1.bf16.msra.mxu0 %v3101
        %3154 = vmatprep.subr.bf16.mxu0 0
        %3155 = vmatpush1.bf16.msra.mxu0 %v3102
        %3156 = vmatprep.subr.bf16.mxu0 0
        %3157 = vmatpush1.bf16.msra.mxu0 %v3103
        %3158 = vmatprep.subr.bf16.mxu0 0
        %3159 = vmatpush1.bf16.msra.mxu0 %v3104
        %3160 = vmatprep.subr.bf16.mxu0 0
        %3161 = vmatpush1.bf16.msra.mxu0 %v3105
        %3162 = vmatprep.subr.bf16.mxu0 0
        %3163 = vmatpush1.bf16.msra.mxu0 %v3106
        %3164 = vmatprep.subr.bf16.mxu0 0
        %3165 = vmatpush1.bf16.msra.mxu0 %v3107
        %3166 = vmatprep.subr.bf16.mxu0 0
        %3167 = vmatpush1.bf16.msra.mxu0 %v3108
        %3168 = vmatprep.subr.bf16.mxu0 0
        %3169 = vmatpush1.bf16.msra.mxu0 %v3109
        %3170 = vmatprep.subr.bf16.mxu0 0
        %3171 = vmatpush1.bf16.msra.mxu0 %v3110
        %3172 = vmatprep.subr.bf16.mxu0 0
        %3173 = vmatpush1.bf16.msra.mxu0 %v3111
        %3174 = vmatprep.subr.bf16.mxu0 0
        %3175 = vmatpush1.bf16.msra.mxu0 %v3112
        %3176 = vmatprep.subr.bf16.mxu0 0
        %3177 = vmatpush1.bf16.msra.mxu0 %v3113
        %3178 = vmatprep.mubr.bf16.mxu0 %v2388
        %3179 = vmatmul.mubr.bf16.gmra.mrb[0].mxu0 %v2357
        %v3180 = vpop.f32.mrb[0].mxu0
        %v3181 = vadd.f32 %v2940, %v3180
        %v3182 = vpop.f32.mrb[0].mxu0
        %v3183 = vpop.f32.mrb[0].mxu0
        %v3184 = vadd.f32 %v2943, %v3183
        %v3185 = vpop.f32.mrb[0].mxu0
        %3186 = vmatprep.mubr.bf16.mxu0 %v2400
        %3187 = vmatmul.mubr.bf16.gmra.mrb[0].mxu0 %v2358
        %v3188 = vpop.f32.mrb[0].mxu0
        %v3189 = vadd.f32 %v2948, %v3188
        %v3190 = vpop.f32.mrb[0].mxu0
        %v3191 = vpop.f32.mrb[0].mxu0
        %v3192 = vadd.f32 %v2951, %v3191
        %v3193 = vpop.f32.mrb[0].mxu0
        %3194 = vmatprep.mubr.bf16.mxu0 %v2412
        %3195 = vmatmul.mubr.bf16.gmra.mrb[0].mxu0 %v2359
        %v3196 = vpop.f32.mrb[0].mxu0
        %v3197 = vadd.f32 %v2956, %v3196
        %v3198 = vpop.f32.mrb[0].mxu0
        %v3199 = vpop.f32.mrb[0].mxu0
        %v3200 = vadd.f32 %v2959, %v3199
        %v3201 = vpop.f32.mrb[0].mxu0
        %3202 = vmatprep.mubr.bf16.mxu0 %v2424
        %3203 = vmatmul.mubr.bf16.gmra.mrb[0].mxu0 %v2360
        %v3204 = vpop.f32.mrb[0].mxu0
        %v3205 = vadd.f32 %v2964, %v3204
        %v3206 = vpop.f32.mrb[0].mxu0
        %v3207 = vpop.f32.mrb[0].mxu0
        %v3208 = vadd.f32 %v2967, %v3207
        %v3209 = vpop.f32.mrb[0].mxu0
        %3210 = vmatprep.mubr.bf16.mxu0 %v2436
        %3211 = vmatmul.mubr.bf16.gmra.mrb[0].mxu0 %v2361
        %v3212 = vpop.f32.mrb[0].mxu0
        %v3213 = vadd.f32 %v2972, %v3212
        %v3214 = vpop.f32.mrb[0].mxu0
        %v3215 = vpop.f32.mrb[0].mxu0
        %v3216 = vadd.f32 %v2975, %v3215
        %v3217 = vpop.f32.mrb[0].mxu0
        %3218 = vmatprep.mubr.bf16.mxu0 %v2448
        %3219 = vmatmul.mubr.bf16.gmra.mrb[0].mxu0 %v2362
        %v3220 = vpop.f32.mrb[0].mxu0
        %v3221 = vadd.f32 %v2980, %v3220
        %v3222 = vpop.f32.mrb[0].mxu0
        %v3223 = vpop.f32.mrb[0].mxu0
        %v3224 = vadd.f32 %v2983, %v3223
        %v3225 = vpop.f32.mrb[0].mxu0
        %3226 = vmatprep.mubr.bf16.mxu0 %v2460
        %3227 = vmatmul.mubr.bf16.gmra.mrb[0].mxu0 %v2363
        %v3228 = vpop.f32.mrb[0].mxu0
        %v3229 = vadd.f32 %v2988, %v3228
        %v3230 = vpop.f32.mrb[0].mxu0
        %v3231 = vpop.f32.mrb[0].mxu0
        %v3232 = vadd.f32 %v2991, %v3231
        %v3233 = vpop.f32.mrb[0].mxu0
        %3234 = vmatprep.mubr.bf16.mxu0 %v2472
        %3235 = vmatmul.mubr.bf16.gmra.mrb[0].mxu0 %v2364
        %v3236 = vpop.f32.mrb[0].mxu0
        %v3237 = vadd.f32 %v2996, %v3236
        %v3238 = vpop.f32.mrb[0].mxu0
        %v3239 = vpop.f32.mrb[0].mxu0
        %v3240 = vadd.f32 %v2999, %v3239
        %v3241 = vpop.f32.mrb[0].mxu0
        %3242 = vdwg.mxu0
        %3243 = vmatprep.subr.bf16.mxu0 0
        %3244 = vmatpush1.bf16.msra.mxu0 %v3114
        %3245 = vmatprep.subr.bf16.mxu0 0
        %3246 = vmatpush1.bf16.msra.mxu0 %v3115
        %3247 = vmatprep.subr.bf16.mxu0 0
        %3248 = vmatpush1.bf16.msra.mxu0 %v3116
        %3249 = vmatprep.subr.bf16.mxu0 0
        %3250 = vmatpush1.bf16.msra.mxu0 %v3117
        %3251 = vmatprep.subr.bf16.mxu0 0
        %3252 = vmatpush1.bf16.msra.mxu0 %v3118
        %3253 = vmatprep.subr.bf16.mxu0 0
        %3254 = vmatpush1.bf16.msra.mxu0 %v3119
        %3255 = vmatprep.subr.bf16.mxu0 0
        %3256 = vmatpush1.bf16.msra.mxu0 %v3120
        %3257 = vmatprep.subr.bf16.mxu0 0
        %3258 = vmatpush1.bf16.msra.mxu0 %v3121
        %3259 = vmatprep.subr.bf16.mxu0 0
        %3260 = vmatpush1.bf16.msra.mxu0 0
        %3261 = vmatprep.subr.bf16.mxu0 0
        %3262 = vmatpush1.bf16.msra.mxu0 0
        %3263 = vmatprep.subr.bf16.mxu0 0
        %3264 = vmatpush1.bf16.msra.mxu0 0
        %3265 = vmatprep.subr.bf16.mxu0 0
        %3266 = vmatpush1.bf16.msra.mxu0 0
        %3267 = vmatprep.subr.bf16.mxu0 0
        %3268 = vmatpush1.bf16.msra.mxu0 0
        %3269 = vmatprep.subr.bf16.mxu0 0
        %3270 = vmatpush1.bf16.msra.mxu0 0
        %3271 = vmatprep.subr.bf16.mxu0 0
        %3272 = vmatpush1.bf16.msra.mxu0 0
        %3273 = vmatprep.subr.bf16.mxu0 0
        %3274 = vmatpush1.bf16.msra.mxu0 0
        %3275 = vmatprep.mubr.bf16.mxu0 0
        %3276 = vmatmul.mubr.bf16.gmra.mrb[0].mxu0 %v2529
        %v3277 = vpop.f32.mrb[0].mxu0
        %v3278 = vadd.f32 %v3181, %v3277
        %v3279 = vpop.f32.mrb[0].mxu0
        %v3280 = vpop.f32.mrb[0].mxu0
        %v3281 = vadd.f32 %v3184, %v3280
        %v3282 = vpop.f32.mrb[0].mxu0
        %3283 = vmatprep.mubr.bf16.mxu0 0
        %3284 = vmatmul.mubr.bf16.gmra.mrb[0].mxu0 %v2532
        %v3285 = vpop.f32.mrb[0].mxu0
        %v3286 = vadd.f32 %v3189, %v3285
        %v3287 = vpop.f32.mrb[0].mxu0
        %v3288 = vpop.f32.mrb[0].mxu0
        %v3289 = vadd.f32 %v3192, %v3288
        %v3290 = vpop.f32.mrb[0].mxu0
        %3291 = vmatprep.mubr.bf16.mxu0 0
        %3292 = vmatmul.mubr.bf16.gmra.mrb[0].mxu0 %v2535
        %v3293 = vpop.f32.mrb[0].mxu0
        %v3294 = vadd.f32 %v3197, %v3293
        %v3295 = vpop.f32.mrb[0].mxu0
        %v3296 = vpop.f32.mrb[0].mxu0
        %v3297 = vadd.f32 %v3200, %v3296
        %v3298 = vpop.f32.mrb[0].mxu0
        %3299 = vmatprep.mubr.bf16.mxu0 0
        %3300 = vmatmul.mubr.bf16.gmra.mrb[0].mxu0 %v2538
        %v3301 = vpop.f32.mrb[0].mxu0
        %v3302 = vadd.f32 %v3205, %v3301
        %v3303 = vpop.f32.mrb[0].mxu0
        %v3304 = vpop.f32.mrb[0].mxu0
        %v3305 = vadd.f32 %v3208, %v3304
        %v3306 = vpop.f32.mrb[0].mxu0
        %3307 = vmatprep.mubr.bf16.mxu0 0
        %3308 = vmatmul.mubr.bf16.gmra.mrb[0].mxu0 %v2541
        %v3309 = vpop.f32.mrb[0].mxu0
        %v3310 = vadd.f32 %v3213, %v3309
        %v3311 = vpop.f32.mrb[0].mxu0
        %v3312 = vpop.f32.mrb[0].mxu0
        %v3313 = vadd.f32 %v3216, %v3312
        %v3314 = vpop.f32.mrb[0].mxu0
        %3315 = vmatprep.mubr.bf16.mxu0 0
        %3316 = vmatmul.mubr.bf16.gmra.mrb[0].mxu0 %v2544
        %v3317 = vpop.f32.mrb[0].mxu0
        %v3318 = vadd.f32 %v3221, %v3317
        %v3319 = vpop.f32.mrb[0].mxu0
        %v3320 = vpop.f32.mrb[0].mxu0
        %v3321 = vadd.f32 %v3224, %v3320
        %v3322 = vpop.f32.mrb[0].mxu0
        %3323 = vmatprep.mubr.bf16.mxu0 0
        %3324 = vmatmul.mubr.bf16.gmra.mrb[0].mxu0 %v2547
        %v3325 = vpop.f32.mrb[0].mxu0
        %v3326 = vadd.f32 %v3229, %v3325
        %v3327 = vpop.f32.mrb[0].mxu0
        %v3328 = vpop.f32.mrb[0].mxu0
        %v3329 = vadd.f32 %v3232, %v3328
        %v3330 = vpop.f32.mrb[0].mxu0
        %3331 = vmatprep.mubr.bf16.mxu0 0
        %3332 = vmatmul.mubr.bf16.gmra.mrb[0].mxu0 %v2550
        %v3333 = vpop.f32.mrb[0].mxu0
        %v3334 = vadd.f32 %v3237, %v3333
        %v3335 = vpop.f32.mrb[0].mxu0
        %v3336 = vpop.f32.mrb[0].mxu0
        %v3337 = vadd.f32 %v3240, %v3336
        %v3338 = vpop.f32.mrb[0].mxu0
        %3339 = vdwg.mxu0
        %s3340 = scalar_lea.vmem [#allocation8], 384
        %v3341 = vld [vmem:[%s3340] sm:$0xf]
        %v3342 = vld [vmem:[%s3340 + $0x4] sm:$0xf]
        %v3343 = vld [vmem:[%s3340 + $0x8] sm:$0xf]
        %v3344 = vld [vmem:[%s3340 + $0xc] sm:$0xf]
        %v3345 = vld [vmem:[%s3340 + $0x10] sm:$0xf]
        %v3346 = vld [vmem:[%s3340 + $0x14] sm:$0xf]
        %v3347 = vld [vmem:[%s3340 + $0x18] sm:$0xf]
        %v3348 = vld [vmem:[%s3340 + $0x1c] sm:$0xf]
        %v3349 = vld [vmem:[%s3340 + $0x20] sm:$0xf]
        %v3350 = vld [vmem:[%s3340 + $0x24] sm:$0xf]
        %v3351 = vld [vmem:[%s3340 + $0x28] sm:$0xf]
        %v3352 = vld [vmem:[%s3340 + $0x2c] sm:$0xf]
        %v3353 = vld [vmem:[%s3340 + $0x30] sm:$0xf]
        %v3354 = vld [vmem:[%s3340 + $0x34] sm:$0xf]
        %v3355 = vld [vmem:[%s3340 + $0x38] sm:$0xf]
        %v3356 = vld [vmem:[%s3340 + $0x3c] sm:$0xf]
        %v3357 = vld [vmem:[%s3340 + $0x40] sm:$0xf]
        %v3358 = vld [vmem:[%s3340 + $0x44] sm:$0xf]
        %v3359 = vld [vmem:[%s3340 + $0x48] sm:$0xf]
        %v3360 = vld [vmem:[%s3340 + $0x4c] sm:$0xf]
        %v3361 = vld [vmem:[%s3340 + $0x50] sm:$0xf]
        %v3362 = vld [vmem:[%s3340 + $0x54] sm:$0xf]
        %v3363 = vld [vmem:[%s3340 + $0x58] sm:$0xf]
        %v3364 = vld [vmem:[%s3340 + $0x5c] sm:$0xf]
        %v3365 = vld [vmem:[%s3340 + $0x60] sm:$0xf]
        %v3366 = vld [vmem:[%s3340 + $0x64] sm:$0xf]
        %v3367 = vld [vmem:[%s3340 + $0x68] sm:$0xf]
        %v3368 = vld [vmem:[%s3340 + $0x6c] sm:$0xf]
        %v3369 = vld [vmem:[%s3340 + $0x70] sm:$0xf]
        %v3370 = vld [vmem:[%s3340 + $0x74] sm:$0xf]
        %v3371 = vld [vmem:[%s3340 + $0x78] sm:$0xf]
        %v3372 = vld [vmem:[%s3340 + $0x7c] sm:$0xf]
        %v3373 = vld [vmem:[%s3340 + $0x80] sm:$0xf]
        %v3374 = vld [vmem:[%s3340 + $0x84] sm:$0xf]
        %v3375 = vld [vmem:[%s3340 + $0x88] sm:$0xf]
        %v3376 = vld [vmem:[%s3340 + $0x8c] sm:$0xf]
        %v3377 = vld [vmem:[%s3340 + $0x90] sm:$0xf]
        %v3378 = vld [vmem:[%s3340 + $0x94] sm:$0xf]
        %v3379 = vld [vmem:[%s3340 + $0x98] sm:$0xf]
        %v3380 = vld [vmem:[%s3340 + $0x9c] sm:$0xf]
        %v3381 = vld [vmem:[%s3340 + $0xa0] sm:$0xf]
        %v3382 = vld [vmem:[%s3340 + $0xa4] sm:$0xf]
        %v3383 = vld [vmem:[%s3340 + $0xa8] sm:$0xf]
        %v3384 = vld [vmem:[%s3340 + $0xac] sm:$0xf]
        %v3385 = vld [vmem:[%s3340 + $0xb0] sm:$0xf]
        %v3386 = vld [vmem:[%s3340 + $0xb4] sm:$0xf]
        %v3387 = vld [vmem:[%s3340 + $0xb8] sm:$0xf]
        %v3388 = vld [vmem:[%s3340 + $0xbc] sm:$0xf]
        %v3437 = vunpack.c.l.b16 %v3341
        %v3438 = vunpack.c.l.b16 %v3342
        %v3439 = vunpack.c.l.b16 %v3343
        %v3440 = vunpack.c.l.b16 %v3344
        %v3441 = vunpack.c.l.b16 %v3345
        %v3442 = vunpack.c.l.b16 %v3346
        %v3443 = vunpack.c.l.b16 %v3347
        %v3444 = vunpack.c.l.b16 %v3348
        %v3445 = vunpack.c.l.b16 %v3349
        %v3446 = vunpack.c.l.b16 %v3350
        %v3447 = vunpack.c.l.b16 %v3351
        %v3448 = vunpack.c.l.b16 %v3352
        %v3449 = vunpack.c.l.b16 %v3353
        %v3450 = vunpack.c.l.b16 %v3354
        %v3451 = vunpack.c.l.b16 %v3355
        %v3452 = vunpack.c.l.b16 %v3356
        %v3453 = vunpack.c.l.b16 %v3357
        %v3454 = vunpack.c.l.b16 %v3358
        %v3455 = vunpack.c.l.b16 %v3359
        %v3456 = vunpack.c.l.b16 %v3360
        %v3457 = vunpack.c.l.b16 %v3361
        %v3458 = vunpack.c.l.b16 %v3362
        %v3459 = vunpack.c.l.b16 %v3363
        %v3460 = vunpack.c.l.b16 %v3364
        %v3461 = vunpack.c.l.b16 %v3365
        %v3462 = vunpack.c.l.b16 %v3366
        %v3463 = vunpack.c.l.b16 %v3367
        %v3464 = vunpack.c.l.b16 %v3368
        %v3465 = vunpack.c.l.b16 %v3369
        %v3466 = vunpack.c.l.b16 %v3370
        %v3467 = vunpack.c.l.b16 %v3371
        %v3468 = vunpack.c.l.b16 %v3372
        %v3469 = vunpack.c.l.b16 %v3373
        %v3470 = vunpack.c.l.b16 %v3374
        %v3471 = vunpack.c.l.b16 %v3375
        %v3472 = vunpack.c.l.b16 %v3376
        %v3473 = vunpack.c.l.b16 %v3377
        %v3474 = vunpack.c.l.b16 %v3378
        %v3475 = vunpack.c.l.b16 %v3379
        %v3476 = vunpack.c.l.b16 %v3380
        %v3477 = vunpack.c.l.b16 %v3381
        %v3478 = vunpack.c.l.b16 %v3382
        %v3479 = vunpack.c.l.b16 %v3383
        %v3480 = vunpack.c.l.b16 %v3384
        %v3481 = vunpack.c.l.b16 %v3385
        %v3482 = vunpack.c.l.b16 %v3386
        %v3483 = vunpack.c.l.b16 %v3387
        %v3484 = vunpack.c.l.b16 %v3388
        %v3485 = vpack.c.b16 %v3438, %v3437
        %v3486 = vpack.c.b16 %v3440, %v3439
        %v3487 = vpack.c.b16 %v3442, %v3441
        %v3488 = vpack.c.b16 %v3444, %v3443
        %v3489 = vpack.c.b16 %v3446, %v3445
        %v3490 = vpack.c.b16 %v3448, %v3447
        %v3491 = vpack.c.b16 %v3450, %v3449
        %v3492 = vpack.c.b16 %v3452, %v3451
        %v3493 = vpack.c.b16 %v3454, %v3453
        %v3494 = vpack.c.b16 %v3456, %v3455
        %v3495 = vpack.c.b16 %v3458, %v3457
        %v3496 = vpack.c.b16 %v3460, %v3459
        %v3497 = vpack.c.b16 %v3462, %v3461
        %v3498 = vpack.c.b16 %v3464, %v3463
        %v3499 = vpack.c.b16 %v3466, %v3465
        %v3500 = vpack.c.b16 %v3468, %v3467
        %v3501 = vpack.c.b16 %v3470, %v3469
        %v3502 = vpack.c.b16 %v3472, %v3471
        %v3503 = vpack.c.b16 %v3474, %v3473
        %v3504 = vpack.c.b16 %v3476, %v3475
        %v3505 = vpack.c.b16 %v3478, %v3477
        %v3506 = vpack.c.b16 %v3480, %v3479
        %v3507 = vpack.c.b16 %v3482, %v3481
        %v3508 = vpack.c.b16 %v3484, %v3483
        %3533 = vmatprep.subr.bf16.mxu0 0
        %3534 = vmatpush1.bf16.msra.mxu0 %v3485
        %3535 = vmatprep.subr.bf16.mxu0 0
        %3536 = vmatpush1.bf16.msra.mxu0 %v3486
        %3537 = vmatprep.subr.bf16.mxu0 0
        %3538 = vmatpush1.bf16.msra.mxu0 %v3487
        %3539 = vmatprep.subr.bf16.mxu0 0
        %3540 = vmatpush1.bf16.msra.mxu0 %v3488
        %3541 = vmatprep.subr.bf16.mxu0 0
        %3542 = vmatpush1.bf16.msra.mxu0 %v3489
        %3543 = vmatprep.subr.bf16.mxu0 0
        %3544 = vmatpush1.bf16.msra.mxu0 %v3490
        %3545 = vmatprep.subr.bf16.mxu0 0
        %3546 = vmatpush1.bf16.msra.mxu0 %v3491
        %3547 = vmatprep.subr.bf16.mxu0 0
        %3548 = vmatpush1.bf16.msra.mxu0 %v3492
        %3549 = vmatprep.subr.bf16.mxu0 0
        %3550 = vmatpush1.bf16.msra.mxu0 %v3493
        %3551 = vmatprep.subr.bf16.mxu0 0
        %3552 = vmatpush1.bf16.msra.mxu0 %v3494
        %3553 = vmatprep.subr.bf16.mxu0 0
        %3554 = vmatpush1.bf16.msra.mxu0 %v3495
        %3555 = vmatprep.subr.bf16.mxu0 0
        %3556 = vmatpush1.bf16.msra.mxu0 %v3496
        %3557 = vmatprep.subr.bf16.mxu0 0
        %3558 = vmatpush1.bf16.msra.mxu0 %v3497
        %3559 = vmatprep.subr.bf16.mxu0 0
        %3560 = vmatpush1.bf16.msra.mxu0 %v3498
        %3561 = vmatprep.subr.bf16.mxu0 0
        %3562 = vmatpush1.bf16.msra.mxu0 %v3499
        %3563 = vmatprep.subr.bf16.mxu0 0
        %3564 = vmatpush1.bf16.msra.mxu0 %v3500
        %3565 = vmatprep.mubr.bf16.mxu0 %v2412
        %3566 = vmatmul.mubr.bf16.gmra.mrb[0].mxu0 %v2359
        %v3567 = vpop.f32.mrb[0].mxu0
        %v3568 = vadd.f32 0.0, %v3567
        %v3569 = vpop.f32.mrb[0].mxu0
        %v3570 = vpop.f32.mrb[0].mxu0
        %v3571 = vadd.f32 0.0, %v3570
        %v3572 = vpop.f32.mrb[0].mxu0
        %3573 = vmatprep.mubr.bf16.mxu0 %v2424
        %3574 = vmatmul.mubr.bf16.gmra.mrb[0].mxu0 %v2360
        %v3575 = vpop.f32.mrb[0].mxu0
        %v3576 = vadd.f32 0.0, %v3575
        %v3577 = vpop.f32.mrb[0].mxu0
        %v3578 = vpop.f32.mrb[0].mxu0
        %v3579 = vadd.f32 0.0, %v3578
        %v3580 = vpop.f32.mrb[0].mxu0
        %3581 = vmatprep.mubr.bf16.mxu0 %v2436
        %3582 = vmatmul.mubr.bf16.gmra.mrb[0].mxu0 %v2361
        %v3583 = vpop.f32.mrb[0].mxu0
        %v3584 = vadd.f32 0.0, %v3583
        %v3585 = vpop.f32.mrb[0].mxu0
        %v3586 = vpop.f32.mrb[0].mxu0
        %v3587 = vadd.f32 0.0, %v3586
        %v3588 = vpop.f32.mrb[0].mxu0
        %3589 = vmatprep.mubr.bf16.mxu0 %v2448
        %3590 = vmatmul.mubr.bf16.gmra.mrb[0].mxu0 %v2362
        %v3591 = vpop.f32.mrb[0].mxu0
        %v3592 = vadd.f32 0.0, %v3591
        %v3593 = vpop.f32.mrb[0].mxu0
        %v3594 = vpop.f32.mrb[0].mxu0
        %v3595 = vadd.f32 0.0, %v3594
        %v3596 = vpop.f32.mrb[0].mxu0
        %3597 = vmatprep.mubr.bf16.mxu0 %v2460
        %3598 = vmatmul.mubr.bf16.gmra.mrb[0].mxu0 %v2363
        %v3599 = vpop.f32.mrb[0].mxu0
        %v3600 = vadd.f32 0.0, %v3599
        %v3601 = vpop.f32.mrb[0].mxu0
        %v3602 = vpop.f32.mrb[0].mxu0
        %v3603 = vadd.f32 0.0, %v3602
        %v3604 = vpop.f32.mrb[0].mxu0
        %3605 = vmatprep.mubr.bf16.mxu0 %v2472
        %3606 = vmatmul.mubr.bf16.gmra.mrb[0].mxu0 %v2364
        %v3607 = vpop.f32.mrb[0].mxu0
        %v3608 = vadd.f32 0.0, %v3607
        %v3609 = vpop.f32.mrb[0].mxu0
        %v3610 = vpop.f32.mrb[0].mxu0
        %v3611 = vadd.f32 0.0, %v3610
        %v3612 = vpop.f32.mrb[0].mxu0
        %3613 = vmatprep.mubr.bf16.mxu0 %v2484
        %3614 = vmatmul.mubr.bf16.gmra.mrb[0].mxu0 %v2365
        %v3615 = vpop.f32.mrb[0].mxu0
        %v3616 = vadd.f32 0.0, %v3615
        %v3617 = vpop.f32.mrb[0].mxu0
        %v3618 = vpop.f32.mrb[0].mxu0
        %v3619 = vadd.f32 0.0, %v3618
        %v3620 = vpop.f32.mrb[0].mxu0
        %3621 = vmatprep.mubr.bf16.mxu0 %v2496
        %3622 = vmatmul.mubr.bf16.gmra.mrb[0].mxu0 %v2366
        %v3623 = vpop.f32.mrb[0].mxu0
        %v3624 = vadd.f32 0.0, %v3623
        %v3625 = vpop.f32.mrb[0].mxu0
        %v3626 = vpop.f32.mrb[0].mxu0
        %v3627 = vadd.f32 0.0, %v3626
        %v3628 = vpop.f32.mrb[0].mxu0
        %3629 = vdwg.mxu0
        %3630 = vmatprep.subr.bf16.mxu0 0
        %3631 = vmatpush1.bf16.msra.mxu0 %v3501
        %3632 = vmatprep.subr.bf16.mxu0 0
        %3633 = vmatpush1.bf16.msra.mxu0 %v3502
        %3634 = vmatprep.subr.bf16.mxu0 0
        %3635 = vmatpush1.bf16.msra.mxu0 %v3503
        %3636 = vmatprep.subr.bf16.mxu0 0
        %3637 = vmatpush1.bf16.msra.mxu0 %v3504
        %3638 = vmatprep.subr.bf16.mxu0 0
        %3639 = vmatpush1.bf16.msra.mxu0 %v3505
        %3640 = vmatprep.subr.bf16.mxu0 0
        %3641 = vmatpush1.bf16.msra.mxu0 %v3506
        %3642 = vmatprep.subr.bf16.mxu0 0
        %3643 = vmatpush1.bf16.msra.mxu0 %v3507
        %3644 = vmatprep.subr.bf16.mxu0 0
        %3645 = vmatpush1.bf16.msra.mxu0 %v3508
        %3646 = vmatprep.subr.bf16.mxu0 0
        %3647 = vmatpush1.bf16.msra.mxu0 0
        %3648 = vmatprep.subr.bf16.mxu0 0
        %3649 = vmatpush1.bf16.msra.mxu0 0
        %3650 = vmatprep.subr.bf16.mxu0 0
        %3651 = vmatpush1.bf16.msra.mxu0 0
        %3652 = vmatprep.subr.bf16.mxu0 0
        %3653 = vmatpush1.bf16.msra.mxu0 0
        %3654 = vmatprep.subr.bf16.mxu0 0
        %3655 = vmatpush1.bf16.msra.mxu0 0
        %3656 = vmatprep.subr.bf16.mxu0 0
        %3657 = vmatpush1.bf16.msra.mxu0 0
        %3658 = vmatprep.subr.bf16.mxu0 0
        %3659 = vmatpush1.bf16.msra.mxu0 0
        %3660 = vmatprep.subr.bf16.mxu0 0
        %3661 = vmatpush1.bf16.msra.mxu0 0
        %3662 = vmatprep.mubr.bf16.mxu0 0
        %3663 = vmatmul.mubr.bf16.gmra.mrb[0].mxu0 %v2535
        %v3664 = vpop.f32.mrb[0].mxu0
        %v3665 = vadd.f32 %v3568, %v3664
        %v3666 = vpop.f32.mrb[0].mxu0
        %v3667 = vpop.f32.mrb[0].mxu0
        %v3668 = vadd.f32 %v3571, %v3667
        %v3669 = vpop.f32.mrb[0].mxu0
        %3670 = vmatprep.mubr.bf16.mxu0 0
        %3671 = vmatmul.mubr.bf16.gmra.mrb[0].mxu0 %v2538
        %v3672 = vpop.f32.mrb[0].mxu0
        %v3673 = vadd.f32 %v3576, %v3672
        %v3674 = vpop.f32.mrb[0].mxu0
        %v3675 = vpop.f32.mrb[0].mxu0
        %v3676 = vadd.f32 %v3579, %v3675
        %v3677 = vpop.f32.mrb[0].mxu0
        %3678 = vmatprep.mubr.bf16.mxu0 0
        %3679 = vmatmul.mubr.bf16.gmra.mrb[0].mxu0 %v2541
        %v3680 = vpop.f32.mrb[0].mxu0
        %v3681 = vadd.f32 %v3584, %v3680
        %v3682 = vpop.f32.mrb[0].mxu0
        %v3683 = vpop.f32.mrb[0].mxu0
        %v3684 = vadd.f32 %v3587, %v3683
        %v3685 = vpop.f32.mrb[0].mxu0
        %3686 = vmatprep.mubr.bf16.mxu0 0
        %3687 = vmatmul.mubr.bf16.gmra.mrb[0].mxu0 %v2544
        %v3688 = vpop.f32.mrb[0].mxu0
        %v3689 = vadd.f32 %v3592, %v3688
        %v3690 = vpop.f32.mrb[0].mxu0
        %v3691 = vpop.f32.mrb[0].mxu0
        %v3692 = vadd.f32 %v3595, %v3691
        %v3693 = vpop.f32.mrb[0].mxu0
        %3694 = vmatprep.mubr.bf16.mxu0 0
        %3695 = vmatmul.mubr.bf16.gmra.mrb[0].mxu0 %v2547
        %v3696 = vpop.f32.mrb[0].mxu0
        %v3697 = vadd.f32 %v3600, %v3696
        %v3698 = vpop.f32.mrb[0].mxu0
        %v3699 = vpop.f32.mrb[0].mxu0
        %v3700 = vadd.f32 %v3603, %v3699
        %v3701 = vpop.f32.mrb[0].mxu0
        %3702 = vmatprep.mubr.bf16.mxu0 0
        %3703 = vmatmul.mubr.bf16.gmra.mrb[0].mxu0 %v2550
        %v3704 = vpop.f32.mrb[0].mxu0
        %v3705 = vadd.f32 %v3608, %v3704
        %v3706 = vpop.f32.mrb[0].mxu0
        %v3707 = vpop.f32.mrb[0].mxu0
        %v3708 = vadd.f32 %v3611, %v3707
        %v3709 = vpop.f32.mrb[0].mxu0
        %3710 = vmatprep.mubr.bf16.mxu0 0
        %3711 = vmatmul.mubr.bf16.gmra.mrb[0].mxu0 %v2553
        %v3712 = vpop.f32.mrb[0].mxu0
        %v3713 = vadd.f32 %v3616, %v3712
        %v3714 = vpop.f32.mrb[0].mxu0
        %v3715 = vpop.f32.mrb[0].mxu0
        %v3716 = vadd.f32 %v3619, %v3715
        %v3717 = vpop.f32.mrb[0].mxu0
        %3718 = vmatprep.mubr.bf16.mxu0 0
        %3719 = vmatmul.mubr.bf16.gmra.mrb[0].mxu0 %v2556
        %v3720 = vpop.f32.mrb[0].mxu0
        %v3721 = vadd.f32 %v3624, %v3720
        %v3722 = vpop.f32.mrb[0].mxu0
        %v3723 = vpop.f32.mrb[0].mxu0
        %v3724 = vadd.f32 %v3627, %v3723
        %v3725 = vpop.f32.mrb[0].mxu0
        %3726 = vdwg.mxu0
        %v3727 = vadd.f32 %v3278, %v3665
        %v3728 = vadd.f32 %v3281, %v3668
        %v3729 = vadd.f32 %v3286, %v3673
        %v3730 = vadd.f32 %v3289, %v3676
        %v3731 = vadd.f32 %v3294, %v3681
        %v3732 = vadd.f32 %v3297, %v3684
        %v3733 = vadd.f32 %v3302, %v3689
        %v3734 = vadd.f32 %v3305, %v3692
        %v3735 = vadd.f32 %v3310, %v3697
        %v3736 = vadd.f32 %v3313, %v3700
        %v3737 = vadd.f32 %v3318, %v3705
        %v3738 = vadd.f32 %v3321, %v3708
        %v3739 = vadd.f32 %v3326, %v3713
        %v3740 = vadd.f32 %v3329, %v3716
        %v3741 = vadd.f32 %v3334, %v3721
        %v3742 = vadd.f32 %v3337, %v3724
        %s3743 = scalar_lea.vmem %s301, 32 [#allocation2]
        %v3744 = vld [vmem:[%s3743] sm:$0xff]
        %v3745 = vld [vmem:[%s3743 + $0x8] sm:$0xff]
        %v3746 = vld [vmem:[%s3743 + $0x10] sm:$0xff]
        %v3747 = vld [vmem:[%s3743 + $0x18] sm:$0xff]
        %v3748 = vld [vmem:[%s3743 + $0x20] sm:$0xff]
        %v3749 = vld [vmem:[%s3743 + $0x28] sm:$0xff]
        %v3750 = vld [vmem:[%s3743 + $0x30] sm:$0xff]
        %v3751 = vld [vmem:[%s3743 + $0x38] sm:$0xff]
        %v3752 = vld [vmem:[%s3743 + $0x40] sm:$0xff]
        %v3753 = vld [vmem:[%s3743 + $0x48] sm:$0xff]
        %v3754 = vld [vmem:[%s3743 + $0x50] sm:$0xff]
        %v3755 = vld [vmem:[%s3743 + $0x58] sm:$0xff]
        %v3756 = vld [vmem:[%s310] sm:$0xff]
        %v3757 = vld [vmem:[%s310 + $0x8] sm:$0xff]
        %v3758 = vld [vmem:[%s310 + $0x10] sm:$0xff]
        %v3759 = vld [vmem:[%s310 + $0x18] sm:$0xff]
        %v3760 = vadd.f32 %v3727, %v3744
        %v3761 = vadd.f32 %v3728, %v3745
        %v3762 = vadd.f32 %v3729, %v3746
        %v3763 = vadd.f32 %v3730, %v3747
        %v3764 = vadd.f32 %v3731, %v3748
        %v3765 = vadd.f32 %v3732, %v3749
        %v3766 = vadd.f32 %v3733, %v3750
        %v3767 = vadd.f32 %v3734, %v3751
        %v3768 = vadd.f32 %v3735, %v3752
        %v3769 = vadd.f32 %v3736, %v3753
        %v3770 = vadd.f32 %v3737, %v3754
        %v3771 = vadd.f32 %v3738, %v3755
        %v3772 = vadd.f32 %v3739, %v3756
        %v3773 = vadd.f32 %v3740, %v3757
        %v3774 = vadd.f32 %v3741, %v3758
        %v3775 = vadd.f32 %v3742, %v3759
        %3776 = vst [vmem:[%s349] sm:$0xff] %v3760
        %3777 = vst [vmem:[%s349 + $0x8] sm:$0xff] %v3761
        %3778 = vst [vmem:[%s349 + $0x10] sm:$0xff] %v3762
        %3779 = vst [vmem:[%s349 + $0x18] sm:$0xff] %v3763
        %3780 = vst [vmem:[%s349 + $0x20] sm:$0xff] %v3764
        %3781 = vst [vmem:[%s349 + $0x28] sm:$0xff] %v3765
        %3782 = vst [vmem:[%s349 + $0x30] sm:$0xff] %v3766
        %3783 = vst [vmem:[%s349 + $0x38] sm:$0xff] %v3767
        %3784 = vst [vmem:[%s349 + $0x40] sm:$0xff] %v3768
        %3785 = vst [vmem:[%s349 + $0x48] sm:$0xff] %v3769
        %3786 = vst [vmem:[%s349 + $0x50] sm:$0xff] %v3770
        %3787 = vst [vmem:[%s349 + $0x58] sm:$0xff] %v3771
        %3788 = vst [vmem:[%s349 + $0x60] sm:$0xff] %v3772
        %3789 = vst [vmem:[%s349 + $0x68] sm:$0xff] %v3773
        %3790 = vst [vmem:[%s349 + $0x70] sm:$0xff] %v3774
        %3791 = vst [vmem:[%s349 + $0x78] sm:$0xff] %v3775
        %s3792 = sand.u32 %s171, 1
        %s3793 = scalar_lea.sflag [#allocation4], %s3792
        %s3794 = sand.u32 %s171, 1
        %s3795 = smul.addr %s3794, 128
        %s3796 = scalar_lea.vmem [#allocation10], %s3795
        // Predicated region
        $region57: #{tpu_custom_call.1} parent=39 // pred_check
          %p3797 = pneg %p181
        $region58: #{tpu_custom_call.1} parent=39 // pred_check_branch
          %3799 = sbr.rel (%p3797) target = $region60
        $region59: #{tpu_custom_call.1} parent=39 // pred_region
          %s3800 = smul.u32 8, %s31
          %s3802 = ssub.s32 2048, 2048
          %3803 = vsyncadd %s3793, %s3802
          %s3804 = smul.addr %s3800, 2
          %s3805 = smul.addr %s30, 32
          %s3806 = sadd.s32 %s3804, %s3805
          %s3807 = smul.addr %s3806, 128
          %s3808 = scalar_lea.hbm %s5, %s3807
          %s3809 = sshll.u32 %s3796, 4
          %s3810 = int_to_ptr.vmem [resolvable:$true] %s3809
          %3815 = dma.vmem_to_hbm [thread:$0]  %s3810, 2048, %s3808, %s3793, 128, 128, 8
        $region60: #{tpu_custom_call.1} parent=39 // pred_fallthru
          _
      $region40: #{tpu_custom_call.1} parent=5 // pred_fallthru
        _
      %p3816 = scmp.le.s32.totalorder 2, %s21
      // Predicated region
      $region61: #{tpu_custom_call.1} parent=5 // pred_check
        %p3817 = pneg %p3816
      $region62: #{tpu_custom_call.1} parent=5 // pred_check_branch
        %3819 = sbr.rel (%p3817) target = $region64
      $region63: #{tpu_custom_call.1} parent=5 // pred_region
        %s3820 = ssub.s32 %s21, 2
        // Predicated region
        $region65: #{tpu_custom_call.1} parent=63 // pred_check
          %p3821 = pneg %p187
        $region66: #{tpu_custom_call.1} parent=63 // pred_check_branch
          %3823 = sbr.rel (%p3821) target = $region68
        $region67: #{tpu_custom_call.1} parent=63 // pred_region
          %s3824 = sand.u32 %s172, 1
          %s3825 = scalar_lea.sflag [#allocation4], %s3824
          %s3826 = sand.u32 %s172, 1
          %s3827 = smul.addr %s3826, 128
          %s3828 = scalar_lea.vmem [#allocation10], %s3827
          %3829 = dma.done %s3825, 2048
        $region68: #{tpu_custom_call.1} parent=63 // pred_fallthru
          _
      $region64: #{tpu_custom_call.1} parent=5 // pred_fallthru
        _
    $region6: #{tpu_custom_call.1} parent=1 // loop_footer
      %s25 = sadd.s32 1, %s21
    $region7: #{tpu_custom_call.1} parent=1 // loop_footer_branch
      %20 = sbr.rel target = $region3
    $region8: #{tpu_custom_call.1} parent=1 // loop_exit
      _
    %3830 = vsyncpa [#allocation3], 1
    %s3831 = scalar_lea.sflag [#allocation3], 1
    %3832 = vsyncpa %s3831, 1
    %3833 = vsyncpa [#allocation6], 1
    %s3834 = scalar_lea.sflag [#allocation6], 1
    %3835 = vsyncpa %s3834, 1
    %3836 = vsyncpa [#allocation9], 1
    %3837 = vsyncpa [#allocation4], 1
    %s3838 = scalar_lea.sflag [#allocation4], 1
    %3839 = vsyncpa %s3838, 1

</llo_original>
